<compile_context>
chip_gen: v5e
topology: v5e:2x2
jax: 0.10.0
libtpu: 0.0.40
codegen_flags: <defaults>
</compile_context>

<pallas_src>
import functools

import jax
import jax.numpy as jnp
from jax.experimental import pallas as pl
from jax.experimental.pallas import tpu as pltpu


def _round_up(x, m):
    return ((x + m - 1) // m) * m


def _mlp_kernel(x_ref, w1_ref, b1_ref, w2_ref, b2_ref, o_ref):
    # Layer 0: Linear(in -> hidden) + ReLU.  bf16 MXU operands, f32 accumulation.
    x = x_ref[...].astype(jnp.bfloat16)            # in-kernel cast: no wrapper HBM round trip
    h = jnp.dot(x, w1_ref[...], preferred_element_type=jnp.float32)
    h = jnp.maximum(h + b1_ref[...], 0.0)          # (tm,H) + (1,H) broadcast, f32 bias + ReLU
    # Layer 1: Linear(hidden -> out) + Identity.
    o = jnp.dot(h.astype(jnp.bfloat16), w2_ref[...],
                preferred_element_type=jnp.float32)
    o_ref[...] = (o + b2_ref[...]).astype(o_ref.dtype)   # bf16 store


@functools.lru_cache(maxsize=1)
def _vmem_cap_bytes():
    """Generation-aware scoped-VMEM ceiling: 75% of physical VMEM per core."""
    try:
        cap = int(pltpu.get_tpu_info().vmem_capacity_bytes)
    except Exception:
        cap = 64 << 20          # assume v7x worst case if the query is unavailable
    return (cap * 3) // 4


def _vmem_bytes(tm, in_dim, hidden, out_dim, x_bytes, w_bytes=2, out_bytes=2):
    acc = 4
    weights = (in_dim * hidden + hidden * out_dim) * w_bytes   # resident, single-buffered
    biases = 8 * (hidden + out_dim) * acc                      # (1,H) pads to (8,H) sublanes
    x_tiles = 2 * tm * in_dim * x_bytes                        # double-buffered input tile
    o_tiles = 2 * tm * out_dim * out_bytes                     # double-buffered output tile
    live = tm * (hidden + out_dim) * acc                       # f32 h / o intermediates
    live += tm * (in_dim + hidden) * 2                         # bf16 casts of x and h
    return weights + biases + x_tiles + o_tiles + live


@functools.partial(jax.jit, static_argnames=("tm",))
def mlp_forward(x, w1, b1, w2, b2, *, tm=512):
    """Fused 2-layer MLP as a single Pallas kernel.

    x : (B, input_dim)            (native dtype; cast to bf16 inside the kernel)
    w1: (input_dim, hidden_dim)   (bf16 preferred),  b1: (1, hidden_dim) f32
    w2: (hidden_dim, output_dim)  (bf16 preferred),  b2: (1, output_dim) f32
    returns (B, output_dim) bfloat16 (f32 accumulation inside the kernel)
    """
    B, in_dim = x.shape
    hidden = w1.shape[1]
    out_dim = w2.shape[1]
    assert tm % 16 == 0, "row tile must be a multiple of 16 (bf16 sublane packing)"

    # Clamp the row tile so there are >= 2 grid steps (keeps both v7x TCs busy);
    # harmless (2 sequential steps) on single-TC v5e/v6e.  Pallas masks the
    # ragged last block, so tm need not divide B and no wrapper pad is needed.
    tm_eff = min(tm, _round_up(pl.cdiv(B, 2), 16))
    if tm_eff >= B:
        tm_eff = B              # single full block (block dim == array dim is legal)
    grid_m = pl.cdiv(B, tm_eff)

    x_bytes = jnp.dtype(x.dtype).itemsize
    w_bytes = jnp.dtype(w1.dtype).itemsize
    needed = _vmem_bytes(tm_eff, in_dim, hidden, out_dim, x_bytes, w_bytes, out_bytes=2)
    vmem_limit = int(min(max(int(1.5 * needed) + (2 << 20), 16 << 20), _vmem_cap_bytes()))

    resident = pl.Buffered(1)   # constant block index -> no second pipeline buffer
    return pl.pallas_call(
        _mlp_kernel,
        out_shape=jax.ShapeDtypeStruct((B, out_dim), jnp.bfloat16),
        grid_spec=pltpu.PrefetchScalarGridSpec(
            num_scalar_prefetch=0,
            grid=(grid_m,),
            in_specs=[
                pl.BlockSpec((tm_eff, in_dim), lambda i: (i, 0)),     # x row tile
                pl.BlockSpec((in_dim, hidden), lambda i: (0, 0),      # W1 resident
                             pipeline_mode=resident),
                pl.BlockSpec((1, hidden), lambda i: (0, 0),           # b1 resident
                             pipeline_mode=resident),
                pl.BlockSpec((hidden, out_dim), lambda i: (0, 0),     # W2 resident
                             pipeline_mode=resident),
                pl.BlockSpec((1, out_dim), lambda i: (0, 0),          # b2 resident
                             pipeline_mode=resident),
            ],
            out_specs=pl.BlockSpec((tm_eff, out_dim), lambda i: (i, 0)),
        ),
        compiler_params=pltpu.CompilerParams(
            dimension_semantics=("parallel",),    # shard row tiles across TCs (v7x)
            vmem_limit_bytes=vmem_limit,
        ),
    )(x, w1, b1, w2, b2)


def mlp_apply(*xs, params, tm=512):
    """Mirrors MLP.forward(*x): concat on the last axis, then the fused MLP."""
    x = jnp.concatenate(xs, axis=-1) if len(xs) > 1 else xs[0]
    lead = x.shape[:-1]
    x2 = x.reshape(-1, x.shape[-1])
    w1, b1, w2, b2 = params
    # Defensive (cheap / no-op when params are already in kernel layout):
    b1 = jnp.asarray(b1, jnp.float32).reshape(1, -1)   # accept torch-style 1-D bias
    b2 = jnp.asarray(b2, jnp.float32).reshape(1, -1)
    w1 = jnp.asarray(w1, jnp.bfloat16)                 # weights pre-stored bf16 -> no-op
    w2 = jnp.asarray(w2, jnp.bfloat16)
    out = mlp_forward(x2, w1, b1, w2, b2, tm=tm)
    return out.reshape(*lead, out.shape[-1])


def make_params(key, input_dim, hidden_dim, output_dim):
    """Deterministic synthetic parameters (stand-in for Utils.weight_init)."""
    # TODO(synk): Utils.weight_init (orthogonal init) not replicated; using a
    # deterministic scaled-normal init since this is a synthetic kernel test.
    k1, k2, k3, k4 = jax.random.split(key, 4)
    w1 = (jax.random.normal(k1, (input_dim, hidden_dim), jnp.float32)
          / jnp.sqrt(input_dim)).astype(jnp.bfloat16)          # pre-stored bf16
    b1 = 0.01 * jax.random.normal(k2, (1, hidden_dim), jnp.float32)
    w2 = (jax.random.normal(k3, (hidden_dim, output_dim), jnp.float32)
          / jnp.sqrt(hidden_dim)).astype(jnp.bfloat16)         # pre-stored bf16
    b2 = 0.01 * jax.random.normal(k4, (1, output_dim), jnp.float32)
    return w1, b1, w2, b2


if __name__ == "__main__":
    # Module defaults: input_dim=128, hidden_dim=512, output_dim=1024, depth=1.
    # Batch 200 exercises the ragged-last-block path (no wrapper pad/slice) and
    # the grid>=2 clamp (two row tiles -> both v7x TensorCores get work).
    B, IN, HID, OUT = 200, 128, 512, 1024

    key = jax.random.PRNGKey(0)
    kx, kp = jax.random.split(key)
    x = jax.random.normal(kx, (B, IN), jnp.float32)
    params = make_params(kp, IN, HID, OUT)

    out = mlp_apply(x, params=params)
    out = jax.block_until_ready(out)
    assert out.shape == (B, OUT)
    assert out.dtype == jnp.bfloat16

    # Reference in plain JAX with the same bf16 operands / f32 accumulation / bf16 output.
    # NOTE: tolerance reflects the intentional bf16 operand + bf16-output precision.
    w1, b1, w2, b2 = params
    w1f = jnp.asarray(w1, jnp.float32)
    w2f = jnp.asarray(w2, jnp.float32)
    xb = x.astype(jnp.bfloat16).astype(jnp.float32)
    h_ref = jnp.maximum(xb @ w1f + b1, 0.0)
    ref = h_ref.astype(jnp.bfloat16).astype(jnp.float32) @ w2f + b2
    ref = ref.astype(jnp.bfloat16).astype(jnp.float32)
    out_f = out.astype(jnp.float32)
    assert jnp.allclose(out_f, ref, atol=3e-2, rtol=3e-2), (
        float(jnp.max(jnp.abs(out_f - ref))))

    print("KERNEL_OK")
</pallas_src>

<mosaic_0001>
module attributes {stable_mosaic.version = 11 : i64} {
  func.func @_mlp_kernel(%arg0: i32, %arg1: memref<112x128xf32, #tpu.memory_space<vmem>>, %arg2: memref<128x512xbf16, #tpu.memory_space<vmem>>, %arg3: memref<1x512xf32, #tpu.memory_space<vmem>>, %arg4: memref<512x1024xbf16, #tpu.memory_space<vmem>>, %arg5: memref<1x1024xf32, #tpu.memory_space<vmem>>, %arg6: memref<112x1024xbf16, #tpu.memory_space<vmem>>) attributes {dimension_semantics = [#tpu.dimension_semantics<parallel>], iteration_bounds = array<i64: 2>, scalar_prefetch = 0 : i64, scratch_operands = 0 : i64, tpu.core_type = #tpu.core_type<tc>, window_params = [{transform_indices = @transform_0, window_bounds = array<i64: 112, 128>}, {pipeline_mode = #tpu.pipeline_mode<synchronous>, transform_indices = @transform_1, window_bounds = array<i64: 128, 512>}, {pipeline_mode = #tpu.pipeline_mode<synchronous>, transform_indices = @transform_2, window_bounds = array<i64: 1, 512>}, {pipeline_mode = #tpu.pipeline_mode<synchronous>, transform_indices = @transform_3, window_bounds = array<i64: 512, 1024>}, {pipeline_mode = #tpu.pipeline_mode<synchronous>, transform_indices = @transform_4, window_bounds = array<i64: 1, 1024>}, {transform_indices = @transform_5, window_bounds = array<i64: 112, 1024>}]} {
    %c0 = arith.constant 0 : index
    %c0_0 = arith.constant 0 : index
    %0 = vector.load %arg1[%c0, %c0_0] : memref<112x128xf32, #tpu.memory_space<vmem>>, vector<112x128xf32>
    %1 = arith.truncf %0 : vector<112x128xf32> to vector<112x128xbf16>
    %c0_1 = arith.constant 0 : index
    %c0_2 = arith.constant 0 : index
    %2 = vector.load %arg2[%c0_1, %c0_2] : memref<128x512xbf16, #tpu.memory_space<vmem>>, vector<128x512xbf16>
    %cst = arith.constant dense<0.000000e+00> : vector<112x512xf32>
    %3 = tpu.matmul %1, %2, %cst {dimension_numbers = #tpu.dot_dimension_numbers<[1], [0], [0], [1], [0, 0, 1, 1], [], []>} : vector<112x128xbf16>, vector<128x512xbf16>, vector<112x512xf32> -> vector<112x512xf32>
    %c0_3 = arith.constant 0 : index
    %c0_4 = arith.constant 0 : index
    %4 = vector.load %arg3[%c0_3, %c0_4] : memref<1x512xf32, #tpu.memory_space<vmem>>, vector<1x512xf32>
    %5 = vector.broadcast %4 : vector<1x512xf32> to vector<112x512xf32>
    %6 = arith.addf %3, %5 : vector<112x512xf32>
    %cst_5 = arith.constant 0.000000e+00 : f32
    %7 = vector.broadcast %cst_5 : f32 to vector<112x512xf32>
    %8 = arith.maximumf %6, %7 : vector<112x512xf32>
    %9 = arith.truncf %8 : vector<112x512xf32> to vector<112x512xbf16>
    %c0_6 = arith.constant 0 : index
    %c0_7 = arith.constant 0 : index
    %10 = vector.load %arg4[%c0_6, %c0_7] : memref<512x1024xbf16, #tpu.memory_space<vmem>>, vector<512x1024xbf16>
    %cst_8 = arith.constant dense<0.000000e+00> : vector<112x1024xf32>
    %11 = tpu.matmul %9, %10, %cst_8 {dimension_numbers = #tpu.dot_dimension_numbers<[1], [0], [0], [1], [0, 0, 1, 1], [], []>} : vector<112x512xbf16>, vector<512x1024xbf16>, vector<112x1024xf32> -> vector<112x1024xf32>
    %c0_9 = arith.constant 0 : index
    %c0_10 = arith.constant 0 : index
    %12 = vector.load %arg5[%c0_9, %c0_10] : memref<1x1024xf32, #tpu.memory_space<vmem>>, vector<1x1024xf32>
    %13 = vector.broadcast %12 : vector<1x1024xf32> to vector<112x1024xf32>
    %14 = arith.addf %11, %13 : vector<112x1024xf32>
    %15 = arith.truncf %14 : vector<112x1024xf32> to vector<112x1024xbf16>
    %c0_11 = arith.constant 0 : index
    %c0_12 = arith.constant 0 : index
    %16 = vector.load %arg6[%c0_11, %c0_12] : memref<112x1024xbf16, #tpu.memory_space<vmem>>, vector<112x1024xbf16>
    tpu.vector_store %arg6[%c0_11, %c0_12], %15 {strides = array<i32>} : memref<112x1024xbf16, #tpu.memory_space<vmem>>, vector<112x1024xbf16>,
    return
  }
  func.func @transform_0(%arg0: i32) -> (i32, i32) {
    %c0_i32 = arith.constant 0 : i32
    %c0_i32_0 = arith.constant 0 : i32
    return %arg0, %c0_i32 : i32, i32
  }
  func.func @transform_1(%arg0: i32) -> (i32, i32) {
    %c0_i32 = arith.constant 0 : i32
    %c0_i32_0 = arith.constant 0 : i32
    %c0_i32_1 = arith.constant 0 : i32
    return %c0_i32, %c0_i32_0 : i32, i32
  }
  func.func @transform_2(%arg0: i32) -> (i32, i32) {
    %c0_i32 = arith.constant 0 : i32
    %c0_i32_0 = arith.constant 0 : i32
    %c0_i32_1 = arith.constant 0 : i32
    return %c0_i32, %c0_i32_0 : i32, i32
  }
  func.func @transform_3(%arg0: i32) -> (i32, i32) {
    %c0_i32 = arith.constant 0 : i32
    %c0_i32_0 = arith.constant 0 : i32
    %c0_i32_1 = arith.constant 0 : i32
    return %c0_i32, %c0_i32_0 : i32, i32
  }
  func.func @transform_4(%arg0: i32) -> (i32, i32) {
    %c0_i32 = arith.constant 0 : i32
    %c0_i32_0 = arith.constant 0 : i32
    %c0_i32_1 = arith.constant 0 : i32
    return %c0_i32, %c0_i32_0 : i32, i32
  }
  func.func @transform_5(%arg0: i32) -> (i32, i32) {
    %c0_i32 = arith.constant 0 : i32
    %c0_i32_0 = arith.constant 0 : i32
    return %arg0, %c0_i32 : i32, i32
  }
}

</mosaic_0001>

<llo_original>
// kernel: mlp_forward.1
$region0: #{mlp_forward.1}
  #allocation0 [shape = 'u32[]', space=smem, size = 0x4, offset = 0x4, fixed_abs, tag = 'smem constant byte address 0x4 - core index']
  #allocation1 [shape = 'u32[72,128]{1,0:T(1,128)}', space=vmem, size = 0x9000, scoped, tag = 'internal scratch']
  %s0 = inlined_call_operand.hbm [shape: f32[200,128], index: 0, kind: input, shape index: {}]
  %s1 = inlined_call_operand.hbm [shape: bf16[128,512], index: 1, kind: input, shape index: {}]
  %s2 = inlined_call_operand.hbm [shape: f32[1,512], index: 2, kind: input, shape index: {}]
  %s3 = inlined_call_operand.hbm [shape: bf16[512,1024], index: 3, kind: input, shape index: {}]
  %s4 = inlined_call_operand.hbm [shape: f32[1,1024], index: 4, kind: input, shape index: {}]
  %s5 = inlined_call_operand.hbm [shape: bf16[200,1024], index: 5, kind: output, shape index: {}]
  %s6 = sld [smem:[#allocation0]]
  $region73: #{mlp_forward.1} parent=0
    _
  %s8 = ssub.s32 1, %s6
  %s9 = scalar_select 0, %s8, %s6
  $region1: #{mlp_forward.1} parent=0
    #allocation2 [shape = 'u8[114688]{0}', space=vmem, size = 0x1c000, scoped, tag = 'input window, operand 0']
    #allocation3 [shape = 's32[2]{0}', space=sflag, size = 0x8, scoped, tag = 'scoped memory for mlp_forward.1']
    #allocation4 [shape = 's32[2]{0}', space=sflag, size = 0x8, scoped, tag = 'scoped memory for mlp_forward.1']
    #allocation5 [shape = 'u8[131072]{0}', space=vmem, size = 0x20000, scoped, tag = 'input window, operand 1, single buffered']
    #allocation6 [shape = 's32[1]{0}', space=sflag, size = 0x4, scoped, tag = 'scoped memory for mlp_forward.1']
    #allocation7 [shape = 'u8[2048]{0}', space=vmem, size = 0x800, scoped, tag = 'input window, operand 2, single buffered']
    #allocation8 [shape = 'u8[1048576]{0}', space=vmem, size = 0x100000, scoped, tag = 'input window, operand 3, single buffered']
    #allocation9 [shape = 's32[1]{0}', space=sflag, size = 0x4, scoped, tag = 'scoped memory for mlp_forward.1']
    #allocation10 [shape = 'u8[4096]{0}', space=vmem, size = 0x1000, scoped, tag = 'input window, operand 4, single buffered']
    #allocation11 [shape = 'u8[458752]{0}', space=vmem, size = 0x70000, scoped, tag = 'output window, operand 0']
    %10 = vsyncpa [#allocation3], 0
    %s11 = scalar_lea.sflag [#allocation3], 1
    %12 = vsyncpa %s11, 0
    %13 = vsyncpa [#allocation6], 0
    %14 = vsyncpa [#allocation9], 0
    %15 = vsyncpa [#allocation4], 0
    %s16 = scalar_lea.sflag [#allocation4], 1
    %17 = vsyncpa %s16, 0
    loop: start=0, step=1, limit=4
    $region2: #{mlp_forward.1} parent=1 // loop_pre_header
      _
    $region3: #{mlp_forward.1} parent=1 // loop_header
      %s19 = sphi 0, %s23
      %p20 = scmp.ge.s32.totalorder %s19, 4
      %s29 = sphi 0, %s31
      %s32 = sphi 0, %s29
      %s33 = sphi 0, %s32
      %s49 = sphi 0, %s33
      %s53 = sphi 0, %s53
      %s55 = sphi 0, %s53
      %s56 = sphi 0, %s55
      %s70 = sphi 0, %s56
      %s74 = sphi 0, %s74
      %s76 = sphi 0, %s74
      %s77 = sphi 0, %s76
      %s91 = sphi 0, %s77
      %s95 = sphi 0, %s95
      %s97 = sphi 0, %s95
      %s98 = sphi 0, %s97
      %s112 = sphi 0, %s98
      %s116 = sphi 0, %s116
      %s118 = sphi 0, %s116
      %s119 = sphi 0, %s118
      %s133 = sphi 0, %s119
      %s139 = sphi 0, %s141
      %s142 = sphi 0, %s139
      %s143 = sphi 0, %s142
      %s159 = sphi 0, %s143
    $region4: #{mlp_forward.1} parent=1 // loop_header_branch
      %22 = sbr.rel (%p20) target = $region8
    $region5: #{mlp_forward.1} parent=1 // loop_body
      %s24 = ssub.s32 %s19, 1
      %s25 = ssub.s32 %s19, 2
      %s26 = sadd.s32 %s19, 1
      %s27 = ssub.s32 %s19, %s26
      %p28 = scmp.eq.s32.totalorder %s27, 0
      %s30 = sadd.s32 %s29, 1
      %s31 = scalar_select %p28, %s29, %s30
      %p34 = pneg %p28
      %p35 = scmp.eq.s32.totalorder %s19, 1
      %p36 = por %p34, %p35
      %p37 = scmp.ne.s32.totalorder %s29, %s32
      %p38 = scmp.eq.s32.totalorder %s19, 0
      %p39 = por %p37, %p38
      %p40 = scmp.ne.s32.totalorder %s29, %s32
      %p41 = scmp.eq.s32.totalorder %s24, 1
      %p42 = por %p40, %p41
      %p43 = scmp.ne.s32.totalorder %s32, %s33
      %p44 = scmp.eq.s32.totalorder %s24, 0
      %p45 = por %p43, %p44
      %p46 = scmp.ne.s32.totalorder %s32, %s33
      %p47 = scmp.eq.s32.totalorder %s25, 1
      %p48 = por %p46, %p47
      %p50 = scmp.ne.s32.totalorder %s33, %s49
      %p51 = scmp.eq.s32.totalorder %s25, 0
      %p52 = por %p50, %p51
      %s54 = sadd.s32 %s53, 1
      %p57 = scmp.eq.s32.totalorder %s19, 1
      %p58 = scmp.ne.s32.totalorder %s53, %s55
      %p59 = scmp.eq.s32.totalorder %s19, 0
      %p60 = por %p58, %p59
      %p61 = scmp.ne.s32.totalorder %s53, %s55
      %p62 = scmp.eq.s32.totalorder %s24, 1
      %p63 = por %p61, %p62
      %p64 = scmp.ne.s32.totalorder %s55, %s56
      %p65 = scmp.eq.s32.totalorder %s24, 0
      %p66 = por %p64, %p65
      %p67 = scmp.ne.s32.totalorder %s55, %s56
      %p68 = scmp.eq.s32.totalorder %s25, 1
      %p69 = por %p67, %p68
      %p71 = scmp.ne.s32.totalorder %s56, %s70
      %p72 = scmp.eq.s32.totalorder %s25, 0
      %p73 = por %p71, %p72
      %s75 = sadd.s32 %s74, 1
      %p78 = scmp.eq.s32.totalorder %s19, 1
      %p79 = scmp.ne.s32.totalorder %s74, %s76
      %p80 = scmp.eq.s32.totalorder %s19, 0
      %p81 = por %p79, %p80
      %p82 = scmp.ne.s32.totalorder %s74, %s76
      %p83 = scmp.eq.s32.totalorder %s24, 1
      %p84 = por %p82, %p83
      %p85 = scmp.ne.s32.totalorder %s76, %s77
      %p86 = scmp.eq.s32.totalorder %s24, 0
      %p87 = por %p85, %p86
      %p88 = scmp.ne.s32.totalorder %s76, %s77
      %p89 = scmp.eq.s32.totalorder %s25, 1
      %p90 = por %p88, %p89
      %p92 = scmp.ne.s32.totalorder %s77, %s91
      %p93 = scmp.eq.s32.totalorder %s25, 0
      %p94 = por %p92, %p93
      %s96 = sadd.s32 %s95, 1
      %p99 = scmp.eq.s32.totalorder %s19, 1
      %p100 = scmp.ne.s32.totalorder %s95, %s97
      %p101 = scmp.eq.s32.totalorder %s19, 0
      %p102 = por %p100, %p101
      %p103 = scmp.ne.s32.totalorder %s95, %s97
      %p104 = scmp.eq.s32.totalorder %s24, 1
      %p105 = por %p103, %p104
      %p106 = scmp.ne.s32.totalorder %s97, %s98
      %p107 = scmp.eq.s32.totalorder %s24, 0
      %p108 = por %p106, %p107
      %p109 = scmp.ne.s32.totalorder %s97, %s98
      %p110 = scmp.eq.s32.totalorder %s25, 1
      %p111 = por %p109, %p110
      %p113 = scmp.ne.s32.totalorder %s98, %s112
      %p114 = scmp.eq.s32.totalorder %s25, 0
      %p115 = por %p113, %p114
      %s117 = sadd.s32 %s116, 1
      %p120 = scmp.eq.s32.totalorder %s19, 1
      %p121 = scmp.ne.s32.totalorder %s116, %s118
      %p122 = scmp.eq.s32.totalorder %s19, 0
      %p123 = por %p121, %p122
      %p124 = scmp.ne.s32.totalorder %s116, %s118
      %p125 = scmp.eq.s32.totalorder %s24, 1
      %p126 = por %p124, %p125
      %p127 = scmp.ne.s32.totalorder %s118, %s119
      %p128 = scmp.eq.s32.totalorder %s24, 0
      %p129 = por %p127, %p128
      %p130 = scmp.ne.s32.totalorder %s118, %s119
      %p131 = scmp.eq.s32.totalorder %s25, 1
      %p132 = por %p130, %p131
      %p134 = scmp.ne.s32.totalorder %s119, %s133
      %p135 = scmp.eq.s32.totalorder %s25, 0
      %p136 = por %p134, %p135
      %s137 = ssub.s32 %s19, %s26
      %p138 = scmp.eq.s32.totalorder %s137, 0
      %s140 = sadd.s32 %s139, 1
      %s141 = scalar_select %p138, %s139, %s140
      %p144 = pneg %p138
      %p145 = scmp.eq.s32.totalorder %s19, 1
      %p146 = por %p144, %p145
      %p147 = scmp.ne.s32.totalorder %s139, %s142
      %p148 = scmp.eq.s32.totalorder %s19, 0
      %p149 = por %p147, %p148
      %p150 = scmp.ne.s32.totalorder %s139, %s142
      %p151 = scmp.eq.s32.totalorder %s24, 1
      %p152 = por %p150, %p151
      %p153 = scmp.ne.s32.totalorder %s142, %s143
      %p154 = scmp.eq.s32.totalorder %s24, 0
      %p155 = por %p153, %p154
      %p156 = scmp.ne.s32.totalorder %s142, %s143
      %p157 = scmp.eq.s32.totalorder %s25, 1
      %p158 = por %p156, %p157
      %p160 = scmp.ne.s32.totalorder %s143, %s159
      %p161 = scmp.eq.s32.totalorder %s25, 0
      %p162 = por %p160, %p161
      %p163 = scmp.le.s32.totalorder 1, %s19
      %p164 = scmp.lt.s32.totalorder %s19, 3
      %p165 = pnand %p163, %p164
      %p166 = pneg %p165
      // Predicated region
      $region9: #{mlp_forward.1} parent=5 // pred_check
        _
      $region10: #{mlp_forward.1} parent=5 // pred_check_branch
        %168 = sbr.rel (%p165) target = $region12
      $region11: #{mlp_forward.1} parent=5 // pred_region
        %s169 = ssub.s32 %s19, 1
        // Predicated region
        $region13: #{mlp_forward.1} parent=11 // pred_check
          %p170 = pneg %p66
        $region14: #{mlp_forward.1} parent=11 // pred_check_branch
          %172 = sbr.rel (%p170) target = $region16
        $region15: #{mlp_forward.1} parent=11 // pred_region
          %174 = vsyncadd [#allocation6], 0
          %s175 = sshll.u32 %s1, 4
          %s176 = int_to_ptr.hbm [resolvable:$true] %s175
          %s177 = sshll.u32 [#allocation5], 4
          %s178 = int_to_ptr.vmem [resolvable:$true] %s177
          %183 = dma.hbm_to_vmem [thread:$0]  %s176, 4096, %s178, [#allocation6], 256, 256, 16
        $region16: #{mlp_forward.1} parent=11 // pred_fallthru
          _
        // Predicated region
        $region17: #{mlp_forward.1} parent=11 // pred_check
          %p184 = pneg %p87
        $region18: #{mlp_forward.1} parent=11 // pred_check_branch
          %186 = sbr.rel (%p184) target = $region20
        $region19: #{mlp_forward.1} parent=11 // pred_region
          %188 = vsyncadd [#allocation6], 0
          %s190 = sshll.u32 %s2, 4
          %s191 = int_to_ptr.hbm [resolvable:$true] %s190
          %s192 = sshll.u32 [#allocation7], 4
          %s193 = int_to_ptr.vmem [resolvable:$true] %s192
          %195 = dma.hbm_to_vmem [thread:$0]  %s191, 64, %s193, [#allocation6]
        $region20: #{mlp_forward.1} parent=11 // pred_fallthru
          _
        // Predicated region
        $region21: #{mlp_forward.1} parent=11 // pred_check
          %p196 = pneg %p108
        $region22: #{mlp_forward.1} parent=11 // pred_check_branch
          %198 = sbr.rel (%p196) target = $region24
        $region23: #{mlp_forward.1} parent=11 // pred_region
          %200 = vsyncadd [#allocation9], 0
          %s201 = sshll.u32 %s3, 4
          %s202 = int_to_ptr.hbm [resolvable:$true] %s201
          %s203 = sshll.u32 [#allocation8], 4
          %s204 = int_to_ptr.vmem [resolvable:$true] %s203
          %209 = dma.hbm_to_vmem [thread:$0]  %s202, 32768, %s204, [#allocation9], 512, 512, 32
        $region24: #{mlp_forward.1} parent=11 // pred_fallthru
          _
        // Predicated region
        $region25: #{mlp_forward.1} parent=11 // pred_check
          %p210 = pneg %p129
        $region26: #{mlp_forward.1} parent=11 // pred_check_branch
          %212 = sbr.rel (%p210) target = $region28
        $region27: #{mlp_forward.1} parent=11 // pred_region
          %214 = vsyncadd [#allocation9], 0
          %s216 = sshll.u32 %s4, 4
          %s217 = int_to_ptr.hbm [resolvable:$true] %s216
          %s218 = sshll.u32 [#allocation10], 4
          %s219 = int_to_ptr.vmem [resolvable:$true] %s218
          %221 = dma.hbm_to_vmem [thread:$0]  %s217, 128, %s219, [#allocation9]
        $region28: #{mlp_forward.1} parent=11 // pred_fallthru
          _
      $region12: #{mlp_forward.1} parent=5 // pred_fallthru
        _
      %p222 = scmp.lt.s32.totalorder %s19, 2
      // Predicated region
      $region29: #{mlp_forward.1} parent=5 // pred_check
        %p223 = pneg %p222
      $region30: #{mlp_forward.1} parent=5 // pred_check_branch
        %225 = sbr.rel (%p223) target = $region32
      $region31: #{mlp_forward.1} parent=5 // pred_region
        // Predicated region
        $region33: #{mlp_forward.1} parent=31 // pred_check
          %p226 = pneg %p39
        $region34: #{mlp_forward.1} parent=31 // pred_check_branch
          %228 = sbr.rel (%p226) target = $region36
        $region35: #{mlp_forward.1} parent=31 // pred_region
          %s229 = sand.u32 %s29, 1
          %s230 = scalar_lea.sflag [#allocation3], %s229
          %s231 = sand.u32 %s29, 1
          %s232 = smul.addr %s231, 112
          %s233 = scalar_lea.vmem [#allocation2], %s232
          %s234 = smul.u32 14, %s19
          %s235 = ssub.s32 25, %s234
          %p236 = scmp.lt.s32.totalorder %s235, 14
          %s237 = scalar_select %p236, %s235, 14
          %s238 = smul.u32 8, %s237
          %s239 = ssub.s32 112, %s238
          %s240 = sshll.u32 %s239, 4
          %241 = vsyncadd %s230, %s240
          %p242 = scmp.ne.s32.totalorder 0, %s238
          %s243 = smul.addr %s234, 8
          %s244 = scalar_lea.hbm %s0, %s243
          %s245 = smul.u32 8, %s237
          %s246 = sshll.u32 %s244, 4
          %s247 = int_to_ptr.hbm [resolvable:$true] %s246
          %s248 = sshll.u32 %s233, 4
          %s249 = int_to_ptr.vmem [resolvable:$true] %s248
          %s250 = sshll.u32 %s245, 4
          %254 = dma.hbm_to_vmem [thread:$0]  (%p242), %s247, %s250, %s249, %s230, 128, 128, 8
        $region36: #{mlp_forward.1} parent=31 // pred_fallthru
          _
      $region32: #{mlp_forward.1} parent=5 // pred_fallthru
        _
      %p255 = scmp.le.s32.totalorder 1, %s19
      %p256 = scmp.lt.s32.totalorder %s19, 3
      %p257 = pnand %p255, %p256
      %p258 = pneg %p257
      // Predicated region
      $region37: #{mlp_forward.1} parent=5 // pred_check
        _
      $region38: #{mlp_forward.1} parent=5 // pred_check_branch
        %260 = sbr.rel (%p257) target = $region40
      $region39: #{mlp_forward.1} parent=5 // pred_region
        %s261 = ssub.s32 %s19, 1
        %s262 = sand.u32 %s32, 1
        %s263 = scalar_lea.sflag [#allocation3], %s262
        %s264 = sand.u32 %s32, 1
        %s265 = smul.addr %s264, 112
        %s266 = scalar_lea.vmem [#allocation2], %s265
        // Predicated region
        $region41: #{mlp_forward.1} parent=39 // pred_check
          %p267 = pneg %p45
        $region42: #{mlp_forward.1} parent=39 // pred_check_branch
          %269 = sbr.rel (%p267) target = $region44
        $region43: #{mlp_forward.1} parent=39 // pred_region
          %271 = dma.done %s263, 1792
        $region44: #{mlp_forward.1} parent=39 // pred_fallthru
          _
        // Predicated region
        $region45: #{mlp_forward.1} parent=39 // pred_check
          %p272 = pneg %p66
        $region46: #{mlp_forward.1} parent=39 // pred_check_branch
          %274 = sbr.rel (%p272) target = $region48
        $region47: #{mlp_forward.1} parent=39 // pred_region
          %276 = dma.done [#allocation6], 4096
        $region48: #{mlp_forward.1} parent=39 // pred_fallthru
          _
        // Predicated region
        $region49: #{mlp_forward.1} parent=39 // pred_check
          %p277 = pneg %p87
        $region50: #{mlp_forward.1} parent=39 // pred_check_branch
          %279 = sbr.rel (%p277) target = $region52
        $region51: #{mlp_forward.1} parent=39 // pred_region
          %281 = dma.done [#allocation6], 64
        $region52: #{mlp_forward.1} parent=39 // pred_fallthru
          _
        // Predicated region
        $region53: #{mlp_forward.1} parent=39 // pred_check
          %p282 = pneg %p108
        $region54: #{mlp_forward.1} parent=39 // pred_check_branch
          %284 = sbr.rel (%p282) target = $region56
        $region55: #{mlp_forward.1} parent=39 // pred_region
          %286 = dma.done [#allocation9], 32768
        $region56: #{mlp_forward.1} parent=39 // pred_fallthru
          _
        // Predicated region
        $region57: #{mlp_forward.1} parent=39 // pred_check
          %p287 = pneg %p129
        $region58: #{mlp_forward.1} parent=39 // pred_check_branch
          %289 = sbr.rel (%p287) target = $region60
        $region59: #{mlp_forward.1} parent=39 // pred_region
          %291 = dma.done [#allocation9], 128
        $region60: #{mlp_forward.1} parent=39 // pred_fallthru
          _
        %s292 = sand.u32 %s32, 1
        %s293 = scalar_lea.sflag [#allocation3], %s292
        %s294 = sand.u32 %s32, 1
        %s295 = smul.addr %s294, 112
        %s296 = scalar_lea.vmem [#allocation2], %s295
        %p297 = pneg %p45
        %p298 = pneg %p42
        %p299 = pneg %p66
        %p300 = pneg %p63
        %p301 = pneg %p87
        %p302 = pneg %p84
        %p303 = pneg %p108
        %p304 = pneg %p105
        %p305 = pneg %p129
        %p306 = pneg %p126
        %p307 = pneg %p155
        %p308 = pneg %p152
        %s309 = sand.u32 %s142, 1
        %s310 = scalar_lea.sflag [#allocation4], %s309
        %s311 = sand.u32 %s142, 1
        %s312 = smul.addr %s311, 448
        %s313 = scalar_lea.vmem [#allocation11], %s312
        %s314 = smul.u32 14, %s24
        %s315 = ssub.s32 25, %s314
        %p316 = scmp.lt.s32.totalorder %s315, 14
        %s317 = scalar_select %p316, %s315, 14
        %s318 = smul.u32 8, %s317
        %s319 = smul.u32 14, %s24
        %s320 = ssub.s32 25, %s319
        %p321 = scmp.lt.s32.totalorder %s320, 14
        %s322 = scalar_select %p321, %s320, 14
        %s323 = smul.u32 4, %s322
        %s324 = smul.u32 %s323, 8
        %v325 = vld [vmem:[%s266] sm:$0xff]
        %v326 = vld [vmem:[%s266 + $0x8] sm:$0xff]
        %v327 = vld [vmem:[%s266 + $0x10] sm:$0xff]
        %v328 = vld [vmem:[%s266 + $0x18] sm:$0xff]
        %v329 = vld [vmem:[%s266 + $0x20] sm:$0xff]
        %v330 = vld [vmem:[%s266 + $0x28] sm:$0xff]
        %v331 = vld [vmem:[%s266 + $0x30] sm:$0xff]
        %v332 = vld [vmem:[%s266 + $0x38] sm:$0xff]
        %v333 = vld [vmem:[%s266 + $0x40] sm:$0xff]
        %v334 = vld [vmem:[%s266 + $0x48] sm:$0xff]
        %v335 = vld [vmem:[%s266 + $0x50] sm:$0xff]
        %v336 = vld [vmem:[%s266 + $0x58] sm:$0xff]
        %v337 = vld [vmem:[%s266 + $0x60] sm:$0xff]
        %v338 = vld [vmem:[%s266 + $0x68] sm:$0xff]
        %v339 = vpack.c.bf16 %v326, %v325
        %v340 = vpack.c.bf16 %v328, %v327
        %v341 = vpack.c.bf16 %v330, %v329
        %v342 = vpack.c.bf16 %v332, %v331
        %v343 = vpack.c.bf16 %v334, %v333
        %v344 = vpack.c.bf16 %v336, %v335
        %v345 = vpack.c.bf16 %v338, %v337
        %v346 = vld [vmem:[#allocation5] sm:$0xff]
        %v347 = vld [vmem:[#allocation5 + $0x8] sm:$0xff]
        %v348 = vld [vmem:[#allocation5 + $0x10] sm:$0xff]
        %v349 = vld [vmem:[#allocation5 + $0x18] sm:$0xff]
        %v350 = vld [vmem:[#allocation5 + $0x20] sm:$0xff]
        %v351 = vld [vmem:[#allocation5 + $0x28] sm:$0xff]
        %v352 = vld [vmem:[#allocation5 + $0x30] sm:$0xff]
        %v353 = vld [vmem:[#allocation5 + $0x38] sm:$0xff]
        %v354 = vld [vmem:[#allocation5 + $0x40] sm:$0xff]
        %v355 = vld [vmem:[#allocation5 + $0x48] sm:$0xff]
        %v356 = vld [vmem:[#allocation5 + $0x50] sm:$0xff]
        %v357 = vld [vmem:[#allocation5 + $0x58] sm:$0xff]
        %v358 = vld [vmem:[#allocation5 + $0x60] sm:$0xff]
        %v359 = vld [vmem:[#allocation5 + $0x68] sm:$0xff]
        %v360 = vld [vmem:[#allocation5 + $0x70] sm:$0xff]
        %v361 = vld [vmem:[#allocation5 + $0x78] sm:$0xff]
        %v362 = vld [vmem:[#allocation5 + $0x80] sm:$0xff]
        %v363 = vld [vmem:[#allocation5 + $0x88] sm:$0xff]
        %v364 = vld [vmem:[#allocation5 + $0x90] sm:$0xff]
        %v365 = vld [vmem:[#allocation5 + $0x98] sm:$0xff]
        %v366 = vld [vmem:[#allocation5 + $0xa0] sm:$0xff]
        %v367 = vld [vmem:[#allocation5 + $0xa8] sm:$0xff]
        %v368 = vld [vmem:[#allocation5 + $0xb0] sm:$0xff]
        %v369 = vld [vmem:[#allocation5 + $0xb8] sm:$0xff]
        %v370 = vld [vmem:[#allocation5 + $0xc0] sm:$0xff]
        %v371 = vld [vmem:[#allocation5 + $0xc8] sm:$0xff]
        %v372 = vld [vmem:[#allocation5 + $0xd0] sm:$0xff]
        %v373 = vld [vmem:[#allocation5 + $0xd8] sm:$0xff]
        %v374 = vld [vmem:[#allocation5 + $0xe0] sm:$0xff]
        %v375 = vld [vmem:[#allocation5 + $0xe8] sm:$0xff]
        %v376 = vld [vmem:[#allocation5 + $0xf0] sm:$0xff]
        %v377 = vld [vmem:[#allocation5 + $0xf8] sm:$0xff]
        %v378 = vld [vmem:[#allocation7] sm:$0xf]
        %v380 = vperm.slane %v378, 0
        %v381 = vperm.slane %v378, 1
        %v382 = vperm.slane %v378, 2
        %v383 = vperm.slane %v378, 3
        %v420 = vunpack.c.l.b16 %v346
        %v421 = vunpack.c.h.b16 %v346
        %v422 = vunpack.c.l.b16 %v347
        %v423 = vunpack.c.h.b16 %v347
        %v424 = vunpack.c.l.b16 %v348
        %v425 = vunpack.c.h.b16 %v348
        %v426 = vunpack.c.l.b16 %v349
        %v427 = vunpack.c.h.b16 %v349
        %v428 = vunpack.c.l.b16 %v350
        %v429 = vunpack.c.h.b16 %v350
        %v430 = vunpack.c.l.b16 %v351
        %v431 = vunpack.c.h.b16 %v351
        %v432 = vunpack.c.l.b16 %v352
        %v433 = vunpack.c.h.b16 %v352
        %v434 = vunpack.c.l.b16 %v353
        %v435 = vunpack.c.h.b16 %v353
        %v436 = vunpack.c.l.b16 %v354
        %v437 = vunpack.c.h.b16 %v354
        %v438 = vunpack.c.l.b16 %v355
        %v439 = vunpack.c.h.b16 %v355
        %v440 = vunpack.c.l.b16 %v356
        %v441 = vunpack.c.h.b16 %v356
        %v442 = vunpack.c.l.b16 %v357
        %v443 = vunpack.c.h.b16 %v357
        %v444 = vunpack.c.l.b16 %v358
        %v445 = vunpack.c.h.b16 %v358
        %v446 = vunpack.c.l.b16 %v359
        %v447 = vunpack.c.h.b16 %v359
        %v448 = vunpack.c.l.b16 %v360
        %v449 = vunpack.c.h.b16 %v360
        %v450 = vunpack.c.l.b16 %v361
        %v451 = vunpack.c.h.b16 %v361
        %v452 = vunpack.c.l.b16 %v362
        %v453 = vunpack.c.h.b16 %v362
        %v454 = vunpack.c.l.b16 %v363
        %v455 = vunpack.c.h.b16 %v363
        %v456 = vunpack.c.l.b16 %v364
        %v457 = vunpack.c.h.b16 %v364
        %v458 = vunpack.c.l.b16 %v365
        %v459 = vunpack.c.h.b16 %v365
        %v460 = vunpack.c.l.b16 %v366
        %v461 = vunpack.c.h.b16 %v366
        %v462 = vunpack.c.l.b16 %v367
        %v463 = vunpack.c.h.b16 %v367
        %v464 = vunpack.c.l.b16 %v368
        %v465 = vunpack.c.h.b16 %v368
        %v466 = vunpack.c.l.b16 %v369
        %v467 = vunpack.c.h.b16 %v369
        %v468 = vunpack.c.l.b16 %v370
        %v469 = vunpack.c.h.b16 %v370
        %v470 = vunpack.c.l.b16 %v371
        %v471 = vunpack.c.h.b16 %v371
        %v472 = vunpack.c.l.b16 %v372
        %v473 = vunpack.c.h.b16 %v372
        %v474 = vunpack.c.l.b16 %v373
        %v475 = vunpack.c.h.b16 %v373
        %v476 = vunpack.c.l.b16 %v374
        %v477 = vunpack.c.h.b16 %v374
        %v478 = vunpack.c.l.b16 %v375
        %v479 = vunpack.c.h.b16 %v375
        %v480 = vunpack.c.l.b16 %v376
        %v481 = vunpack.c.h.b16 %v376
        %v482 = vunpack.c.l.b16 %v377
        %v483 = vunpack.c.h.b16 %v377
        %v484 = vpack.c.b16 %v424, %v420
        %v485 = vpack.c.b16 %v425, %v421
        %v486 = vpack.c.b16 %v426, %v422
        %v487 = vpack.c.b16 %v427, %v423
        %v488 = vpack.c.b16 %v432, %v428
        %v489 = vpack.c.b16 %v433, %v429
        %v490 = vpack.c.b16 %v434, %v430
        %v491 = vpack.c.b16 %v435, %v431
        %v492 = vpack.c.b16 %v440, %v436
        %v493 = vpack.c.b16 %v441, %v437
        %v494 = vpack.c.b16 %v442, %v438
        %v495 = vpack.c.b16 %v443, %v439
        %v496 = vpack.c.b16 %v448, %v444
        %v497 = vpack.c.b16 %v449, %v445
        %v498 = vpack.c.b16 %v450, %v446
        %v499 = vpack.c.b16 %v451, %v447
        %v500 = vpack.c.b16 %v456, %v452
        %v501 = vpack.c.b16 %v457, %v453
        %v502 = vpack.c.b16 %v458, %v454
        %v503 = vpack.c.b16 %v459, %v455
        %v504 = vpack.c.b16 %v464, %v460
        %v505 = vpack.c.b16 %v465, %v461
        %v506 = vpack.c.b16 %v466, %v462
        %v507 = vpack.c.b16 %v467, %v463
        %v508 = vpack.c.b16 %v472, %v468
        %v509 = vpack.c.b16 %v473, %v469
        %v510 = vpack.c.b16 %v474, %v470
        %v511 = vpack.c.b16 %v475, %v471
        %v512 = vpack.c.b16 %v480, %v476
        %v513 = vpack.c.b16 %v481, %v477
        %v514 = vpack.c.b16 %v482, %v478
        %v515 = vpack.c.b16 %v483, %v479
        %548 = vmatpush.bf16.msra.mxu0 %v512
        %549 = vmatpush.bf16.msra.mxu0 %v508
        %550 = vmatpush.bf16.msra.mxu0 %v504
        %551 = vmatpush.bf16.msra.mxu0 %v500
        %552 = vmatpush.bf16.msra.mxu0 %v496
        %553 = vmatpush.bf16.msra.mxu0 %v492
        %554 = vmatpush.bf16.msra.mxu0 %v488
        %555 = vmatpush.bf16.msra.mxu0 %v484
        %556 = vmatmul.bf16.gmra.mxu0 %v339
        %v557 = vpop.f32.mrf.mxu0
        %v558 = vadd.f32 %v380, %v557
        %v559 = vpop.f32.mrf.mxu0
        %v560 = vadd.f32 %v380, %v559
        %561 = vmatmul.bf16.gmra.mxu0 %v340
        %v562 = vpop.f32.mrf.mxu0
        %v563 = vadd.f32 %v380, %v562
        %v564 = vpop.f32.mrf.mxu0
        %v565 = vadd.f32 %v380, %v564
        %566 = vmatmul.bf16.gmra.mxu0 %v341
        %v567 = vpop.f32.mrf.mxu0
        %v568 = vadd.f32 %v380, %v567
        %v569 = vpop.f32.mrf.mxu0
        %v570 = vadd.f32 %v380, %v569
        %571 = vmatmul.bf16.gmra.mxu0 %v342
        %v572 = vpop.f32.mrf.mxu0
        %v573 = vadd.f32 %v380, %v572
        %v574 = vpop.f32.mrf.mxu0
        %v575 = vadd.f32 %v380, %v574
        %576 = vmatmul.bf16.gmra.mxu0 %v343
        %v577 = vpop.f32.mrf.mxu0
        %v578 = vadd.f32 %v380, %v577
        %v579 = vpop.f32.mrf.mxu0
        %v580 = vadd.f32 %v380, %v579
        %581 = vmatmul.bf16.gmra.mxu0 %v344
        %v582 = vpop.f32.mrf.mxu0
        %v583 = vadd.f32 %v380, %v582
        %v584 = vpop.f32.mrf.mxu0
        %v585 = vadd.f32 %v380, %v584
        %586 = vmatmul.bf16.gmra.mxu0 %v345
        %v587 = vpop.f32.mrf.mxu0
        %v588 = vadd.f32 %v380, %v587
        %v589 = vpop.f32.mrf.mxu0
        %v590 = vadd.f32 %v380, %v589
        %591 = vdwg.mxu0
        %592 = vmatpush.bf16.msra.mxu0 %v513
        %593 = vmatpush.bf16.msra.mxu0 %v509
        %594 = vmatpush.bf16.msra.mxu0 %v505
        %595 = vmatpush.bf16.msra.mxu0 %v501
        %596 = vmatpush.bf16.msra.mxu0 %v497
        %597 = vmatpush.bf16.msra.mxu0 %v493
        %598 = vmatpush.bf16.msra.mxu0 %v489
        %599 = vmatpush.bf16.msra.mxu0 %v485
        %600 = vmatmul.bf16.gmra.mxu0 %v339
        %v601 = vpop.f32.mrf.mxu0
        %v602 = vadd.f32 %v381, %v601
        %v603 = vpop.f32.mrf.mxu0
        %v604 = vadd.f32 %v381, %v603
        %605 = vmatmul.bf16.gmra.mxu0 %v340
        %v606 = vpop.f32.mrf.mxu0
        %v607 = vadd.f32 %v381, %v606
        %v608 = vpop.f32.mrf.mxu0
        %v609 = vadd.f32 %v381, %v608
        %610 = vmatmul.bf16.gmra.mxu0 %v341
        %v611 = vpop.f32.mrf.mxu0
        %v612 = vadd.f32 %v381, %v611
        %v613 = vpop.f32.mrf.mxu0
        %v614 = vadd.f32 %v381, %v613
        %615 = vmatmul.bf16.gmra.mxu0 %v342
        %v616 = vpop.f32.mrf.mxu0
        %v617 = vadd.f32 %v381, %v616
        %v618 = vpop.f32.mrf.mxu0
        %v619 = vadd.f32 %v381, %v618
        %620 = vmatmul.bf16.gmra.mxu0 %v343
        %v621 = vpop.f32.mrf.mxu0
        %v622 = vadd.f32 %v381, %v621
        %v623 = vpop.f32.mrf.mxu0
        %v624 = vadd.f32 %v381, %v623
        %625 = vmatmul.bf16.gmra.mxu0 %v344
        %v626 = vpop.f32.mrf.mxu0
        %v627 = vadd.f32 %v381, %v626
        %v628 = vpop.f32.mrf.mxu0
        %v629 = vadd.f32 %v381, %v628
        %630 = vmatmul.bf16.gmra.mxu0 %v345
        %v631 = vpop.f32.mrf.mxu0
        %v632 = vadd.f32 %v381, %v631
        %v633 = vpop.f32.mrf.mxu0
        %v634 = vadd.f32 %v381, %v633
        %635 = vdwg.mxu0
        %636 = vmatpush.bf16.msra.mxu0 %v514
        %637 = vmatpush.bf16.msra.mxu0 %v510
        %638 = vmatpush.bf16.msra.mxu0 %v506
        %639 = vmatpush.bf16.msra.mxu0 %v502
        %640 = vmatpush.bf16.msra.mxu0 %v498
        %641 = vmatpush.bf16.msra.mxu0 %v494
        %642 = vmatpush.bf16.msra.mxu0 %v490
        %643 = vmatpush.bf16.msra.mxu0 %v486
        %644 = vmatmul.bf16.gmra.mxu0 %v339
        %v645 = vpop.f32.mrf.mxu0
        %v646 = vadd.f32 %v382, %v645
        %v647 = vpop.f32.mrf.mxu0
        %v648 = vadd.f32 %v382, %v647
        %649 = vmatmul.bf16.gmra.mxu0 %v340
        %v650 = vpop.f32.mrf.mxu0
        %v651 = vadd.f32 %v382, %v650
        %v652 = vpop.f32.mrf.mxu0
        %v653 = vadd.f32 %v382, %v652
        %654 = vmatmul.bf16.gmra.mxu0 %v341
        %v655 = vpop.f32.mrf.mxu0
        %v656 = vadd.f32 %v382, %v655
        %v657 = vpop.f32.mrf.mxu0
        %v658 = vadd.f32 %v382, %v657
        %659 = vmatmul.bf16.gmra.mxu0 %v342
        %v660 = vpop.f32.mrf.mxu0
        %v661 = vadd.f32 %v382, %v660
        %v662 = vpop.f32.mrf.mxu0
        %v663 = vadd.f32 %v382, %v662
        %664 = vmatmul.bf16.gmra.mxu0 %v343
        %v665 = vpop.f32.mrf.mxu0
        %v666 = vadd.f32 %v382, %v665
        %v667 = vpop.f32.mrf.mxu0
        %v668 = vadd.f32 %v382, %v667
        %669 = vmatmul.bf16.gmra.mxu0 %v344
        %v670 = vpop.f32.mrf.mxu0
        %v671 = vadd.f32 %v382, %v670
        %v672 = vpop.f32.mrf.mxu0
        %v673 = vadd.f32 %v382, %v672
        %674 = vmatmul.bf16.gmra.mxu0 %v345
        %v675 = vpop.f32.mrf.mxu0
        %v676 = vadd.f32 %v382, %v675
        %v677 = vpop.f32.mrf.mxu0
        %v678 = vadd.f32 %v382, %v677
        %679 = vdwg.mxu0
        %680 = vmatpush.bf16.msra.mxu0 %v515
        %681 = vmatpush.bf16.msra.mxu0 %v511
        %682 = vmatpush.bf16.msra.mxu0 %v507
        %683 = vmatpush.bf16.msra.mxu0 %v503
        %684 = vmatpush.bf16.msra.mxu0 %v499
        %685 = vmatpush.bf16.msra.mxu0 %v495
        %686 = vmatpush.bf16.msra.mxu0 %v491
        %687 = vmatpush.bf16.msra.mxu0 %v487
        %688 = vmatmul.bf16.gmra.mxu0 %v339
        %v689 = vpop.f32.mrf.mxu0
        %v690 = vadd.f32 %v383, %v689
        %v691 = vpop.f32.mrf.mxu0
        %v692 = vadd.f32 %v383, %v691
        %693 = vmatmul.bf16.gmra.mxu0 %v340
        %v694 = vpop.f32.mrf.mxu0
        %v695 = vadd.f32 %v383, %v694
        %v696 = vpop.f32.mrf.mxu0
        %v697 = vadd.f32 %v383, %v696
        %698 = vmatmul.bf16.gmra.mxu0 %v341
        %v699 = vpop.f32.mrf.mxu0
        %v700 = vadd.f32 %v383, %v699
        %v701 = vpop.f32.mrf.mxu0
        %v702 = vadd.f32 %v383, %v701
        %703 = vmatmul.bf16.gmra.mxu0 %v342
        %v704 = vpop.f32.mrf.mxu0
        %v705 = vadd.f32 %v383, %v704
        %v706 = vpop.f32.mrf.mxu0
        %v707 = vadd.f32 %v383, %v706
        %708 = vmatmul.bf16.gmra.mxu0 %v343
        %v709 = vpop.f32.mrf.mxu0
        %v710 = vadd.f32 %v383, %v709
        %v711 = vpop.f32.mrf.mxu0
        %v712 = vadd.f32 %v383, %v711
        %713 = vmatmul.bf16.gmra.mxu0 %v344
        %v714 = vpop.f32.mrf.mxu0
        %v715 = vadd.f32 %v383, %v714
        %v716 = vpop.f32.mrf.mxu0
        %v717 = vadd.f32 %v383, %v716
        %718 = vmatmul.bf16.gmra.mxu0 %v345
        %v719 = vpop.f32.mrf.mxu0
        %v720 = vadd.f32 %v383, %v719
        %v721 = vpop.f32.mrf.mxu0
        %v722 = vadd.f32 %v383, %v721
        %723 = vdwg.mxu0
        %v724 = vmax.f32 %v558, 0.0
        %v725 = vmax.f32 %v602, 0.0
        %v726 = vmax.f32 %v646, 0.0
        %v727 = vmax.f32 %v690, 0.0
        %v728 = vmax.f32 %v560, 0.0
        %v729 = vmax.f32 %v604, 0.0
        %v730 = vmax.f32 %v648, 0.0
        %v731 = vmax.f32 %v692, 0.0
        %v732 = vmax.f32 %v563, 0.0
        %v733 = vmax.f32 %v607, 0.0
        %v734 = vmax.f32 %v651, 0.0
        %v735 = vmax.f32 %v695, 0.0
        %v736 = vmax.f32 %v565, 0.0
        %v737 = vmax.f32 %v609, 0.0
        %v738 = vmax.f32 %v653, 0.0
        %v739 = vmax.f32 %v697, 0.0
        %v740 = vmax.f32 %v568, 0.0
        %v741 = vmax.f32 %v612, 0.0
        %v742 = vmax.f32 %v656, 0.0
        %v743 = vmax.f32 %v700, 0.0
        %v744 = vmax.f32 %v570, 0.0
        %v745 = vmax.f32 %v614, 0.0
        %v746 = vmax.f32 %v658, 0.0
        %v747 = vmax.f32 %v702, 0.0
        %v748 = vmax.f32 %v573, 0.0
        %v749 = vmax.f32 %v617, 0.0
        %v750 = vmax.f32 %v661, 0.0
        %v751 = vmax.f32 %v705, 0.0
        %v752 = vmax.f32 %v575, 0.0
        %v753 = vmax.f32 %v619, 0.0
        %v754 = vmax.f32 %v663, 0.0
        %v755 = vmax.f32 %v707, 0.0
        %v756 = vmax.f32 %v578, 0.0
        %v757 = vmax.f32 %v622, 0.0
        %v758 = vmax.f32 %v666, 0.0
        %v759 = vmax.f32 %v710, 0.0
        %v760 = vmax.f32 %v580, 0.0
        %v761 = vmax.f32 %v624, 0.0
        %v762 = vmax.f32 %v668, 0.0
        %v763 = vmax.f32 %v712, 0.0
        %v764 = vmax.f32 %v583, 0.0
        %v765 = vmax.f32 %v627, 0.0
        %v766 = vmax.f32 %v671, 0.0
        %v767 = vmax.f32 %v715, 0.0
        %v768 = vmax.f32 %v585, 0.0
        %v769 = vmax.f32 %v629, 0.0
        %v770 = vmax.f32 %v673, 0.0
        %v771 = vmax.f32 %v717, 0.0
        %v772 = vmax.f32 %v588, 0.0
        %v773 = vmax.f32 %v632, 0.0
        %v774 = vmax.f32 %v676, 0.0
        %v775 = vmax.f32 %v720, 0.0
        %v776 = vmax.f32 %v590, 0.0
        %v777 = vmax.f32 %v634, 0.0
        %v778 = vmax.f32 %v678, 0.0
        %v779 = vmax.f32 %v722, 0.0
        %v780 = vpack.c.bf16 %v728, %v724
        %v781 = vpack.c.bf16 %v729, %v725
        %v782 = vpack.c.bf16 %v730, %v726
        %v783 = vpack.c.bf16 %v731, %v727
        %v784 = vpack.c.bf16 %v736, %v732
        %v785 = vpack.c.bf16 %v737, %v733
        %v786 = vpack.c.bf16 %v738, %v734
        %v787 = vpack.c.bf16 %v739, %v735
        %v788 = vpack.c.bf16 %v744, %v740
        %v789 = vpack.c.bf16 %v745, %v741
        %v790 = vpack.c.bf16 %v746, %v742
        %v791 = vpack.c.bf16 %v747, %v743
        %v792 = vpack.c.bf16 %v752, %v748
        %v793 = vpack.c.bf16 %v753, %v749
        %v794 = vpack.c.bf16 %v754, %v750
        %v795 = vpack.c.bf16 %v755, %v751
        %v796 = vpack.c.bf16 %v760, %v756
        %v797 = vpack.c.bf16 %v761, %v757
        %v798 = vpack.c.bf16 %v762, %v758
        %v799 = vpack.c.bf16 %v763, %v759
        %v800 = vpack.c.bf16 %v768, %v764
        %v801 = vpack.c.bf16 %v769, %v765
        %v802 = vpack.c.bf16 %v770, %v766
        %v803 = vpack.c.bf16 %v771, %v767
        %v804 = vpack.c.bf16 %v776, %v772
        %v805 = vpack.c.bf16 %v777, %v773
        %v806 = vpack.c.bf16 %v778, %v774
        %v807 = vpack.c.bf16 %v779, %v775
        %v808 = vld [vmem:[#allocation8] sm:$0xff]
        %v809 = vld [vmem:[#allocation8 + $0x8] sm:$0xff]
        %v810 = vld [vmem:[#allocation8 + $0x10] sm:$0xff]
        %v811 = vld [vmem:[#allocation8 + $0x18] sm:$0xff]
        %v812 = vld [vmem:[#allocation8 + $0x20] sm:$0xff]
        %v813 = vld [vmem:[#allocation8 + $0x28] sm:$0xff]
        %v814 = vld [vmem:[#allocation8 + $0x30] sm:$0xff]
        %v815 = vld [vmem:[#allocation8 + $0x38] sm:$0xff]
        %v816 = vld [vmem:[#allocation8 + $0x40] sm:$0xff]
        %v817 = vld [vmem:[#allocation8 + $0x48] sm:$0xff]
        %v818 = vld [vmem:[#allocation8 + $0x50] sm:$0xff]
        %v819 = vld [vmem:[#allocation8 + $0x58] sm:$0xff]
        %v820 = vld [vmem:[#allocation8 + $0x60] sm:$0xff]
        %v821 = vld [vmem:[#allocation8 + $0x68] sm:$0xff]
        %v822 = vld [vmem:[#allocation8 + $0x70] sm:$0xff]
        %v823 = vld [vmem:[#allocation8 + $0x78] sm:$0xff]
        %v824 = vld [vmem:[#allocation8 + $0x80] sm:$0xff]
        %v825 = vld [vmem:[#allocation8 + $0x88] sm:$0xff]
        %v826 = vld [vmem:[#allocation8 + $0x90] sm:$0xff]
        %v827 = vld [vmem:[#allocation8 + $0x98] sm:$0xff]
        %v828 = vld [vmem:[#allocation8 + $0xa0] sm:$0xff]
        %v829 = vld [vmem:[#allocation8 + $0xa8] sm:$0xff]
        %v830 = vld [vmem:[#allocation8 + $0xb0] sm:$0xff]
        %v831 = vld [vmem:[#allocation8 + $0xb8] sm:$0xff]
        %v832 = vld [vmem:[#allocation8 + $0xc0] sm:$0xff]
        %v833 = vld [vmem:[#allocation8 + $0xc8] sm:$0xff]
        %v834 = vld [vmem:[#allocation8 + $0xd0] sm:$0xff]
        %v835 = vld [vmem:[#allocation8 + $0xd8] sm:$0xff]
        %v836 = vld [vmem:[#allocation8 + $0xe0] sm:$0xff]
        %v837 = vld [vmem:[#allocation8 + $0xe8] sm:$0xff]
        %v838 = vld [vmem:[#allocation8 + $0xf0] sm:$0xff]
        %v839 = vld [vmem:[#allocation8 + $0xf8] sm:$0xff]
        %v840 = vld [vmem:[#allocation8 + $0x100] sm:$0xff]
        %v841 = vld [vmem:[#allocation8 + $0x108] sm:$0xff]
        %v842 = vld [vmem:[#allocation8 + $0x110] sm:$0xff]
        %v843 = vld [vmem:[#allocation8 + $0x118] sm:$0xff]
        %v844 = vld [vmem:[#allocation8 + $0x120] sm:$0xff]
        %v845 = vld [vmem:[#allocation8 + $0x128] sm:$0xff]
        %v846 = vld [vmem:[#allocation8 + $0x130] sm:$0xff]
        %v847 = vld [vmem:[#allocation8 + $0x138] sm:$0xff]
        %v848 = vld [vmem:[#allocation8 + $0x140] sm:$0xff]
        %v849 = vld [vmem:[#allocation8 + $0x148] sm:$0xff]
        %v850 = vld [vmem:[#allocation8 + $0x150] sm:$0xff]
        %v851 = vld [vmem:[#allocation8 + $0x158] sm:$0xff]
        %v852 = vld [vmem:[#allocation8 + $0x160] sm:$0xff]
        %v853 = vld [vmem:[#allocation8 + $0x168] sm:$0xff]
        %v854 = vld [vmem:[#allocation8 + $0x170] sm:$0xff]
        %v855 = vld [vmem:[#allocation8 + $0x178] sm:$0xff]
        %v856 = vld [vmem:[#allocation8 + $0x180] sm:$0xff]
        %v857 = vld [vmem:[#allocation8 + $0x188] sm:$0xff]
        %v858 = vld [vmem:[#allocation8 + $0x190] sm:$0xff]
        %v859 = vld [vmem:[#allocation8 + $0x198] sm:$0xff]
        %v860 = vld [vmem:[#allocation8 + $0x1a0] sm:$0xff]
        %v861 = vld [vmem:[#allocation8 + $0x1a8] sm:$0xff]
        %v862 = vld [vmem:[#allocation8 + $0x1b0] sm:$0xff]
        %v863 = vld [vmem:[#allocation8 + $0x1b8] sm:$0xff]
        %v864 = vld [vmem:[#allocation8 + $0x1c0] sm:$0xff]
        %v865 = vld [vmem:[#allocation8 + $0x1c8] sm:$0xff]
        %v866 = vld [vmem:[#allocation8 + $0x1d0] sm:$0xff]
        %v867 = vld [vmem:[#allocation8 + $0x1d8] sm:$0xff]
        %v868 = vld [vmem:[#allocation8 + $0x1e0] sm:$0xff]
        %v869 = vld [vmem:[#allocation8 + $0x1e8] sm:$0xff]
        %v870 = vld [vmem:[#allocation8 + $0x1f0] sm:$0xff]
        %v871 = vld [vmem:[#allocation8 + $0x1f8] sm:$0xff]
        %v872 = vld [vmem:[#allocation8 + $0x200] sm:$0xff]
        %v873 = vld [vmem:[#allocation8 + $0x208] sm:$0xff]
        %v874 = vld [vmem:[#allocation8 + $0x210] sm:$0xff]
        %v875 = vld [vmem:[#allocation8 + $0x218] sm:$0xff]
        %v876 = vld [vmem:[#allocation8 + $0x220] sm:$0xff]
        %v877 = vld [vmem:[#allocation8 + $0x228] sm:$0xff]
        %v878 = vld [vmem:[#allocation8 + $0x230] sm:$0xff]
        %v879 = vld [vmem:[#allocation8 + $0x238] sm:$0xff]
        %v880 = vld [vmem:[#allocation8 + $0x240] sm:$0xff]
        %v881 = vld [vmem:[#allocation8 + $0x248] sm:$0xff]
        %v882 = vld [vmem:[#allocation8 + $0x250] sm:$0xff]
        %v883 = vld [vmem:[#allocation8 + $0x258] sm:$0xff]
        %v884 = vld [vmem:[#allocation8 + $0x260] sm:$0xff]
        %v885 = vld [vmem:[#allocation8 + $0x268] sm:$0xff]
        %v886 = vld [vmem:[#allocation8 + $0x270] sm:$0xff]
        %v887 = vld [vmem:[#allocation8 + $0x278] sm:$0xff]
        %v888 = vld [vmem:[#allocation8 + $0x280] sm:$0xff]
        %v889 = vld [vmem:[#allocation8 + $0x288] sm:$0xff]
        %v890 = vld [vmem:[#allocation8 + $0x290] sm:$0xff]
        %v891 = vld [vmem:[#allocation8 + $0x298] sm:$0xff]
        %v892 = vld [vmem:[#allocation8 + $0x2a0] sm:$0xff]
        %v893 = vld [vmem:[#allocation8 + $0x2a8] sm:$0xff]
        %v894 = vld [vmem:[#allocation8 + $0x2b0] sm:$0xff]
        %v895 = vld [vmem:[#allocation8 + $0x2b8] sm:$0xff]
        %v896 = vld [vmem:[#allocation8 + $0x2c0] sm:$0xff]
        %v897 = vld [vmem:[#allocation8 + $0x2c8] sm:$0xff]
        %v898 = vld [vmem:[#allocation8 + $0x2d0] sm:$0xff]
        %v899 = vld [vmem:[#allocation8 + $0x2d8] sm:$0xff]
        %v900 = vld [vmem:[#allocation8 + $0x2e0] sm:$0xff]
        %v901 = vld [vmem:[#allocation8 + $0x2e8] sm:$0xff]
        %v902 = vld [vmem:[#allocation8 + $0x2f0] sm:$0xff]
        %v903 = vld [vmem:[#allocation8 + $0x2f8] sm:$0xff]
        %v904 = vld [vmem:[#allocation8 + $0x300] sm:$0xff]
        %v905 = vld [vmem:[#allocation8 + $0x308] sm:$0xff]
        %v906 = vld [vmem:[#allocation8 + $0x310] sm:$0xff]
        %v907 = vld [vmem:[#allocation8 + $0x318] sm:$0xff]
        %v908 = vld [vmem:[#allocation8 + $0x320] sm:$0xff]
        %v909 = vld [vmem:[#allocation8 + $0x328] sm:$0xff]
        %v910 = vld [vmem:[#allocation8 + $0x330] sm:$0xff]
        %v911 = vld [vmem:[#allocation8 + $0x338] sm:$0xff]
        %v912 = vld [vmem:[#allocation8 + $0x340] sm:$0xff]
        %v913 = vld [vmem:[#allocation8 + $0x348] sm:$0xff]
        %v914 = vld [vmem:[#allocation8 + $0x350] sm:$0xff]
        %v915 = vld [vmem:[#allocation8 + $0x358] sm:$0xff]
        %v916 = vld [vmem:[#allocation8 + $0x360] sm:$0xff]
        %v917 = vld [vmem:[#allocation8 + $0x368] sm:$0xff]
        %v918 = vld [vmem:[#allocation8 + $0x370] sm:$0xff]
        %v919 = vld [vmem:[#allocation8 + $0x378] sm:$0xff]
        %v920 = vld [vmem:[#allocation8 + $0x380] sm:$0xff]
        %v921 = vld [vmem:[#allocation8 + $0x388] sm:$0xff]
        %v922 = vld [vmem:[#allocation8 + $0x390] sm:$0xff]
        %v923 = vld [vmem:[#allocation8 + $0x398] sm:$0xff]
        %v924 = vld [vmem:[#allocation8 + $0x3a0] sm:$0xff]
        %v925 = vld [vmem:[#allocation8 + $0x3a8] sm:$0xff]
        %v926 = vld [vmem:[#allocation8 + $0x3b0] sm:$0xff]
        %v927 = vld [vmem:[#allocation8 + $0x3b8] sm:$0xff]
        %v928 = vld [vmem:[#allocation8 + $0x3c0] sm:$0xff]
        %v929 = vld [vmem:[#allocation8 + $0x3c8] sm:$0xff]
        %v930 = vld [vmem:[#allocation8 + $0x3d0] sm:$0xff]
        %v931 = vld [vmem:[#allocation8 + $0x3d8] sm:$0xff]
        %v932 = vld [vmem:[#allocation8 + $0x3e0] sm:$0xff]
        %v933 = vld [vmem:[#allocation8 + $0x3e8] sm:$0xff]
        %v934 = vld [vmem:[#allocation8 + $0x3f0] sm:$0xff]
        %v935 = vld [vmem:[#allocation8 + $0x3f8] sm:$0xff]
        %v936 = vld [vmem:[#allocation8 + $0x400] sm:$0xff]
        %v937 = vld [vmem:[#allocation8 + $0x408] sm:$0xff]
        %v938 = vld [vmem:[#allocation8 + $0x410] sm:$0xff]
        %v939 = vld [vmem:[#allocation8 + $0x418] sm:$0xff]
        %v940 = vld [vmem:[#allocation8 + $0x420] sm:$0xff]
        %v941 = vld [vmem:[#allocation8 + $0x428] sm:$0xff]
        %v942 = vld [vmem:[#allocation8 + $0x430] sm:$0xff]
        %v943 = vld [vmem:[#allocation8 + $0x438] sm:$0xff]
        %v944 = vld [vmem:[#allocation8 + $0x440] sm:$0xff]
        %v945 = vld [vmem:[#allocation8 + $0x448] sm:$0xff]
        %v946 = vld [vmem:[#allocation8 + $0x450] sm:$0xff]
        %v947 = vld [vmem:[#allocation8 + $0x458] sm:$0xff]
        %v948 = vld [vmem:[#allocation8 + $0x460] sm:$0xff]
        %v949 = vld [vmem:[#allocation8 + $0x468] sm:$0xff]
        %v950 = vld [vmem:[#allocation8 + $0x470] sm:$0xff]
        %v951 = vld [vmem:[#allocation8 + $0x478] sm:$0xff]
        %v952 = vld [vmem:[#allocation8 + $0x480] sm:$0xff]
        %v953 = vld [vmem:[#allocation8 + $0x488] sm:$0xff]
        %v954 = vld [vmem:[#allocation8 + $0x490] sm:$0xff]
        %v955 = vld [vmem:[#allocation8 + $0x498] sm:$0xff]
        %v956 = vld [vmem:[#allocation8 + $0x4a0] sm:$0xff]
        %v957 = vld [vmem:[#allocation8 + $0x4a8] sm:$0xff]
        %v958 = vld [vmem:[#allocation8 + $0x4b0] sm:$0xff]
        %v959 = vld [vmem:[#allocation8 + $0x4b8] sm:$0xff]
        %v960 = vld [vmem:[#allocation8 + $0x4c0] sm:$0xff]
        %v961 = vld [vmem:[#allocation8 + $0x4c8] sm:$0xff]
        %v962 = vld [vmem:[#allocation8 + $0x4d0] sm:$0xff]
        %v963 = vld [vmem:[#allocation8 + $0x4d8] sm:$0xff]
        %v964 = vld [vmem:[#allocation8 + $0x4e0] sm:$0xff]
        %v965 = vld [vmem:[#allocation8 + $0x4e8] sm:$0xff]
        %v966 = vld [vmem:[#allocation8 + $0x4f0] sm:$0xff]
        %v967 = vld [vmem:[#allocation8 + $0x4f8] sm:$0xff]
        %v968 = vld [vmem:[#allocation8 + $0x500] sm:$0xff]
        %v969 = vld [vmem:[#allocation8 + $0x508] sm:$0xff]
        %v970 = vld [vmem:[#allocation8 + $0x510] sm:$0xff]
        %v971 = vld [vmem:[#allocation8 + $0x518] sm:$0xff]
        %v972 = vld [vmem:[#allocation8 + $0x520] sm:$0xff]
        %v973 = vld [vmem:[#allocation8 + $0x528] sm:$0xff]
        %v974 = vld [vmem:[#allocation8 + $0x530] sm:$0xff]
        %v975 = vld [vmem:[#allocation8 + $0x538] sm:$0xff]
        %v976 = vld [vmem:[#allocation8 + $0x540] sm:$0xff]
        %v977 = vld [vmem:[#allocation8 + $0x548] sm:$0xff]
        %v978 = vld [vmem:[#allocation8 + $0x550] sm:$0xff]
        %v979 = vld [vmem:[#allocation8 + $0x558] sm:$0xff]
        %v980 = vld [vmem:[#allocation8 + $0x560] sm:$0xff]
        %v981 = vld [vmem:[#allocation8 + $0x568] sm:$0xff]
        %v982 = vld [vmem:[#allocation8 + $0x570] sm:$0xff]
        %v983 = vld [vmem:[#allocation8 + $0x578] sm:$0xff]
        %v984 = vld [vmem:[#allocation8 + $0x580] sm:$0xff]
        %v985 = vld [vmem:[#allocation8 + $0x588] sm:$0xff]
        %v986 = vld [vmem:[#allocation8 + $0x590] sm:$0xff]
        %v987 = vld [vmem:[#allocation8 + $0x598] sm:$0xff]
        %v988 = vld [vmem:[#allocation8 + $0x5a0] sm:$0xff]
        %v989 = vld [vmem:[#allocation8 + $0x5a8] sm:$0xff]
        %v990 = vld [vmem:[#allocation8 + $0x5b0] sm:$0xff]
        %v991 = vld [vmem:[#allocation8 + $0x5b8] sm:$0xff]
        %v992 = vld [vmem:[#allocation8 + $0x5c0] sm:$0xff]
        %v993 = vld [vmem:[#allocation8 + $0x5c8] sm:$0xff]
        %v994 = vld [vmem:[#allocation8 + $0x5d0] sm:$0xff]
        %v995 = vld [vmem:[#allocation8 + $0x5d8] sm:$0xff]
        %v996 = vld [vmem:[#allocation8 + $0x5e0] sm:$0xff]
        %v997 = vld [vmem:[#allocation8 + $0x5e8] sm:$0xff]
        %v998 = vld [vmem:[#allocation8 + $0x5f0] sm:$0xff]
        %v999 = vld [vmem:[#allocation8 + $0x5f8] sm:$0xff]
        %v1000 = vld [vmem:[#allocation8 + $0x600] sm:$0xff]
        %v1001 = vld [vmem:[#allocation8 + $0x608] sm:$0xff]
        %v1002 = vld [vmem:[#allocation8 + $0x610] sm:$0xff]
        %v1003 = vld [vmem:[#allocation8 + $0x618] sm:$0xff]
        %v1004 = vld [vmem:[#allocation8 + $0x620] sm:$0xff]
        %v1005 = vld [vmem:[#allocation8 + $0x628] sm:$0xff]
        %v1006 = vld [vmem:[#allocation8 + $0x630] sm:$0xff]
        %v1007 = vld [vmem:[#allocation8 + $0x638] sm:$0xff]
        %v1008 = vld [vmem:[#allocation8 + $0x640] sm:$0xff]
        %v1009 = vld [vmem:[#allocation8 + $0x648] sm:$0xff]
        %v1010 = vld [vmem:[#allocation8 + $0x650] sm:$0xff]
        %v1011 = vld [vmem:[#allocation8 + $0x658] sm:$0xff]
        %v1012 = vld [vmem:[#allocation8 + $0x660] sm:$0xff]
        %v1013 = vld [vmem:[#allocation8 + $0x668] sm:$0xff]
        %v1014 = vld [vmem:[#allocation8 + $0x670] sm:$0xff]
        %v1015 = vld [vmem:[#allocation8 + $0x678] sm:$0xff]
        %v1016 = vld [vmem:[#allocation8 + $0x680] sm:$0xff]
        %v1017 = vld [vmem:[#allocation8 + $0x688] sm:$0xff]
        %v1018 = vld [vmem:[#allocation8 + $0x690] sm:$0xff]
        %v1019 = vld [vmem:[#allocation8 + $0x698] sm:$0xff]
        %v1020 = vld [vmem:[#allocation8 + $0x6a0] sm:$0xff]
        %v1021 = vld [vmem:[#allocation8 + $0x6a8] sm:$0xff]
        %v1022 = vld [vmem:[#allocation8 + $0x6b0] sm:$0xff]
        %v1023 = vld [vmem:[#allocation8 + $0x6b8] sm:$0xff]
        %v1024 = vld [vmem:[#allocation8 + $0x6c0] sm:$0xff]
        %v1025 = vld [vmem:[#allocation8 + $0x6c8] sm:$0xff]
        %v1026 = vld [vmem:[#allocation8 + $0x6d0] sm:$0xff]
        %v1027 = vld [vmem:[#allocation8 + $0x6d8] sm:$0xff]
        %v1028 = vld [vmem:[#allocation8 + $0x6e0] sm:$0xff]
        %v1029 = vld [vmem:[#allocation8 + $0x6e8] sm:$0xff]
        %v1030 = vld [vmem:[#allocation8 + $0x6f0] sm:$0xff]
        %v1031 = vld [vmem:[#allocation8 + $0x6f8] sm:$0xff]
        %v1032 = vld [vmem:[#allocation8 + $0x700] sm:$0xff]
        %v1033 = vld [vmem:[#allocation8 + $0x708] sm:$0xff]
        %v1034 = vld [vmem:[#allocation8 + $0x710] sm:$0xff]
        %v1035 = vld [vmem:[#allocation8 + $0x718] sm:$0xff]
        %v1036 = vld [vmem:[#allocation8 + $0x720] sm:$0xff]
        %v1037 = vld [vmem:[#allocation8 + $0x728] sm:$0xff]
        %v1038 = vld [vmem:[#allocation8 + $0x730] sm:$0xff]
        %v1039 = vld [vmem:[#allocation8 + $0x738] sm:$0xff]
        %v1040 = vld [vmem:[#allocation8 + $0x740] sm:$0xff]
        %v1041 = vld [vmem:[#allocation8 + $0x748] sm:$0xff]
        %v1042 = vld [vmem:[#allocation8 + $0x750] sm:$0xff]
        %v1043 = vld [vmem:[#allocation8 + $0x758] sm:$0xff]
        %v1044 = vld [vmem:[#allocation8 + $0x760] sm:$0xff]
        %v1045 = vld [vmem:[#allocation8 + $0x768] sm:$0xff]
        %v1046 = vld [vmem:[#allocation8 + $0x770] sm:$0xff]
        %v1047 = vld [vmem:[#allocation8 + $0x778] sm:$0xff]
        %v1048 = vld [vmem:[#allocation8 + $0x780] sm:$0xff]
        %v1049 = vld [vmem:[#allocation8 + $0x788] sm:$0xff]
        %v1050 = vld [vmem:[#allocation8 + $0x790] sm:$0xff]
        %v1051 = vld [vmem:[#allocation8 + $0x798] sm:$0xff]
        %v1052 = vld [vmem:[#allocation8 + $0x7a0] sm:$0xff]
        %v1053 = vld [vmem:[#allocation8 + $0x7a8] sm:$0xff]
        %v1054 = vld [vmem:[#allocation8 + $0x7b0] sm:$0xff]
        %v1055 = vld [vmem:[#allocation8 + $0x7b8] sm:$0xff]
        %v1056 = vld [vmem:[#allocation8 + $0x7c0] sm:$0xff]
        %v1057 = vld [vmem:[#allocation8 + $0x7c8] sm:$0xff]
        %v1058 = vld [vmem:[#allocation8 + $0x7d0] sm:$0xff]
        %v1059 = vld [vmem:[#allocation8 + $0x7d8] sm:$0xff]
        %v1060 = vld [vmem:[#allocation8 + $0x7e0] sm:$0xff]
        %v1061 = vld [vmem:[#allocation8 + $0x7e8] sm:$0xff]
        %v1062 = vld [vmem:[#allocation8 + $0x7f0] sm:$0xff]
        %v1063 = vld [vmem:[#allocation8 + $0x7f8] sm:$0xff]
        %v1064 = vld [vmem:[#allocation10] sm:$0xff]
        %v1066 = vperm.slane %v1064, 0
        %v1067 = vperm.slane %v1064, 1
        %v1068 = vperm.slane %v1064, 2
        %v1069 = vperm.slane %v1064, 3
        %v1070 = vperm.slane %v1064, 4
        %v1071 = vperm.slane %v1064, 5
        %v1072 = vperm.slane %v1064, 6
        %v1073 = vperm.slane %v1064, 7
        %v1338 = vunpack.c.l.b16 %v808
        %v1339 = vunpack.c.h.b16 %v808
        %v1340 = vunpack.c.l.b16 %v809
        %v1341 = vunpack.c.h.b16 %v809
        %v1342 = vunpack.c.l.b16 %v810
        %v1343 = vunpack.c.h.b16 %v810
        %v1344 = vunpack.c.l.b16 %v811
        %v1345 = vunpack.c.h.b16 %v811
        %v1346 = vunpack.c.l.b16 %v812
        %v1347 = vunpack.c.h.b16 %v812
        %v1348 = vunpack.c.l.b16 %v813
        %v1349 = vunpack.c.h.b16 %v813
        %v1350 = vunpack.c.l.b16 %v814
        %v1351 = vunpack.c.h.b16 %v814
        %v1352 = vunpack.c.l.b16 %v815
        %v1353 = vunpack.c.h.b16 %v815
        %v1354 = vunpack.c.l.b16 %v816
        %v1355 = vunpack.c.h.b16 %v816
        %v1356 = vunpack.c.l.b16 %v817
        %v1357 = vunpack.c.h.b16 %v817
        %v1358 = vunpack.c.l.b16 %v818
        %v1359 = vunpack.c.h.b16 %v818
        %v1360 = vunpack.c.l.b16 %v819
        %v1361 = vunpack.c.h.b16 %v819
        %v1362 = vunpack.c.l.b16 %v820
        %v1363 = vunpack.c.h.b16 %v820
        %v1364 = vunpack.c.l.b16 %v821
        %v1365 = vunpack.c.h.b16 %v821
        %v1366 = vunpack.c.l.b16 %v822
        %v1367 = vunpack.c.h.b16 %v822
        %v1368 = vunpack.c.l.b16 %v823
        %v1369 = vunpack.c.h.b16 %v823
        %v1370 = vunpack.c.l.b16 %v824
        %v1371 = vunpack.c.h.b16 %v824
        %v1372 = vunpack.c.l.b16 %v825
        %v1373 = vunpack.c.h.b16 %v825
        %v1374 = vunpack.c.l.b16 %v826
        %v1375 = vunpack.c.h.b16 %v826
        %v1376 = vunpack.c.l.b16 %v827
        %v1377 = vunpack.c.h.b16 %v827
        %v1378 = vunpack.c.l.b16 %v828
        %v1379 = vunpack.c.h.b16 %v828
        %v1380 = vunpack.c.l.b16 %v829
        %v1381 = vunpack.c.h.b16 %v829
        %v1382 = vunpack.c.l.b16 %v830
        %v1383 = vunpack.c.h.b16 %v830
        %v1384 = vunpack.c.l.b16 %v831
        %v1385 = vunpack.c.h.b16 %v831
        %v1386 = vunpack.c.l.b16 %v832
        %v1387 = vunpack.c.h.b16 %v832
        %v1388 = vunpack.c.l.b16 %v833
        %v1389 = vunpack.c.h.b16 %v833
        %v1390 = vunpack.c.l.b16 %v834
        %v1391 = vunpack.c.h.b16 %v834
        %v1392 = vunpack.c.l.b16 %v835
        %v1393 = vunpack.c.h.b16 %v835
        %v1394 = vunpack.c.l.b16 %v836
        %v1395 = vunpack.c.h.b16 %v836
        %v1396 = vunpack.c.l.b16 %v837
        %v1397 = vunpack.c.h.b16 %v837
        %v1398 = vunpack.c.l.b16 %v838
        %v1399 = vunpack.c.h.b16 %v838
        %v1400 = vunpack.c.l.b16 %v839
        %v1401 = vunpack.c.h.b16 %v839
        %v1402 = vunpack.c.l.b16 %v840
        %v1403 = vunpack.c.h.b16 %v840
        %v1404 = vunpack.c.l.b16 %v841
        %v1405 = vunpack.c.h.b16 %v841
        %v1406 = vunpack.c.l.b16 %v842
        %v1407 = vunpack.c.h.b16 %v842
        %v1408 = vunpack.c.l.b16 %v843
        %v1409 = vunpack.c.h.b16 %v843
        %v1410 = vunpack.c.l.b16 %v844
        %v1411 = vunpack.c.h.b16 %v844
        %v1412 = vunpack.c.l.b16 %v845
        %v1413 = vunpack.c.h.b16 %v845
        %v1414 = vunpack.c.l.b16 %v846
        %v1415 = vunpack.c.h.b16 %v846
        %v1416 = vunpack.c.l.b16 %v847
        %v1417 = vunpack.c.h.b16 %v847
        %v1418 = vunpack.c.l.b16 %v848
        %v1419 = vunpack.c.h.b16 %v848
        %v1420 = vunpack.c.l.b16 %v849
        %v1421 = vunpack.c.h.b16 %v849
        %v1422 = vunpack.c.l.b16 %v850
        %v1423 = vunpack.c.h.b16 %v850
        %v1424 = vunpack.c.l.b16 %v851
        %v1425 = vunpack.c.h.b16 %v851
        %v1426 = vunpack.c.l.b16 %v852
        %v1427 = vunpack.c.h.b16 %v852
        %v1428 = vunpack.c.l.b16 %v853
        %v1429 = vunpack.c.h.b16 %v853
        %v1430 = vunpack.c.l.b16 %v854
        %v1431 = vunpack.c.h.b16 %v854
        %v1432 = vunpack.c.l.b16 %v855
        %v1433 = vunpack.c.h.b16 %v855
        %v1434 = vunpack.c.l.b16 %v856
        %v1435 = vunpack.c.h.b16 %v856
        %v1436 = vunpack.c.l.b16 %v857
        %v1437 = vunpack.c.h.b16 %v857
        %v1438 = vunpack.c.l.b16 %v858
        %v1439 = vunpack.c.h.b16 %v858
        %v1440 = vunpack.c.l.b16 %v859
        %v1441 = vunpack.c.h.b16 %v859
        %v1442 = vunpack.c.l.b16 %v860
        %v1443 = vunpack.c.h.b16 %v860
        %v1444 = vunpack.c.l.b16 %v861
        %v1445 = vunpack.c.h.b16 %v861
        %v1446 = vunpack.c.l.b16 %v862
        %v1447 = vunpack.c.h.b16 %v862
        %v1448 = vunpack.c.l.b16 %v863
        %v1449 = vunpack.c.h.b16 %v863
        %v1450 = vunpack.c.l.b16 %v864
        %v1451 = vunpack.c.h.b16 %v864
        %v1452 = vunpack.c.l.b16 %v865
        %v1453 = vunpack.c.h.b16 %v865
        %v1454 = vunpack.c.l.b16 %v866
        %v1455 = vunpack.c.h.b16 %v866
        %v1456 = vunpack.c.l.b16 %v867
        %v1457 = vunpack.c.h.b16 %v867
        %v1458 = vunpack.c.l.b16 %v868
        %v1459 = vunpack.c.h.b16 %v868
        %v1460 = vunpack.c.l.b16 %v869
        %v1461 = vunpack.c.h.b16 %v869
        %v1462 = vunpack.c.l.b16 %v870
        %v1463 = vunpack.c.h.b16 %v870
        %v1464 = vunpack.c.l.b16 %v871
        %v1465 = vunpack.c.h.b16 %v871
        %v1466 = vunpack.c.l.b16 %v872
        %v1467 = vunpack.c.h.b16 %v872
        %v1468 = vunpack.c.l.b16 %v873
        %v1469 = vunpack.c.h.b16 %v873
        %v1470 = vunpack.c.l.b16 %v874
        %v1471 = vunpack.c.h.b16 %v874
        %v1472 = vunpack.c.l.b16 %v875
        %v1473 = vunpack.c.h.b16 %v875
        %v1474 = vunpack.c.l.b16 %v876
        %v1475 = vunpack.c.h.b16 %v876
        %v1476 = vunpack.c.l.b16 %v877
        %v1477 = vunpack.c.h.b16 %v877
        %v1478 = vunpack.c.l.b16 %v878
        %v1479 = vunpack.c.h.b16 %v878
        %v1480 = vunpack.c.l.b16 %v879
        %v1481 = vunpack.c.h.b16 %v879
        %v1482 = vunpack.c.l.b16 %v880
        %v1483 = vunpack.c.h.b16 %v880
        %v1484 = vunpack.c.l.b16 %v881
        %v1485 = vunpack.c.h.b16 %v881
        %v1486 = vunpack.c.l.b16 %v882
        %v1487 = vunpack.c.h.b16 %v882
        %v1488 = vunpack.c.l.b16 %v883
        %v1489 = vunpack.c.h.b16 %v883
        %v1490 = vunpack.c.l.b16 %v884
        %v1491 = vunpack.c.h.b16 %v884
        %v1492 = vunpack.c.l.b16 %v885
        %v1493 = vunpack.c.h.b16 %v885
        %v1494 = vunpack.c.l.b16 %v886
        %v1495 = vunpack.c.h.b16 %v886
        %v1496 = vunpack.c.l.b16 %v887
        %v1497 = vunpack.c.h.b16 %v887
        %v1498 = vunpack.c.l.b16 %v888
        %v1499 = vunpack.c.h.b16 %v888
        %v1500 = vunpack.c.l.b16 %v889
        %v1501 = vunpack.c.h.b16 %v889
        %v1502 = vunpack.c.l.b16 %v890
        %v1503 = vunpack.c.h.b16 %v890
        %v1504 = vunpack.c.l.b16 %v891
        %v1505 = vunpack.c.h.b16 %v891
        %v1506 = vunpack.c.l.b16 %v892
        %v1507 = vunpack.c.h.b16 %v892
        %v1508 = vunpack.c.l.b16 %v893
        %v1509 = vunpack.c.h.b16 %v893
        %v1510 = vunpack.c.l.b16 %v894
        %v1511 = vunpack.c.h.b16 %v894
        %v1512 = vunpack.c.l.b16 %v895
        %v1513 = vunpack.c.h.b16 %v895
        %v1514 = vunpack.c.l.b16 %v896
        %v1515 = vunpack.c.h.b16 %v896
        %v1516 = vunpack.c.l.b16 %v897
        %v1517 = vunpack.c.h.b16 %v897
        %v1518 = vunpack.c.l.b16 %v898
        %v1519 = vunpack.c.h.b16 %v898
        %v1520 = vunpack.c.l.b16 %v899
        %v1521 = vunpack.c.h.b16 %v899
        %v1522 = vunpack.c.l.b16 %v900
        %v1523 = vunpack.c.h.b16 %v900
        %v1524 = vunpack.c.l.b16 %v901
        %v1525 = vunpack.c.h.b16 %v901
        %v1526 = vunpack.c.l.b16 %v902
        %v1527 = vunpack.c.h.b16 %v902
        %v1528 = vunpack.c.l.b16 %v903
        %v1529 = vunpack.c.h.b16 %v903
        %v1530 = vunpack.c.l.b16 %v904
        %v1531 = vunpack.c.h.b16 %v904
        %v1532 = vunpack.c.l.b16 %v905
        %v1533 = vunpack.c.h.b16 %v905
        %v1534 = vunpack.c.l.b16 %v906
        %v1535 = vunpack.c.h.b16 %v906
        %v1536 = vunpack.c.l.b16 %v907
        %v1537 = vunpack.c.h.b16 %v907
        %v1538 = vunpack.c.l.b16 %v908
        %v1539 = vunpack.c.h.b16 %v908
        %v1540 = vunpack.c.l.b16 %v909
        %v1541 = vunpack.c.h.b16 %v909
        %v1542 = vunpack.c.l.b16 %v910
        %v1543 = vunpack.c.h.b16 %v910
        %v1544 = vunpack.c.l.b16 %v911
        %v1545 = vunpack.c.h.b16 %v911
        %v1546 = vunpack.c.l.b16 %v912
        %v1547 = vunpack.c.h.b16 %v912
        %v1548 = vunpack.c.l.b16 %v913
        %v1549 = vunpack.c.h.b16 %v913
        %v1550 = vunpack.c.l.b16 %v914
        %v1551 = vunpack.c.h.b16 %v914
        %v1552 = vunpack.c.l.b16 %v915
        %v1553 = vunpack.c.h.b16 %v915
        %v1554 = vunpack.c.l.b16 %v916
        %v1555 = vunpack.c.h.b16 %v916
        %v1556 = vunpack.c.l.b16 %v917
        %v1557 = vunpack.c.h.b16 %v917
        %v1558 = vunpack.c.l.b16 %v918
        %v1559 = vunpack.c.h.b16 %v918
        %v1560 = vunpack.c.l.b16 %v919
        %v1561 = vunpack.c.h.b16 %v919
        %v1562 = vunpack.c.l.b16 %v920
        %v1563 = vunpack.c.h.b16 %v920
        %v1564 = vunpack.c.l.b16 %v921
        %v1565 = vunpack.c.h.b16 %v921
        %v1566 = vunpack.c.l.b16 %v922
        %v1567 = vunpack.c.h.b16 %v922
        %v1568 = vunpack.c.l.b16 %v923
        %v1569 = vunpack.c.h.b16 %v923
        %v1570 = vunpack.c.l.b16 %v924
        %v1571 = vunpack.c.h.b16 %v924
        %v1572 = vunpack.c.l.b16 %v925
        %v1573 = vunpack.c.h.b16 %v925
        %v1574 = vunpack.c.l.b16 %v926
        %v1575 = vunpack.c.h.b16 %v926
        %v1576 = vunpack.c.l.b16 %v927
        %v1577 = vunpack.c.h.b16 %v927
        %v1578 = vunpack.c.l.b16 %v928
        %v1579 = vunpack.c.h.b16 %v928
        %v1580 = vunpack.c.l.b16 %v929
        %v1581 = vunpack.c.h.b16 %v929
        %v1582 = vunpack.c.l.b16 %v930
        %v1583 = vunpack.c.h.b16 %v930
        %v1584 = vunpack.c.l.b16 %v931
        %v1585 = vunpack.c.h.b16 %v931
        %v1586 = vunpack.c.l.b16 %v932
        %v1587 = vunpack.c.h.b16 %v932
        %v1588 = vunpack.c.l.b16 %v933
        %v1589 = vunpack.c.h.b16 %v933
        %v1590 = vunpack.c.l.b16 %v934
        %v1591 = vunpack.c.h.b16 %v934
        %v1592 = vunpack.c.l.b16 %v935
        %v1593 = vunpack.c.h.b16 %v935
        %v1594 = vunpack.c.l.b16 %v936
        %v1595 = vunpack.c.h.b16 %v936
        %v1596 = vunpack.c.l.b16 %v937
        %v1597 = vunpack.c.h.b16 %v937
        %v1598 = vunpack.c.l.b16 %v938
        %v1599 = vunpack.c.h.b16 %v938
        %v1600 = vunpack.c.l.b16 %v939
        %v1601 = vunpack.c.h.b16 %v939
        %v1602 = vunpack.c.l.b16 %v940
        %v1603 = vunpack.c.h.b16 %v940
        %v1604 = vunpack.c.l.b16 %v941
        %v1605 = vunpack.c.h.b16 %v941
        %v1606 = vunpack.c.l.b16 %v942
        %v1607 = vunpack.c.h.b16 %v942
        %v1608 = vunpack.c.l.b16 %v943
        %v1609 = vunpack.c.h.b16 %v943
        %v1610 = vunpack.c.l.b16 %v944
        %v1611 = vunpack.c.h.b16 %v944
        %v1612 = vunpack.c.l.b16 %v945
        %v1613 = vunpack.c.h.b16 %v945
        %v1614 = vunpack.c.l.b16 %v946
        %v1615 = vunpack.c.h.b16 %v946
        %v1616 = vunpack.c.l.b16 %v947
        %v1617 = vunpack.c.h.b16 %v947
        %v1618 = vunpack.c.l.b16 %v948
        %v1619 = vunpack.c.h.b16 %v948
        %v1620 = vunpack.c.l.b16 %v949
        %v1621 = vunpack.c.h.b16 %v949
        %v1622 = vunpack.c.l.b16 %v950
        %v1623 = vunpack.c.h.b16 %v950
        %v1624 = vunpack.c.l.b16 %v951
        %v1625 = vunpack.c.h.b16 %v951
        %v1626 = vunpack.c.l.b16 %v952
        %v1627 = vunpack.c.h.b16 %v952
        %v1628 = vunpack.c.l.b16 %v953
        %v1629 = vunpack.c.h.b16 %v953
        %v1630 = vunpack.c.l.b16 %v954
        %v1631 = vunpack.c.h.b16 %v954
        %v1632 = vunpack.c.l.b16 %v955
        %v1633 = vunpack.c.h.b16 %v955
        %v1634 = vunpack.c.l.b16 %v956
        %v1635 = vunpack.c.h.b16 %v956
        %v1636 = vunpack.c.l.b16 %v957
        %v1637 = vunpack.c.h.b16 %v957
        %v1638 = vunpack.c.l.b16 %v958
        %v1639 = vunpack.c.h.b16 %v958
        %v1640 = vunpack.c.l.b16 %v959
        %v1641 = vunpack.c.h.b16 %v959
        %v1642 = vunpack.c.l.b16 %v960
        %v1643 = vunpack.c.h.b16 %v960
        %v1644 = vunpack.c.l.b16 %v961
        %v1645 = vunpack.c.h.b16 %v961
        %v1646 = vunpack.c.l.b16 %v962
        %v1647 = vunpack.c.h.b16 %v962
        %v1648 = vunpack.c.l.b16 %v963
        %v1649 = vunpack.c.h.b16 %v963
        %v1650 = vunpack.c.l.b16 %v964
        %v1651 = vunpack.c.h.b16 %v964
        %v1652 = vunpack.c.l.b16 %v965
        %v1653 = vunpack.c.h.b16 %v965
        %v1654 = vunpack.c.l.b16 %v966
        %v1655 = vunpack.c.h.b16 %v966
        %v1656 = vunpack.c.l.b16 %v967
        %v1657 = vunpack.c.h.b16 %v967
        %v1658 = vunpack.c.l.b16 %v968
        %v1659 = vunpack.c.h.b16 %v968
        %v1660 = vunpack.c.l.b16 %v969
        %v1661 = vunpack.c.h.b16 %v969
        %v1662 = vunpack.c.l.b16 %v970
        %v1663 = vunpack.c.h.b16 %v970
        %v1664 = vunpack.c.l.b16 %v971
        %v1665 = vunpack.c.h.b16 %v971
        %v1666 = vunpack.c.l.b16 %v972
        %v1667 = vunpack.c.h.b16 %v972
        %v1668 = vunpack.c.l.b16 %v973
        %v1669 = vunpack.c.h.b16 %v973
        %v1670 = vunpack.c.l.b16 %v974
        %v1671 = vunpack.c.h.b16 %v974
        %v1672 = vunpack.c.l.b16 %v975
        %v1673 = vunpack.c.h.b16 %v975
        %v1674 = vunpack.c.l.b16 %v976
        %v1675 = vunpack.c.h.b16 %v976
        %v1676 = vunpack.c.l.b16 %v977
        %v1677 = vunpack.c.h.b16 %v977
        %v1678 = vunpack.c.l.b16 %v978
        %v1679 = vunpack.c.h.b16 %v978
        %v1680 = vunpack.c.l.b16 %v979
        %v1681 = vunpack.c.h.b16 %v979
        %v1682 = vunpack.c.l.b16 %v980
        %v1683 = vunpack.c.h.b16 %v980
        %v1684 = vunpack.c.l.b16 %v981
        %v1685 = vunpack.c.h.b16 %v981
        %v1686 = vunpack.c.l.b16 %v982
        %v1687 = vunpack.c.h.b16 %v982
        %v1688 = vunpack.c.l.b16 %v983
        %v1689 = vunpack.c.h.b16 %v983
        %v1690 = vunpack.c.l.b16 %v984
        %v1691 = vunpack.c.h.b16 %v984
        %v1692 = vunpack.c.l.b16 %v985
        %v1693 = vunpack.c.h.b16 %v985
        %v1694 = vunpack.c.l.b16 %v986
        %v1695 = vunpack.c.h.b16 %v986
        %v1696 = vunpack.c.l.b16 %v987
        %v1697 = vunpack.c.h.b16 %v987
        %v1698 = vunpack.c.l.b16 %v988
        %v1699 = vunpack.c.h.b16 %v988
        %v1700 = vunpack.c.l.b16 %v989
        %v1701 = vunpack.c.h.b16 %v989
        %v1702 = vunpack.c.l.b16 %v990
        %v1703 = vunpack.c.h.b16 %v990
        %v1704 = vunpack.c.l.b16 %v991
        %v1705 = vunpack.c.h.b16 %v991
        %v1706 = vunpack.c.l.b16 %v992
        %v1707 = vunpack.c.h.b16 %v992
        %v1708 = vunpack.c.l.b16 %v993
        %v1709 = vunpack.c.h.b16 %v993
        %v1710 = vunpack.c.l.b16 %v994
        %v1711 = vunpack.c.h.b16 %v994
        %v1712 = vunpack.c.l.b16 %v995
        %v1713 = vunpack.c.h.b16 %v995
        %v1714 = vunpack.c.l.b16 %v996
        %v1715 = vunpack.c.h.b16 %v996
        %v1716 = vunpack.c.l.b16 %v997
        %v1717 = vunpack.c.h.b16 %v997
        %v1718 = vunpack.c.l.b16 %v998
        %v1719 = vunpack.c.h.b16 %v998
        %v1720 = vunpack.c.l.b16 %v999
        %v1721 = vunpack.c.h.b16 %v999
        %v1722 = vunpack.c.l.b16 %v1000
        %v1723 = vunpack.c.h.b16 %v1000
        %v1724 = vunpack.c.l.b16 %v1001
        %v1725 = vunpack.c.h.b16 %v1001
        %v1726 = vunpack.c.l.b16 %v1002
        %v1727 = vunpack.c.h.b16 %v1002
        %v1728 = vunpack.c.l.b16 %v1003
        %v1729 = vunpack.c.h.b16 %v1003
        %v1730 = vunpack.c.l.b16 %v1004
        %v1731 = vunpack.c.h.b16 %v1004
        %v1732 = vunpack.c.l.b16 %v1005
        %v1733 = vunpack.c.h.b16 %v1005
        %v1734 = vunpack.c.l.b16 %v1006
        %v1735 = vunpack.c.h.b16 %v1006
        %v1736 = vunpack.c.l.b16 %v1007
        %v1737 = vunpack.c.h.b16 %v1007
        %v1738 = vunpack.c.l.b16 %v1008
        %v1739 = vunpack.c.h.b16 %v1008
        %v1740 = vunpack.c.l.b16 %v1009
        %v1741 = vunpack.c.h.b16 %v1009
        %v1742 = vunpack.c.l.b16 %v1010
        %v1743 = vunpack.c.h.b16 %v1010
        %v1744 = vunpack.c.l.b16 %v1011
        %v1745 = vunpack.c.h.b16 %v1011
        %v1746 = vunpack.c.l.b16 %v1012
        %v1747 = vunpack.c.h.b16 %v1012
        %v1748 = vunpack.c.l.b16 %v1013
        %v1749 = vunpack.c.h.b16 %v1013
        %v1750 = vunpack.c.l.b16 %v1014
        %v1751 = vunpack.c.h.b16 %v1014
        %v1752 = vunpack.c.l.b16 %v1015
        %v1753 = vunpack.c.h.b16 %v1015
        %v1754 = vunpack.c.l.b16 %v1016
        %v1755 = vunpack.c.h.b16 %v1016
        %v1756 = vunpack.c.l.b16 %v1017
        %v1757 = vunpack.c.h.b16 %v1017
        %v1758 = vunpack.c.l.b16 %v1018
        %v1759 = vunpack.c.h.b16 %v1018
        %v1760 = vunpack.c.l.b16 %v1019
        %v1761 = vunpack.c.h.b16 %v1019
        %v1762 = vunpack.c.l.b16 %v1020
        %v1763 = vunpack.c.h.b16 %v1020
        %v1764 = vunpack.c.l.b16 %v1021
        %v1765 = vunpack.c.h.b16 %v1021
        %v1766 = vunpack.c.l.b16 %v1022
        %v1767 = vunpack.c.h.b16 %v1022
        %v1768 = vunpack.c.l.b16 %v1023
        %v1769 = vunpack.c.h.b16 %v1023
        %v1770 = vunpack.c.l.b16 %v1024
        %v1771 = vunpack.c.h.b16 %v1024
        %v1772 = vunpack.c.l.b16 %v1025
        %v1773 = vunpack.c.h.b16 %v1025
        %v1774 = vunpack.c.l.b16 %v1026
        %v1775 = vunpack.c.h.b16 %v1026
        %v1776 = vunpack.c.l.b16 %v1027
        %v1777 = vunpack.c.h.b16 %v1027
        %v1778 = vunpack.c.l.b16 %v1028
        %v1779 = vunpack.c.h.b16 %v1028
        %v1780 = vunpack.c.l.b16 %v1029
        %v1781 = vunpack.c.h.b16 %v1029
        %v1782 = vunpack.c.l.b16 %v1030
        %v1783 = vunpack.c.h.b16 %v1030
        %v1784 = vunpack.c.l.b16 %v1031
        %v1785 = vunpack.c.h.b16 %v1031
        %v1786 = vunpack.c.l.b16 %v1032
        %v1787 = vunpack.c.h.b16 %v1032
        %v1788 = vunpack.c.l.b16 %v1033
        %v1789 = vunpack.c.h.b16 %v1033
        %v1790 = vunpack.c.l.b16 %v1034
        %v1791 = vunpack.c.h.b16 %v1034
        %v1792 = vunpack.c.l.b16 %v1035
        %v1793 = vunpack.c.h.b16 %v1035
        %v1794 = vunpack.c.l.b16 %v1036
        %v1795 = vunpack.c.h.b16 %v1036
        %v1796 = vunpack.c.l.b16 %v1037
        %v1797 = vunpack.c.h.b16 %v1037
        %v1798 = vunpack.c.l.b16 %v1038
        %v1799 = vunpack.c.h.b16 %v1038
        %v1800 = vunpack.c.l.b16 %v1039
        %v1801 = vunpack.c.h.b16 %v1039
        %v1802 = vunpack.c.l.b16 %v1040
        %v1803 = vunpack.c.h.b16 %v1040
        %v1804 = vunpack.c.l.b16 %v1041
        %v1805 = vunpack.c.h.b16 %v1041
        %v1806 = vunpack.c.l.b16 %v1042
        %v1807 = vunpack.c.h.b16 %v1042
        %v1808 = vunpack.c.l.b16 %v1043
        %v1809 = vunpack.c.h.b16 %v1043
        %v1810 = vunpack.c.l.b16 %v1044
        %v1811 = vunpack.c.h.b16 %v1044
        %v1812 = vunpack.c.l.b16 %v1045
        %v1813 = vunpack.c.h.b16 %v1045
        %v1814 = vunpack.c.l.b16 %v1046
        %v1815 = vunpack.c.h.b16 %v1046
        %v1816 = vunpack.c.l.b16 %v1047
        %v1817 = vunpack.c.h.b16 %v1047
        %v1818 = vunpack.c.l.b16 %v1048
        %v1819 = vunpack.c.h.b16 %v1048
        %v1820 = vunpack.c.l.b16 %v1049
        %v1821 = vunpack.c.h.b16 %v1049
        %v1822 = vunpack.c.l.b16 %v1050
        %v1823 = vunpack.c.h.b16 %v1050
        %v1824 = vunpack.c.l.b16 %v1051
        %v1825 = vunpack.c.h.b16 %v1051
        %v1826 = vunpack.c.l.b16 %v1052
        %v1827 = vunpack.c.h.b16 %v1052
        %v1828 = vunpack.c.l.b16 %v1053
        %v1829 = vunpack.c.h.b16 %v1053
        %v1830 = vunpack.c.l.b16 %v1054
        %v1831 = vunpack.c.h.b16 %v1054
        %v1832 = vunpack.c.l.b16 %v1055
        %v1833 = vunpack.c.h.b16 %v1055
        %v1834 = vunpack.c.l.b16 %v1056
        %v1835 = vunpack.c.h.b16 %v1056
        %v1836 = vunpack.c.l.b16 %v1057
        %v1837 = vunpack.c.h.b16 %v1057
        %v1838 = vunpack.c.l.b16 %v1058
        %v1839 = vunpack.c.h.b16 %v1058
        %v1840 = vunpack.c.l.b16 %v1059
        %v1841 = vunpack.c.h.b16 %v1059
        %v1842 = vunpack.c.l.b16 %v1060
        %v1843 = vunpack.c.h.b16 %v1060
        %v1844 = vunpack.c.l.b16 %v1061
        %v1845 = vunpack.c.h.b16 %v1061
        %v1846 = vunpack.c.l.b16 %v1062
        %v1847 = vunpack.c.h.b16 %v1062
        %v1848 = vunpack.c.l.b16 %v1063
        %v1849 = vunpack.c.h.b16 %v1063
        %v1850 = vpack.c.b16 %v1346, %v1338
        %v1851 = vpack.c.b16 %v1347, %v1339
        %v1852 = vpack.c.b16 %v1348, %v1340
        %v1853 = vpack.c.b16 %v1349, %v1341
        %v1854 = vpack.c.b16 %v1350, %v1342
        %v1855 = vpack.c.b16 %v1351, %v1343
        %v1856 = vpack.c.b16 %v1352, %v1344
        %v1857 = vpack.c.b16 %v1353, %v1345
        %v1858 = vpack.c.b16 %v1362, %v1354
        %v1859 = vpack.c.b16 %v1363, %v1355
        %v1860 = vpack.c.b16 %v1364, %v1356
        %v1861 = vpack.c.b16 %v1365, %v1357
        %v1862 = vpack.c.b16 %v1366, %v1358
        %v1863 = vpack.c.b16 %v1367, %v1359
        %v1864 = vpack.c.b16 %v1368, %v1360
        %v1865 = vpack.c.b16 %v1369, %v1361
        %v1866 = vpack.c.b16 %v1378, %v1370
        %v1867 = vpack.c.b16 %v1379, %v1371
        %v1868 = vpack.c.b16 %v1380, %v1372
        %v1869 = vpack.c.b16 %v1381, %v1373
        %v1870 = vpack.c.b16 %v1382, %v1374
        %v1871 = vpack.c.b16 %v1383, %v1375
        %v1872 = vpack.c.b16 %v1384, %v1376
        %v1873 = vpack.c.b16 %v1385, %v1377
        %v1874 = vpack.c.b16 %v1394, %v1386
        %v1875 = vpack.c.b16 %v1395, %v1387
        %v1876 = vpack.c.b16 %v1396, %v1388
        %v1877 = vpack.c.b16 %v1397, %v1389
        %v1878 = vpack.c.b16 %v1398, %v1390
        %v1879 = vpack.c.b16 %v1399, %v1391
        %v1880 = vpack.c.b16 %v1400, %v1392
        %v1881 = vpack.c.b16 %v1401, %v1393
        %v1882 = vpack.c.b16 %v1410, %v1402
        %v1883 = vpack.c.b16 %v1411, %v1403
        %v1884 = vpack.c.b16 %v1412, %v1404
        %v1885 = vpack.c.b16 %v1413, %v1405
        %v1886 = vpack.c.b16 %v1414, %v1406
        %v1887 = vpack.c.b16 %v1415, %v1407
        %v1888 = vpack.c.b16 %v1416, %v1408
        %v1889 = vpack.c.b16 %v1417, %v1409
        %v1890 = vpack.c.b16 %v1426, %v1418
        %v1891 = vpack.c.b16 %v1427, %v1419
        %v1892 = vpack.c.b16 %v1428, %v1420
        %v1893 = vpack.c.b16 %v1429, %v1421
        %v1894 = vpack.c.b16 %v1430, %v1422
        %v1895 = vpack.c.b16 %v1431, %v1423
        %v1896 = vpack.c.b16 %v1432, %v1424
        %v1897 = vpack.c.b16 %v1433, %v1425
        %v1898 = vpack.c.b16 %v1442, %v1434
        %v1899 = vpack.c.b16 %v1443, %v1435
        %v1900 = vpack.c.b16 %v1444, %v1436
        %v1901 = vpack.c.b16 %v1445, %v1437
        %v1902 = vpack.c.b16 %v1446, %v1438
        %v1903 = vpack.c.b16 %v1447, %v1439
        %v1904 = vpack.c.b16 %v1448, %v1440
        %v1905 = vpack.c.b16 %v1449, %v1441
        %v1906 = vpack.c.b16 %v1458, %v1450
        %v1907 = vpack.c.b16 %v1459, %v1451
        %v1908 = vpack.c.b16 %v1460, %v1452
        %v1909 = vpack.c.b16 %v1461, %v1453
        %v1910 = vpack.c.b16 %v1462, %v1454
        %v1911 = vpack.c.b16 %v1463, %v1455
        %v1912 = vpack.c.b16 %v1464, %v1456
        %v1913 = vpack.c.b16 %v1465, %v1457
        %v1914 = vpack.c.b16 %v1474, %v1466
        %v1915 = vpack.c.b16 %v1475, %v1467
        %v1916 = vpack.c.b16 %v1476, %v1468
        %v1917 = vpack.c.b16 %v1477, %v1469
        %v1918 = vpack.c.b16 %v1478, %v1470
        %v1919 = vpack.c.b16 %v1479, %v1471
        %v1920 = vpack.c.b16 %v1480, %v1472
        %v1921 = vpack.c.b16 %v1481, %v1473
        %v1922 = vpack.c.b16 %v1490, %v1482
        %v1923 = vpack.c.b16 %v1491, %v1483
        %v1924 = vpack.c.b16 %v1492, %v1484
        %v1925 = vpack.c.b16 %v1493, %v1485
        %v1926 = vpack.c.b16 %v1494, %v1486
        %v1927 = vpack.c.b16 %v1495, %v1487
        %v1928 = vpack.c.b16 %v1496, %v1488
        %v1929 = vpack.c.b16 %v1497, %v1489
        %v1930 = vpack.c.b16 %v1506, %v1498
        %v1931 = vpack.c.b16 %v1507, %v1499
        %v1932 = vpack.c.b16 %v1508, %v1500
        %v1933 = vpack.c.b16 %v1509, %v1501
        %v1934 = vpack.c.b16 %v1510, %v1502
        %v1935 = vpack.c.b16 %v1511, %v1503
        %v1936 = vpack.c.b16 %v1512, %v1504
        %v1937 = vpack.c.b16 %v1513, %v1505
        %v1938 = vpack.c.b16 %v1522, %v1514
        %v1939 = vpack.c.b16 %v1523, %v1515
        %v1940 = vpack.c.b16 %v1524, %v1516
        %v1941 = vpack.c.b16 %v1525, %v1517
        %v1942 = vpack.c.b16 %v1526, %v1518
        %v1943 = vpack.c.b16 %v1527, %v1519
        %v1944 = vpack.c.b16 %v1528, %v1520
        %v1945 = vpack.c.b16 %v1529, %v1521
        %v1946 = vpack.c.b16 %v1538, %v1530
        %v1947 = vpack.c.b16 %v1539, %v1531
        %v1948 = vpack.c.b16 %v1540, %v1532
        %v1949 = vpack.c.b16 %v1541, %v1533
        %v1950 = vpack.c.b16 %v1542, %v1534
        %v1951 = vpack.c.b16 %v1543, %v1535
        %v1952 = vpack.c.b16 %v1544, %v1536
        %v1953 = vpack.c.b16 %v1545, %v1537
        %v1954 = vpack.c.b16 %v1554, %v1546
        %v1955 = vpack.c.b16 %v1555, %v1547
        %v1956 = vpack.c.b16 %v1556, %v1548
        %v1957 = vpack.c.b16 %v1557, %v1549
        %v1958 = vpack.c.b16 %v1558, %v1550
        %v1959 = vpack.c.b16 %v1559, %v1551
        %v1960 = vpack.c.b16 %v1560, %v1552
        %v1961 = vpack.c.b16 %v1561, %v1553
        %v1962 = vpack.c.b16 %v1570, %v1562
        %v1963 = vpack.c.b16 %v1571, %v1563
        %v1964 = vpack.c.b16 %v1572, %v1564
        %v1965 = vpack.c.b16 %v1573, %v1565
        %v1966 = vpack.c.b16 %v1574, %v1566
        %v1967 = vpack.c.b16 %v1575, %v1567
        %v1968 = vpack.c.b16 %v1576, %v1568
        %v1969 = vpack.c.b16 %v1577, %v1569
        %v1970 = vpack.c.b16 %v1586, %v1578
        %v1971 = vpack.c.b16 %v1587, %v1579
        %v1972 = vpack.c.b16 %v1588, %v1580
        %v1973 = vpack.c.b16 %v1589, %v1581
        %v1974 = vpack.c.b16 %v1590, %v1582
        %v1975 = vpack.c.b16 %v1591, %v1583
        %v1976 = vpack.c.b16 %v1592, %v1584
        %v1977 = vpack.c.b16 %v1593, %v1585
        %v1978 = vpack.c.b16 %v1602, %v1594
        %v1979 = vpack.c.b16 %v1603, %v1595
        %v1980 = vpack.c.b16 %v1604, %v1596
        %v1981 = vpack.c.b16 %v1605, %v1597
        %v1982 = vpack.c.b16 %v1606, %v1598
        %v1983 = vpack.c.b16 %v1607, %v1599
        %v1984 = vpack.c.b16 %v1608, %v1600
        %v1985 = vpack.c.b16 %v1609, %v1601
        %v1986 = vpack.c.b16 %v1618, %v1610
        %v1987 = vpack.c.b16 %v1619, %v1611
        %v1988 = vpack.c.b16 %v1620, %v1612
        %v1989 = vpack.c.b16 %v1621, %v1613
        %v1990 = vpack.c.b16 %v1622, %v1614
        %v1991 = vpack.c.b16 %v1623, %v1615
        %v1992 = vpack.c.b16 %v1624, %v1616
        %v1993 = vpack.c.b16 %v1625, %v1617
        %v1994 = vpack.c.b16 %v1634, %v1626
        %v1995 = vpack.c.b16 %v1635, %v1627
        %v1996 = vpack.c.b16 %v1636, %v1628
        %v1997 = vpack.c.b16 %v1637, %v1629
        %v1998 = vpack.c.b16 %v1638, %v1630
        %v1999 = vpack.c.b16 %v1639, %v1631
        %v2000 = vpack.c.b16 %v1640, %v1632
        %v2001 = vpack.c.b16 %v1641, %v1633
        %v2002 = vpack.c.b16 %v1650, %v1642
        %v2003 = vpack.c.b16 %v1651, %v1643
        %v2004 = vpack.c.b16 %v1652, %v1644
        %v2005 = vpack.c.b16 %v1653, %v1645
        %v2006 = vpack.c.b16 %v1654, %v1646
        %v2007 = vpack.c.b16 %v1655, %v1647
        %v2008 = vpack.c.b16 %v1656, %v1648
        %v2009 = vpack.c.b16 %v1657, %v1649
        %v2010 = vpack.c.b16 %v1666, %v1658
        %v2011 = vpack.c.b16 %v1667, %v1659
        %v2012 = vpack.c.b16 %v1668, %v1660
        %v2013 = vpack.c.b16 %v1669, %v1661
        %v2014 = vpack.c.b16 %v1670, %v1662
        %v2015 = vpack.c.b16 %v1671, %v1663
        %v2016 = vpack.c.b16 %v1672, %v1664
        %v2017 = vpack.c.b16 %v1673, %v1665
        %v2018 = vpack.c.b16 %v1682, %v1674
        %v2019 = vpack.c.b16 %v1683, %v1675
        %v2020 = vpack.c.b16 %v1684, %v1676
        %v2021 = vpack.c.b16 %v1685, %v1677
        %v2022 = vpack.c.b16 %v1686, %v1678
        %v2023 = vpack.c.b16 %v1687, %v1679
        %v2024 = vpack.c.b16 %v1688, %v1680
        %v2025 = vpack.c.b16 %v1689, %v1681
        %v2026 = vpack.c.b16 %v1698, %v1690
        %v2027 = vpack.c.b16 %v1699, %v1691
        %v2028 = vpack.c.b16 %v1700, %v1692
        %v2029 = vpack.c.b16 %v1701, %v1693
        %v2030 = vpack.c.b16 %v1702, %v1694
        %v2031 = vpack.c.b16 %v1703, %v1695
        %v2032 = vpack.c.b16 %v1704, %v1696
        %v2033 = vpack.c.b16 %v1705, %v1697
        %v2034 = vpack.c.b16 %v1714, %v1706
        %v2035 = vpack.c.b16 %v1715, %v1707
        %v2036 = vpack.c.b16 %v1716, %v1708
        %v2037 = vpack.c.b16 %v1717, %v1709
        %v2038 = vpack.c.b16 %v1718, %v1710
        %v2039 = vpack.c.b16 %v1719, %v1711
        %v2040 = vpack.c.b16 %v1720, %v1712
        %v2041 = vpack.c.b16 %v1721, %v1713
        %v2042 = vpack.c.b16 %v1730, %v1722
        %v2043 = vpack.c.b16 %v1731, %v1723
        %v2044 = vpack.c.b16 %v1732, %v1724
        %v2045 = vpack.c.b16 %v1733, %v1725
        %v2046 = vpack.c.b16 %v1734, %v1726
        %v2047 = vpack.c.b16 %v1735, %v1727
        %v2048 = vpack.c.b16 %v1736, %v1728
        %v2049 = vpack.c.b16 %v1737, %v1729
        %v2050 = vpack.c.b16 %v1746, %v1738
        %v2051 = vpack.c.b16 %v1747, %v1739
        %v2052 = vpack.c.b16 %v1748, %v1740
        %v2053 = vpack.c.b16 %v1749, %v1741
        %v2054 = vpack.c.b16 %v1750, %v1742
        %v2055 = vpack.c.b16 %v1751, %v1743
        %v2056 = vpack.c.b16 %v1752, %v1744
        %v2057 = vpack.c.b16 %v1753, %v1745
        %v2058 = vpack.c.b16 %v1762, %v1754
        %v2059 = vpack.c.b16 %v1763, %v1755
        %v2060 = vpack.c.b16 %v1764, %v1756
        %v2061 = vpack.c.b16 %v1765, %v1757
        %v2062 = vpack.c.b16 %v1766, %v1758
        %v2063 = vpack.c.b16 %v1767, %v1759
        %v2064 = vpack.c.b16 %v1768, %v1760
        %v2065 = vpack.c.b16 %v1769, %v1761
        %v2066 = vpack.c.b16 %v1778, %v1770
        %v2067 = vpack.c.b16 %v1779, %v1771
        %v2068 = vpack.c.b16 %v1780, %v1772
        %v2069 = vpack.c.b16 %v1781, %v1773
        %v2070 = vpack.c.b16 %v1782, %v1774
        %v2071 = vpack.c.b16 %v1783, %v1775
        %v2072 = vpack.c.b16 %v1784, %v1776
        %v2073 = vpack.c.b16 %v1785, %v1777
        %v2074 = vpack.c.b16 %v1794, %v1786
        %v2075 = vpack.c.b16 %v1795, %v1787
        %v2076 = vpack.c.b16 %v1796, %v1788
        %v2077 = vpack.c.b16 %v1797, %v1789
        %v2078 = vpack.c.b16 %v1798, %v1790
        %v2079 = vpack.c.b16 %v1799, %v1791
        %v2080 = vpack.c.b16 %v1800, %v1792
        %v2081 = vpack.c.b16 %v1801, %v1793
        %v2082 = vpack.c.b16 %v1810, %v1802
        %v2083 = vpack.c.b16 %v1811, %v1803
        %v2084 = vpack.c.b16 %v1812, %v1804
        %v2085 = vpack.c.b16 %v1813, %v1805
        %v2086 = vpack.c.b16 %v1814, %v1806
        %v2087 = vpack.c.b16 %v1815, %v1807
        %v2088 = vpack.c.b16 %v1816, %v1808
        %v2089 = vpack.c.b16 %v1817, %v1809
        %v2090 = vpack.c.b16 %v1826, %v1818
        %v2091 = vpack.c.b16 %v1827, %v1819
        %v2092 = vpack.c.b16 %v1828, %v1820
        %v2093 = vpack.c.b16 %v1829, %v1821
        %v2094 = vpack.c.b16 %v1830, %v1822
        %v2095 = vpack.c.b16 %v1831, %v1823
        %v2096 = vpack.c.b16 %v1832, %v1824
        %v2097 = vpack.c.b16 %v1833, %v1825
        %v2098 = vpack.c.b16 %v1842, %v1834
        %v2099 = vpack.c.b16 %v1843, %v1835
        %v2100 = vpack.c.b16 %v1844, %v1836
        %v2101 = vpack.c.b16 %v1845, %v1837
        %v2102 = vpack.c.b16 %v1846, %v1838
        %v2103 = vpack.c.b16 %v1847, %v1839
        %v2104 = vpack.c.b16 %v1848, %v1840
        %v2105 = vpack.c.b16 %v1849, %v1841
        %2362 = vmatpush.bf16.msra.mxu0 %v1906
        %2363 = vmatpush.bf16.msra.mxu0 %v1898
        %2364 = vmatpush.bf16.msra.mxu0 %v1890
        %2365 = vmatpush.bf16.msra.mxu0 %v1882
        %2366 = vmatpush.bf16.msra.mxu0 %v1874
        %2367 = vmatpush.bf16.msra.mxu0 %v1866
        %2368 = vmatpush.bf16.msra.mxu0 %v1858
        %2369 = vmatpush.bf16.msra.mxu0 %v1850
        %2370 = vmatmul.bf16.gmra.mxu0 %v780
        %v2371 = vpop.f32.mrf.mxu0
        %v2372 = vadd.f32 %v1066, %v2371
        %v2373 = vpop.f32.mrf.mxu0
        %v2374 = vadd.f32 %v1066, %v2373
        %2375 = vmatmul.bf16.gmra.mxu0 %v784
        %v2376 = vpop.f32.mrf.mxu0
        %v2377 = vadd.f32 %v1066, %v2376
        %v2378 = vpop.f32.mrf.mxu0
        %v2379 = vadd.f32 %v1066, %v2378
        %2380 = vmatmul.bf16.gmra.mxu0 %v788
        %v2381 = vpop.f32.mrf.mxu0
        %v2382 = vadd.f32 %v1066, %v2381
        %v2383 = vpop.f32.mrf.mxu0
        %v2384 = vadd.f32 %v1066, %v2383
        %2385 = vmatmul.bf16.gmra.mxu0 %v792
        %v2386 = vpop.f32.mrf.mxu0
        %v2387 = vadd.f32 %v1066, %v2386
        %v2388 = vpop.f32.mrf.mxu0
        %v2389 = vadd.f32 %v1066, %v2388
        %2390 = vmatmul.bf16.gmra.mxu0 %v796
        %v2391 = vpop.f32.mrf.mxu0
        %v2392 = vadd.f32 %v1066, %v2391
        %v2393 = vpop.f32.mrf.mxu0
        %v2394 = vadd.f32 %v1066, %v2393
        %2395 = vmatmul.bf16.gmra.mxu0 %v800
        %v2396 = vpop.f32.mrf.mxu0
        %v2397 = vadd.f32 %v1066, %v2396
        %v2398 = vpop.f32.mrf.mxu0
        %v2399 = vadd.f32 %v1066, %v2398
        %2400 = vmatmul.bf16.gmra.mxu0 %v804
        %v2401 = vpop.f32.mrf.mxu0
        %v2402 = vadd.f32 %v1066, %v2401
        %v2403 = vpop.f32.mrf.mxu0
        %v2404 = vadd.f32 %v1066, %v2403
        %2405 = vdwg.mxu0
        %2406 = vmatpush.bf16.msra.mxu0 %v1970
        %2407 = vmatpush.bf16.msra.mxu0 %v1962
        %2408 = vmatpush.bf16.msra.mxu0 %v1954
        %2409 = vmatpush.bf16.msra.mxu0 %v1946
        %2410 = vmatpush.bf16.msra.mxu0 %v1938
        %2411 = vmatpush.bf16.msra.mxu0 %v1930
        %2412 = vmatpush.bf16.msra.mxu0 %v1922
        %2413 = vmatpush.bf16.msra.mxu0 %v1914
        %2414 = vmatmul.bf16.gmra.mxu0 %v781
        %v2415 = vpop.f32.mrf.mxu0
        %v2416 = vadd.f32 %v2372, %v2415
        %v2417 = vpop.f32.mrf.mxu0
        %v2418 = vadd.f32 %v2374, %v2417
        %2419 = vmatmul.bf16.gmra.mxu0 %v785
        %v2420 = vpop.f32.mrf.mxu0
        %v2421 = vadd.f32 %v2377, %v2420
        %v2422 = vpop.f32.mrf.mxu0
        %v2423 = vadd.f32 %v2379, %v2422
        %2424 = vmatmul.bf16.gmra.mxu0 %v789
        %v2425 = vpop.f32.mrf.mxu0
        %v2426 = vadd.f32 %v2382, %v2425
        %v2427 = vpop.f32.mrf.mxu0
        %v2428 = vadd.f32 %v2384, %v2427
        %2429 = vmatmul.bf16.gmra.mxu0 %v793
        %v2430 = vpop.f32.mrf.mxu0
        %v2431 = vadd.f32 %v2387, %v2430
        %v2432 = vpop.f32.mrf.mxu0
        %v2433 = vadd.f32 %v2389, %v2432
        %2434 = vmatmul.bf16.gmra.mxu0 %v797
        %v2435 = vpop.f32.mrf.mxu0
        %v2436 = vadd.f32 %v2392, %v2435
        %v2437 = vpop.f32.mrf.mxu0
        %v2438 = vadd.f32 %v2394, %v2437
        %2439 = vmatmul.bf16.gmra.mxu0 %v801
        %v2440 = vpop.f32.mrf.mxu0
        %v2441 = vadd.f32 %v2397, %v2440
        %v2442 = vpop.f32.mrf.mxu0
        %v2443 = vadd.f32 %v2399, %v2442
        %2444 = vmatmul.bf16.gmra.mxu0 %v805
        %v2445 = vpop.f32.mrf.mxu0
        %v2446 = vadd.f32 %v2402, %v2445
        %v2447 = vpop.f32.mrf.mxu0
        %v2448 = vadd.f32 %v2404, %v2447
        %2449 = vdwg.mxu0
        %2450 = vmatpush.bf16.msra.mxu0 %v2034
        %2451 = vmatpush.bf16.msra.mxu0 %v2026
        %2452 = vmatpush.bf16.msra.mxu0 %v2018
        %2453 = vmatpush.bf16.msra.mxu0 %v2010
        %2454 = vmatpush.bf16.msra.mxu0 %v2002
        %2455 = vmatpush.bf16.msra.mxu0 %v1994
        %2456 = vmatpush.bf16.msra.mxu0 %v1986
        %2457 = vmatpush.bf16.msra.mxu0 %v1978
        %2458 = vmatmul.bf16.gmra.mxu0 %v782
        %v2459 = vpop.f32.mrf.mxu0
        %v2460 = vadd.f32 %v2416, %v2459
        %v2461 = vpop.f32.mrf.mxu0
        %v2462 = vadd.f32 %v2418, %v2461
        %2463 = vmatmul.bf16.gmra.mxu0 %v786
        %v2464 = vpop.f32.mrf.mxu0
        %v2465 = vadd.f32 %v2421, %v2464
        %v2466 = vpop.f32.mrf.mxu0
        %v2467 = vadd.f32 %v2423, %v2466
        %2468 = vmatmul.bf16.gmra.mxu0 %v790
        %v2469 = vpop.f32.mrf.mxu0
        %v2470 = vadd.f32 %v2426, %v2469
        %v2471 = vpop.f32.mrf.mxu0
        %v2472 = vadd.f32 %v2428, %v2471
        %2473 = vmatmul.bf16.gmra.mxu0 %v794
        %v2474 = vpop.f32.mrf.mxu0
        %v2475 = vadd.f32 %v2431, %v2474
        %v2476 = vpop.f32.mrf.mxu0
        %v2477 = vadd.f32 %v2433, %v2476
        %2478 = vmatmul.bf16.gmra.mxu0 %v798
        %v2479 = vpop.f32.mrf.mxu0
        %v2480 = vadd.f32 %v2436, %v2479
        %v2481 = vpop.f32.mrf.mxu0
        %v2482 = vadd.f32 %v2438, %v2481
        %2483 = vmatmul.bf16.gmra.mxu0 %v802
        %v2484 = vpop.f32.mrf.mxu0
        %v2485 = vadd.f32 %v2441, %v2484
        %v2486 = vpop.f32.mrf.mxu0
        %v2487 = vadd.f32 %v2443, %v2486
        %2488 = vmatmul.bf16.gmra.mxu0 %v806
        %v2489 = vpop.f32.mrf.mxu0
        %v2490 = vadd.f32 %v2446, %v2489
        %v2491 = vpop.f32.mrf.mxu0
        %v2492 = vadd.f32 %v2448, %v2491
        %2493 = vdwg.mxu0
        %2494 = vmatpush.bf16.msra.mxu0 %v2098
        %2495 = vmatpush.bf16.msra.mxu0 %v2090
        %2496 = vmatpush.bf16.msra.mxu0 %v2082
        %2497 = vmatpush.bf16.msra.mxu0 %v2074
        %2498 = vmatpush.bf16.msra.mxu0 %v2066
        %2499 = vmatpush.bf16.msra.mxu0 %v2058
        %2500 = vmatpush.bf16.msra.mxu0 %v2050
        %2501 = vmatpush.bf16.msra.mxu0 %v2042
        %2502 = vmatmul.bf16.gmra.mxu0 %v783
        %v2503 = vpop.f32.mrf.mxu0
        %v2504 = vadd.f32 %v2460, %v2503
        %v2505 = vpop.f32.mrf.mxu0
        %v2506 = vadd.f32 %v2462, %v2505
        %2507 = vmatmul.bf16.gmra.mxu0 %v787
        %v2508 = vpop.f32.mrf.mxu0
        %v2509 = vadd.f32 %v2465, %v2508
        %v2510 = vpop.f32.mrf.mxu0
        %v2511 = vadd.f32 %v2467, %v2510
        %2512 = vmatmul.bf16.gmra.mxu0 %v791
        %v2513 = vpop.f32.mrf.mxu0
        %v2514 = vadd.f32 %v2470, %v2513
        %v2515 = vpop.f32.mrf.mxu0
        %v2516 = vadd.f32 %v2472, %v2515
        %2517 = vmatmul.bf16.gmra.mxu0 %v795
        %v2518 = vpop.f32.mrf.mxu0
        %v2519 = vadd.f32 %v2475, %v2518
        %v2520 = vpop.f32.mrf.mxu0
        %v2521 = vadd.f32 %v2477, %v2520
        %2522 = vmatmul.bf16.gmra.mxu0 %v799
        %v2523 = vpop.f32.mrf.mxu0
        %v2524 = vadd.f32 %v2480, %v2523
        %v2525 = vpop.f32.mrf.mxu0
        %v2526 = vadd.f32 %v2482, %v2525
        %2527 = vmatmul.bf16.gmra.mxu0 %v803
        %v2528 = vpop.f32.mrf.mxu0
        %v2529 = vadd.f32 %v2485, %v2528
        %v2530 = vpop.f32.mrf.mxu0
        %v2531 = vadd.f32 %v2487, %v2530
        %2532 = vmatmul.bf16.gmra.mxu0 %v807
        %v2533 = vpop.f32.mrf.mxu0
        %v2534 = vadd.f32 %v2490, %v2533
        %v2535 = vpop.f32.mrf.mxu0
        %v2536 = vadd.f32 %v2492, %v2535
        %2537 = vdwg.mxu0
        %2538 = vmatpush.bf16.msra.mxu0 %v1907
        %2539 = vmatpush.bf16.msra.mxu0 %v1899
        %2540 = vmatpush.bf16.msra.mxu0 %v1891
        %2541 = vmatpush.bf16.msra.mxu0 %v1883
        %2542 = vmatpush.bf16.msra.mxu0 %v1875
        %2543 = vmatpush.bf16.msra.mxu0 %v1867
        %2544 = vmatpush.bf16.msra.mxu0 %v1859
        %2545 = vmatpush.bf16.msra.mxu0 %v1851
        %2546 = vmatmul.bf16.gmra.mxu0 %v780
        %v2547 = vpop.f32.mrf.mxu0
        %v2548 = vadd.f32 %v1067, %v2547
        %v2549 = vpop.f32.mrf.mxu0
        %v2550 = vadd.f32 %v1067, %v2549
        %2551 = vmatmul.bf16.gmra.mxu0 %v784
        %v2552 = vpop.f32.mrf.mxu0
        %v2553 = vadd.f32 %v1067, %v2552
        %v2554 = vpop.f32.mrf.mxu0
        %v2555 = vadd.f32 %v1067, %v2554
        %2556 = vmatmul.bf16.gmra.mxu0 %v788
        %v2557 = vpop.f32.mrf.mxu0
        %v2558 = vadd.f32 %v1067, %v2557
        %v2559 = vpop.f32.mrf.mxu0
        %v2560 = vadd.f32 %v1067, %v2559
        %2561 = vmatmul.bf16.gmra.mxu0 %v792
        %v2562 = vpop.f32.mrf.mxu0
        %v2563 = vadd.f32 %v1067, %v2562
        %v2564 = vpop.f32.mrf.mxu0
        %v2565 = vadd.f32 %v1067, %v2564
        %2566 = vmatmul.bf16.gmra.mxu0 %v796
        %v2567 = vpop.f32.mrf.mxu0
        %v2568 = vadd.f32 %v1067, %v2567
        %v2569 = vpop.f32.mrf.mxu0
        %v2570 = vadd.f32 %v1067, %v2569
        %2571 = vmatmul.bf16.gmra.mxu0 %v800
        %v2572 = vpop.f32.mrf.mxu0
        %v2573 = vadd.f32 %v1067, %v2572
        %v2574 = vpop.f32.mrf.mxu0
        %v2575 = vadd.f32 %v1067, %v2574
        %2576 = vmatmul.bf16.gmra.mxu0 %v804
        %v2577 = vpop.f32.mrf.mxu0
        %v2578 = vadd.f32 %v1067, %v2577
        %v2579 = vpop.f32.mrf.mxu0
        %v2580 = vadd.f32 %v1067, %v2579
        %2581 = vdwg.mxu0
        %2582 = vmatpush.bf16.msra.mxu0 %v1971
        %2583 = vmatpush.bf16.msra.mxu0 %v1963
        %2584 = vmatpush.bf16.msra.mxu0 %v1955
        %2585 = vmatpush.bf16.msra.mxu0 %v1947
        %2586 = vmatpush.bf16.msra.mxu0 %v1939
        %2587 = vmatpush.bf16.msra.mxu0 %v1931
        %2588 = vmatpush.bf16.msra.mxu0 %v1923
        %2589 = vmatpush.bf16.msra.mxu0 %v1915
        %2590 = vmatmul.bf16.gmra.mxu0 %v781
        %v2591 = vpop.f32.mrf.mxu0
        %v2592 = vadd.f32 %v2548, %v2591
        %v2593 = vpop.f32.mrf.mxu0
        %v2594 = vadd.f32 %v2550, %v2593
        %2595 = vmatmul.bf16.gmra.mxu0 %v785
        %v2596 = vpop.f32.mrf.mxu0
        %v2597 = vadd.f32 %v2553, %v2596
        %v2598 = vpop.f32.mrf.mxu0
        %v2599 = vadd.f32 %v2555, %v2598
        %2600 = vmatmul.bf16.gmra.mxu0 %v789
        %v2601 = vpop.f32.mrf.mxu0
        %v2602 = vadd.f32 %v2558, %v2601
        %v2603 = vpop.f32.mrf.mxu0
        %v2604 = vadd.f32 %v2560, %v2603
        %2605 = vmatmul.bf16.gmra.mxu0 %v793
        %v2606 = vpop.f32.mrf.mxu0
        %v2607 = vadd.f32 %v2563, %v2606
        %v2608 = vpop.f32.mrf.mxu0
        %v2609 = vadd.f32 %v2565, %v2608
        %2610 = vmatmul.bf16.gmra.mxu0 %v797
        %v2611 = vpop.f32.mrf.mxu0
        %v2612 = vadd.f32 %v2568, %v2611
        %v2613 = vpop.f32.mrf.mxu0
        %v2614 = vadd.f32 %v2570, %v2613
        %2615 = vmatmul.bf16.gmra.mxu0 %v801
        %v2616 = vpop.f32.mrf.mxu0
        %v2617 = vadd.f32 %v2573, %v2616
        %v2618 = vpop.f32.mrf.mxu0
        %v2619 = vadd.f32 %v2575, %v2618
        %2620 = vmatmul.bf16.gmra.mxu0 %v805
        %v2621 = vpop.f32.mrf.mxu0
        %v2622 = vadd.f32 %v2578, %v2621
        %v2623 = vpop.f32.mrf.mxu0
        %v2624 = vadd.f32 %v2580, %v2623
        %2625 = vdwg.mxu0
        %2626 = vmatpush.bf16.msra.mxu0 %v2035
        %2627 = vmatpush.bf16.msra.mxu0 %v2027
        %2628 = vmatpush.bf16.msra.mxu0 %v2019
        %2629 = vmatpush.bf16.msra.mxu0 %v2011
        %2630 = vmatpush.bf16.msra.mxu0 %v2003
        %2631 = vmatpush.bf16.msra.mxu0 %v1995
        %2632 = vmatpush.bf16.msra.mxu0 %v1987
        %2633 = vmatpush.bf16.msra.mxu0 %v1979
        %2634 = vmatmul.bf16.gmra.mxu0 %v782
        %v2635 = vpop.f32.mrf.mxu0
        %v2636 = vadd.f32 %v2592, %v2635
        %v2637 = vpop.f32.mrf.mxu0
        %v2638 = vadd.f32 %v2594, %v2637
        %2639 = vmatmul.bf16.gmra.mxu0 %v786
        %v2640 = vpop.f32.mrf.mxu0
        %v2641 = vadd.f32 %v2597, %v2640
        %v2642 = vpop.f32.mrf.mxu0
        %v2643 = vadd.f32 %v2599, %v2642
        %2644 = vmatmul.bf16.gmra.mxu0 %v790
        %v2645 = vpop.f32.mrf.mxu0
        %v2646 = vadd.f32 %v2602, %v2645
        %v2647 = vpop.f32.mrf.mxu0
        %v2648 = vadd.f32 %v2604, %v2647
        %2649 = vmatmul.bf16.gmra.mxu0 %v794
        %v2650 = vpop.f32.mrf.mxu0
        %v2651 = vadd.f32 %v2607, %v2650
        %v2652 = vpop.f32.mrf.mxu0
        %v2653 = vadd.f32 %v2609, %v2652
        %2654 = vmatmul.bf16.gmra.mxu0 %v798
        %v2655 = vpop.f32.mrf.mxu0
        %v2656 = vadd.f32 %v2612, %v2655
        %v2657 = vpop.f32.mrf.mxu0
        %v2658 = vadd.f32 %v2614, %v2657
        %2659 = vmatmul.bf16.gmra.mxu0 %v802
        %v2660 = vpop.f32.mrf.mxu0
        %v2661 = vadd.f32 %v2617, %v2660
        %v2662 = vpop.f32.mrf.mxu0
        %v2663 = vadd.f32 %v2619, %v2662
        %2664 = vmatmul.bf16.gmra.mxu0 %v806
        %v2665 = vpop.f32.mrf.mxu0
        %v2666 = vadd.f32 %v2622, %v2665
        %v2667 = vpop.f32.mrf.mxu0
        %v2668 = vadd.f32 %v2624, %v2667
        %2669 = vdwg.mxu0
        %2670 = vmatpush.bf16.msra.mxu0 %v2099
        %2671 = vmatpush.bf16.msra.mxu0 %v2091
        %2672 = vmatpush.bf16.msra.mxu0 %v2083
        %2673 = vmatpush.bf16.msra.mxu0 %v2075
        %2674 = vmatpush.bf16.msra.mxu0 %v2067
        %2675 = vmatpush.bf16.msra.mxu0 %v2059
        %2676 = vmatpush.bf16.msra.mxu0 %v2051
        %2677 = vmatpush.bf16.msra.mxu0 %v2043
        %2678 = vmatmul.bf16.gmra.mxu0 %v783
        %v2679 = vpop.f32.mrf.mxu0
        %v2680 = vadd.f32 %v2636, %v2679
        %v2681 = vpop.f32.mrf.mxu0
        %v2682 = vadd.f32 %v2638, %v2681
        %2683 = vmatmul.bf16.gmra.mxu0 %v787
        %v2684 = vpop.f32.mrf.mxu0
        %v2685 = vadd.f32 %v2641, %v2684
        %v2686 = vpop.f32.mrf.mxu0
        %v2687 = vadd.f32 %v2643, %v2686
        %2688 = vmatmul.bf16.gmra.mxu0 %v791
        %v2689 = vpop.f32.mrf.mxu0
        %v2690 = vadd.f32 %v2646, %v2689
        %v2691 = vpop.f32.mrf.mxu0
        %v2692 = vadd.f32 %v2648, %v2691
        %2693 = vmatmul.bf16.gmra.mxu0 %v795
        %v2694 = vpop.f32.mrf.mxu0
        %v2695 = vadd.f32 %v2651, %v2694
        %v2696 = vpop.f32.mrf.mxu0
        %v2697 = vadd.f32 %v2653, %v2696
        %2698 = vmatmul.bf16.gmra.mxu0 %v799
        %v2699 = vpop.f32.mrf.mxu0
        %v2700 = vadd.f32 %v2656, %v2699
        %v2701 = vpop.f32.mrf.mxu0
        %v2702 = vadd.f32 %v2658, %v2701
        %2703 = vmatmul.bf16.gmra.mxu0 %v803
        %v2704 = vpop.f32.mrf.mxu0
        %v2705 = vadd.f32 %v2661, %v2704
        %v2706 = vpop.f32.mrf.mxu0
        %v2707 = vadd.f32 %v2663, %v2706
        %2708 = vmatmul.bf16.gmra.mxu0 %v807
        %v2709 = vpop.f32.mrf.mxu0
        %v2710 = vadd.f32 %v2666, %v2709
        %v2711 = vpop.f32.mrf.mxu0
        %v2712 = vadd.f32 %v2668, %v2711
        %2713 = vdwg.mxu0
        %2714 = vmatpush.bf16.msra.mxu0 %v1908
        %2715 = vmatpush.bf16.msra.mxu0 %v1900
        %2716 = vmatpush.bf16.msra.mxu0 %v1892
        %2717 = vmatpush.bf16.msra.mxu0 %v1884
        %2718 = vmatpush.bf16.msra.mxu0 %v1876
        %2719 = vmatpush.bf16.msra.mxu0 %v1868
        %2720 = vmatpush.bf16.msra.mxu0 %v1860
        %2721 = vmatpush.bf16.msra.mxu0 %v1852
        %2722 = vmatmul.bf16.gmra.mxu0 %v780
        %v2723 = vpop.f32.mrf.mxu0
        %v2724 = vadd.f32 %v1068, %v2723
        %v2725 = vpop.f32.mrf.mxu0
        %v2726 = vadd.f32 %v1068, %v2725
        %2727 = vmatmul.bf16.gmra.mxu0 %v784
        %v2728 = vpop.f32.mrf.mxu0
        %v2729 = vadd.f32 %v1068, %v2728
        %v2730 = vpop.f32.mrf.mxu0
        %v2731 = vadd.f32 %v1068, %v2730
        %2732 = vmatmul.bf16.gmra.mxu0 %v788
        %v2733 = vpop.f32.mrf.mxu0
        %v2734 = vadd.f32 %v1068, %v2733
        %v2735 = vpop.f32.mrf.mxu0
        %v2736 = vadd.f32 %v1068, %v2735
        %2737 = vmatmul.bf16.gmra.mxu0 %v792
        %v2738 = vpop.f32.mrf.mxu0
        %v2739 = vadd.f32 %v1068, %v2738
        %v2740 = vpop.f32.mrf.mxu0
        %v2741 = vadd.f32 %v1068, %v2740
        %2742 = vmatmul.bf16.gmra.mxu0 %v796
        %v2743 = vpop.f32.mrf.mxu0
        %v2744 = vadd.f32 %v1068, %v2743
        %v2745 = vpop.f32.mrf.mxu0
        %v2746 = vadd.f32 %v1068, %v2745
        %2747 = vmatmul.bf16.gmra.mxu0 %v800
        %v2748 = vpop.f32.mrf.mxu0
        %v2749 = vadd.f32 %v1068, %v2748
        %v2750 = vpop.f32.mrf.mxu0
        %v2751 = vadd.f32 %v1068, %v2750
        %2752 = vmatmul.bf16.gmra.mxu0 %v804
        %v2753 = vpop.f32.mrf.mxu0
        %v2754 = vadd.f32 %v1068, %v2753
        %v2755 = vpop.f32.mrf.mxu0
        %v2756 = vadd.f32 %v1068, %v2755
        %2757 = vdwg.mxu0
        %2758 = vmatpush.bf16.msra.mxu0 %v1972
        %2759 = vmatpush.bf16.msra.mxu0 %v1964
        %2760 = vmatpush.bf16.msra.mxu0 %v1956
        %2761 = vmatpush.bf16.msra.mxu0 %v1948
        %2762 = vmatpush.bf16.msra.mxu0 %v1940
        %2763 = vmatpush.bf16.msra.mxu0 %v1932
        %2764 = vmatpush.bf16.msra.mxu0 %v1924
        %2765 = vmatpush.bf16.msra.mxu0 %v1916
        %2766 = vmatmul.bf16.gmra.mxu0 %v781
        %v2767 = vpop.f32.mrf.mxu0
        %v2768 = vadd.f32 %v2724, %v2767
        %v2769 = vpop.f32.mrf.mxu0
        %v2770 = vadd.f32 %v2726, %v2769
        %2771 = vmatmul.bf16.gmra.mxu0 %v785
        %v2772 = vpop.f32.mrf.mxu0
        %v2773 = vadd.f32 %v2729, %v2772
        %v2774 = vpop.f32.mrf.mxu0
        %v2775 = vadd.f32 %v2731, %v2774
        %2776 = vmatmul.bf16.gmra.mxu0 %v789
        %v2777 = vpop.f32.mrf.mxu0
        %v2778 = vadd.f32 %v2734, %v2777
        %v2779 = vpop.f32.mrf.mxu0
        %v2780 = vadd.f32 %v2736, %v2779
        %2781 = vmatmul.bf16.gmra.mxu0 %v793
        %v2782 = vpop.f32.mrf.mxu0
        %v2783 = vadd.f32 %v2739, %v2782
        %v2784 = vpop.f32.mrf.mxu0
        %v2785 = vadd.f32 %v2741, %v2784
        %2786 = vmatmul.bf16.gmra.mxu0 %v797
        %v2787 = vpop.f32.mrf.mxu0
        %v2788 = vadd.f32 %v2744, %v2787
        %v2789 = vpop.f32.mrf.mxu0
        %v2790 = vadd.f32 %v2746, %v2789
        %2791 = vmatmul.bf16.gmra.mxu0 %v801
        %v2792 = vpop.f32.mrf.mxu0
        %v2793 = vadd.f32 %v2749, %v2792
        %v2794 = vpop.f32.mrf.mxu0
        %v2795 = vadd.f32 %v2751, %v2794
        %2796 = vmatmul.bf16.gmra.mxu0 %v805
        %v2797 = vpop.f32.mrf.mxu0
        %v2798 = vadd.f32 %v2754, %v2797
        %v2799 = vpop.f32.mrf.mxu0
        %v2800 = vadd.f32 %v2756, %v2799
        %2801 = vdwg.mxu0
        %2802 = vmatpush.bf16.msra.mxu0 %v2036
        %2803 = vmatpush.bf16.msra.mxu0 %v2028
        %2804 = vmatpush.bf16.msra.mxu0 %v2020
        %2805 = vmatpush.bf16.msra.mxu0 %v2012
        %2806 = vmatpush.bf16.msra.mxu0 %v2004
        %2807 = vmatpush.bf16.msra.mxu0 %v1996
        %2808 = vmatpush.bf16.msra.mxu0 %v1988
        %2809 = vmatpush.bf16.msra.mxu0 %v1980
        %2810 = vmatmul.bf16.gmra.mxu0 %v782
        %v2811 = vpop.f32.mrf.mxu0
        %v2812 = vadd.f32 %v2768, %v2811
        %v2813 = vpop.f32.mrf.mxu0
        %v2814 = vadd.f32 %v2770, %v2813
        %2815 = vmatmul.bf16.gmra.mxu0 %v786
        %v2816 = vpop.f32.mrf.mxu0
        %v2817 = vadd.f32 %v2773, %v2816
        %v2818 = vpop.f32.mrf.mxu0
        %v2819 = vadd.f32 %v2775, %v2818
        %2820 = vmatmul.bf16.gmra.mxu0 %v790
        %v2821 = vpop.f32.mrf.mxu0
        %v2822 = vadd.f32 %v2778, %v2821
        %v2823 = vpop.f32.mrf.mxu0
        %v2824 = vadd.f32 %v2780, %v2823
        %2825 = vmatmul.bf16.gmra.mxu0 %v794
        %v2826 = vpop.f32.mrf.mxu0
        %v2827 = vadd.f32 %v2783, %v2826
        %v2828 = vpop.f32.mrf.mxu0
        %v2829 = vadd.f32 %v2785, %v2828
        %2830 = vmatmul.bf16.gmra.mxu0 %v798
        %v2831 = vpop.f32.mrf.mxu0
        %v2832 = vadd.f32 %v2788, %v2831
        %v2833 = vpop.f32.mrf.mxu0
        %v2834 = vadd.f32 %v2790, %v2833
        %2835 = vmatmul.bf16.gmra.mxu0 %v802
        %v2836 = vpop.f32.mrf.mxu0
        %v2837 = vadd.f32 %v2793, %v2836
        %v2838 = vpop.f32.mrf.mxu0
        %v2839 = vadd.f32 %v2795, %v2838
        %2840 = vmatmul.bf16.gmra.mxu0 %v806
        %v2841 = vpop.f32.mrf.mxu0
        %v2842 = vadd.f32 %v2798, %v2841
        %v2843 = vpop.f32.mrf.mxu0
        %v2844 = vadd.f32 %v2800, %v2843
        %2845 = vdwg.mxu0
        %2846 = vmatpush.bf16.msra.mxu0 %v2100
        %2847 = vmatpush.bf16.msra.mxu0 %v2092
        %2848 = vmatpush.bf16.msra.mxu0 %v2084
        %2849 = vmatpush.bf16.msra.mxu0 %v2076
        %2850 = vmatpush.bf16.msra.mxu0 %v2068
        %2851 = vmatpush.bf16.msra.mxu0 %v2060
        %2852 = vmatpush.bf16.msra.mxu0 %v2052
        %2853 = vmatpush.bf16.msra.mxu0 %v2044
        %2854 = vmatmul.bf16.gmra.mxu0 %v783
        %v2855 = vpop.f32.mrf.mxu0
        %v2856 = vadd.f32 %v2812, %v2855
        %v2857 = vpop.f32.mrf.mxu0
        %v2858 = vadd.f32 %v2814, %v2857
        %2859 = vmatmul.bf16.gmra.mxu0 %v787
        %v2860 = vpop.f32.mrf.mxu0
        %v2861 = vadd.f32 %v2817, %v2860
        %v2862 = vpop.f32.mrf.mxu0
        %v2863 = vadd.f32 %v2819, %v2862
        %2864 = vmatmul.bf16.gmra.mxu0 %v791
        %v2865 = vpop.f32.mrf.mxu0
        %v2866 = vadd.f32 %v2822, %v2865
        %v2867 = vpop.f32.mrf.mxu0
        %v2868 = vadd.f32 %v2824, %v2867
        %2869 = vmatmul.bf16.gmra.mxu0 %v795
        %v2870 = vpop.f32.mrf.mxu0
        %v2871 = vadd.f32 %v2827, %v2870
        %v2872 = vpop.f32.mrf.mxu0
        %v2873 = vadd.f32 %v2829, %v2872
        %2874 = vmatmul.bf16.gmra.mxu0 %v799
        %v2875 = vpop.f32.mrf.mxu0
        %v2876 = vadd.f32 %v2832, %v2875
        %v2877 = vpop.f32.mrf.mxu0
        %v2878 = vadd.f32 %v2834, %v2877
        %2879 = vmatmul.bf16.gmra.mxu0 %v803
        %v2880 = vpop.f32.mrf.mxu0
        %v2881 = vadd.f32 %v2837, %v2880
        %v2882 = vpop.f32.mrf.mxu0
        %v2883 = vadd.f32 %v2839, %v2882
        %2884 = vmatmul.bf16.gmra.mxu0 %v807
        %v2885 = vpop.f32.mrf.mxu0
        %v2886 = vadd.f32 %v2842, %v2885
        %v2887 = vpop.f32.mrf.mxu0
        %v2888 = vadd.f32 %v2844, %v2887
        %2889 = vdwg.mxu0
        %2890 = vmatpush.bf16.msra.mxu0 %v1909
        %2891 = vmatpush.bf16.msra.mxu0 %v1901
        %2892 = vmatpush.bf16.msra.mxu0 %v1893
        %2893 = vmatpush.bf16.msra.mxu0 %v1885
        %2894 = vmatpush.bf16.msra.mxu0 %v1877
        %2895 = vmatpush.bf16.msra.mxu0 %v1869
        %2896 = vmatpush.bf16.msra.mxu0 %v1861
        %2897 = vmatpush.bf16.msra.mxu0 %v1853
        %2898 = vmatmul.bf16.gmra.mxu0 %v780
        %v2899 = vpop.f32.mrf.mxu0
        %v2900 = vadd.f32 %v1069, %v2899
        %v2901 = vpop.f32.mrf.mxu0
        %v2902 = vadd.f32 %v1069, %v2901
        %2903 = vmatmul.bf16.gmra.mxu0 %v784
        %v2904 = vpop.f32.mrf.mxu0
        %v2905 = vadd.f32 %v1069, %v2904
        %v2906 = vpop.f32.mrf.mxu0
        %v2907 = vadd.f32 %v1069, %v2906
        %2908 = vmatmul.bf16.gmra.mxu0 %v788
        %v2909 = vpop.f32.mrf.mxu0
        %v2910 = vadd.f32 %v1069, %v2909
        %v2911 = vpop.f32.mrf.mxu0
        %v2912 = vadd.f32 %v1069, %v2911
        %2913 = vmatmul.bf16.gmra.mxu0 %v792
        %v2914 = vpop.f32.mrf.mxu0
        %v2915 = vadd.f32 %v1069, %v2914
        %v2916 = vpop.f32.mrf.mxu0
        %v2917 = vadd.f32 %v1069, %v2916
        %2918 = vmatmul.bf16.gmra.mxu0 %v796
        %v2919 = vpop.f32.mrf.mxu0
        %v2920 = vadd.f32 %v1069, %v2919
        %v2921 = vpop.f32.mrf.mxu0
        %v2922 = vadd.f32 %v1069, %v2921
        %2923 = vmatmul.bf16.gmra.mxu0 %v800
        %v2924 = vpop.f32.mrf.mxu0
        %v2925 = vadd.f32 %v1069, %v2924
        %v2926 = vpop.f32.mrf.mxu0
        %v2927 = vadd.f32 %v1069, %v2926
        %2928 = vmatmul.bf16.gmra.mxu0 %v804
        %v2929 = vpop.f32.mrf.mxu0
        %v2930 = vadd.f32 %v1069, %v2929
        %v2931 = vpop.f32.mrf.mxu0
        %v2932 = vadd.f32 %v1069, %v2931
        %2933 = vdwg.mxu0
        %2934 = vmatpush.bf16.msra.mxu0 %v1973
        %2935 = vmatpush.bf16.msra.mxu0 %v1965
        %2936 = vmatpush.bf16.msra.mxu0 %v1957
        %2937 = vmatpush.bf16.msra.mxu0 %v1949
        %2938 = vmatpush.bf16.msra.mxu0 %v1941
        %2939 = vmatpush.bf16.msra.mxu0 %v1933
        %2940 = vmatpush.bf16.msra.mxu0 %v1925
        %2941 = vmatpush.bf16.msra.mxu0 %v1917
        %2942 = vmatmul.bf16.gmra.mxu0 %v781
        %v2943 = vpop.f32.mrf.mxu0
        %v2944 = vadd.f32 %v2900, %v2943
        %v2945 = vpop.f32.mrf.mxu0
        %v2946 = vadd.f32 %v2902, %v2945
        %2947 = vmatmul.bf16.gmra.mxu0 %v785
        %v2948 = vpop.f32.mrf.mxu0
        %v2949 = vadd.f32 %v2905, %v2948
        %v2950 = vpop.f32.mrf.mxu0
        %v2951 = vadd.f32 %v2907, %v2950
        %2952 = vmatmul.bf16.gmra.mxu0 %v789
        %v2953 = vpop.f32.mrf.mxu0
        %v2954 = vadd.f32 %v2910, %v2953
        %v2955 = vpop.f32.mrf.mxu0
        %v2956 = vadd.f32 %v2912, %v2955
        %2957 = vmatmul.bf16.gmra.mxu0 %v793
        %v2958 = vpop.f32.mrf.mxu0
        %v2959 = vadd.f32 %v2915, %v2958
        %v2960 = vpop.f32.mrf.mxu0
        %v2961 = vadd.f32 %v2917, %v2960
        %2962 = vmatmul.bf16.gmra.mxu0 %v797
        %v2963 = vpop.f32.mrf.mxu0
        %v2964 = vadd.f32 %v2920, %v2963
        %v2965 = vpop.f32.mrf.mxu0
        %v2966 = vadd.f32 %v2922, %v2965
        %2967 = vmatmul.bf16.gmra.mxu0 %v801
        %v2968 = vpop.f32.mrf.mxu0
        %v2969 = vadd.f32 %v2925, %v2968
        %v2970 = vpop.f32.mrf.mxu0
        %v2971 = vadd.f32 %v2927, %v2970
        %2972 = vmatmul.bf16.gmra.mxu0 %v805
        %v2973 = vpop.f32.mrf.mxu0
        %v2974 = vadd.f32 %v2930, %v2973
        %v2975 = vpop.f32.mrf.mxu0
        %v2976 = vadd.f32 %v2932, %v2975
        %2977 = vdwg.mxu0
        %2978 = vmatpush.bf16.msra.mxu0 %v2037
        %2979 = vmatpush.bf16.msra.mxu0 %v2029
        %2980 = vmatpush.bf16.msra.mxu0 %v2021
        %2981 = vmatpush.bf16.msra.mxu0 %v2013
        %2982 = vmatpush.bf16.msra.mxu0 %v2005
        %2983 = vmatpush.bf16.msra.mxu0 %v1997
        %2984 = vmatpush.bf16.msra.mxu0 %v1989
        %2985 = vmatpush.bf16.msra.mxu0 %v1981
        %2986 = vmatmul.bf16.gmra.mxu0 %v782
        %v2987 = vpop.f32.mrf.mxu0
        %v2988 = vadd.f32 %v2944, %v2987
        %v2989 = vpop.f32.mrf.mxu0
        %v2990 = vadd.f32 %v2946, %v2989
        %2991 = vmatmul.bf16.gmra.mxu0 %v786
        %v2992 = vpop.f32.mrf.mxu0
        %v2993 = vadd.f32 %v2949, %v2992
        %v2994 = vpop.f32.mrf.mxu0
        %v2995 = vadd.f32 %v2951, %v2994
        %2996 = vmatmul.bf16.gmra.mxu0 %v790
        %v2997 = vpop.f32.mrf.mxu0
        %v2998 = vadd.f32 %v2954, %v2997
        %v2999 = vpop.f32.mrf.mxu0
        %v3000 = vadd.f32 %v2956, %v2999
        %3001 = vmatmul.bf16.gmra.mxu0 %v794
        %v3002 = vpop.f32.mrf.mxu0
        %v3003 = vadd.f32 %v2959, %v3002
        %v3004 = vpop.f32.mrf.mxu0
        %v3005 = vadd.f32 %v2961, %v3004
        %3006 = vmatmul.bf16.gmra.mxu0 %v798
        %v3007 = vpop.f32.mrf.mxu0
        %v3008 = vadd.f32 %v2964, %v3007
        %v3009 = vpop.f32.mrf.mxu0
        %v3010 = vadd.f32 %v2966, %v3009
        %3011 = vmatmul.bf16.gmra.mxu0 %v802
        %v3012 = vpop.f32.mrf.mxu0
        %v3013 = vadd.f32 %v2969, %v3012
        %v3014 = vpop.f32.mrf.mxu0
        %v3015 = vadd.f32 %v2971, %v3014
        %3016 = vmatmul.bf16.gmra.mxu0 %v806
        %v3017 = vpop.f32.mrf.mxu0
        %v3018 = vadd.f32 %v2974, %v3017
        %v3019 = vpop.f32.mrf.mxu0
        %v3020 = vadd.f32 %v2976, %v3019
        %3021 = vdwg.mxu0
        %3022 = vmatpush.bf16.msra.mxu0 %v2101
        %3023 = vmatpush.bf16.msra.mxu0 %v2093
        %3024 = vmatpush.bf16.msra.mxu0 %v2085
        %3025 = vmatpush.bf16.msra.mxu0 %v2077
        %3026 = vmatpush.bf16.msra.mxu0 %v2069
        %3027 = vmatpush.bf16.msra.mxu0 %v2061
        %3028 = vmatpush.bf16.msra.mxu0 %v2053
        %3029 = vmatpush.bf16.msra.mxu0 %v2045
        %3030 = vmatmul.bf16.gmra.mxu0 %v783
        %v3031 = vpop.f32.mrf.mxu0
        %v3032 = vadd.f32 %v2988, %v3031
        %v3033 = vpop.f32.mrf.mxu0
        %v3034 = vadd.f32 %v2990, %v3033
        %3035 = vmatmul.bf16.gmra.mxu0 %v787
        %v3036 = vpop.f32.mrf.mxu0
        %v3037 = vadd.f32 %v2993, %v3036
        %v3038 = vpop.f32.mrf.mxu0
        %v3039 = vadd.f32 %v2995, %v3038
        %3040 = vmatmul.bf16.gmra.mxu0 %v791
        %v3041 = vpop.f32.mrf.mxu0
        %v3042 = vadd.f32 %v2998, %v3041
        %v3043 = vpop.f32.mrf.mxu0
        %v3044 = vadd.f32 %v3000, %v3043
        %3045 = vmatmul.bf16.gmra.mxu0 %v795
        %v3046 = vpop.f32.mrf.mxu0
        %v3047 = vadd.f32 %v3003, %v3046
        %v3048 = vpop.f32.mrf.mxu0
        %v3049 = vadd.f32 %v3005, %v3048
        %3050 = vmatmul.bf16.gmra.mxu0 %v799
        %v3051 = vpop.f32.mrf.mxu0
        %v3052 = vadd.f32 %v3008, %v3051
        %v3053 = vpop.f32.mrf.mxu0
        %v3054 = vadd.f32 %v3010, %v3053
        %3055 = vmatmul.bf16.gmra.mxu0 %v803
        %v3056 = vpop.f32.mrf.mxu0
        %v3057 = vadd.f32 %v3013, %v3056
        %v3058 = vpop.f32.mrf.mxu0
        %v3059 = vadd.f32 %v3015, %v3058
        %3060 = vmatmul.bf16.gmra.mxu0 %v807
        %v3061 = vpop.f32.mrf.mxu0
        %v3062 = vadd.f32 %v3018, %v3061
        %v3063 = vpop.f32.mrf.mxu0
        %v3064 = vadd.f32 %v3020, %v3063
        %3065 = vdwg.mxu0
        %3066 = vmatpush.bf16.msra.mxu0 %v1910
        %3067 = vmatpush.bf16.msra.mxu0 %v1902
        %3068 = vmatpush.bf16.msra.mxu0 %v1894
        %3069 = vmatpush.bf16.msra.mxu0 %v1886
        %3070 = vmatpush.bf16.msra.mxu0 %v1878
        %3071 = vmatpush.bf16.msra.mxu0 %v1870
        %3072 = vmatpush.bf16.msra.mxu0 %v1862
        %3073 = vmatpush.bf16.msra.mxu0 %v1854
        %3074 = vmatmul.bf16.gmra.mxu0 %v780
        %v3075 = vpop.f32.mrf.mxu0
        %v3076 = vadd.f32 %v1070, %v3075
        %v3077 = vpop.f32.mrf.mxu0
        %v3078 = vadd.f32 %v1070, %v3077
        %3079 = vmatmul.bf16.gmra.mxu0 %v784
        %v3080 = vpop.f32.mrf.mxu0
        %v3081 = vadd.f32 %v1070, %v3080
        %v3082 = vpop.f32.mrf.mxu0
        %v3083 = vadd.f32 %v1070, %v3082
        %3084 = vmatmul.bf16.gmra.mxu0 %v788
        %v3085 = vpop.f32.mrf.mxu0
        %v3086 = vadd.f32 %v1070, %v3085
        %v3087 = vpop.f32.mrf.mxu0
        %v3088 = vadd.f32 %v1070, %v3087
        %3089 = vmatmul.bf16.gmra.mxu0 %v792
        %v3090 = vpop.f32.mrf.mxu0
        %v3091 = vadd.f32 %v1070, %v3090
        %v3092 = vpop.f32.mrf.mxu0
        %v3093 = vadd.f32 %v1070, %v3092
        %3094 = vmatmul.bf16.gmra.mxu0 %v796
        %v3095 = vpop.f32.mrf.mxu0
        %v3096 = vadd.f32 %v1070, %v3095
        %v3097 = vpop.f32.mrf.mxu0
        %v3098 = vadd.f32 %v1070, %v3097
        %3099 = vmatmul.bf16.gmra.mxu0 %v800
        %v3100 = vpop.f32.mrf.mxu0
        %v3101 = vadd.f32 %v1070, %v3100
        %v3102 = vpop.f32.mrf.mxu0
        %v3103 = vadd.f32 %v1070, %v3102
        %3104 = vmatmul.bf16.gmra.mxu0 %v804
        %v3105 = vpop.f32.mrf.mxu0
        %v3106 = vadd.f32 %v1070, %v3105
        %v3107 = vpop.f32.mrf.mxu0
        %v3108 = vadd.f32 %v1070, %v3107
        %3109 = vdwg.mxu0
        %3110 = vmatpush.bf16.msra.mxu0 %v1974
        %3111 = vmatpush.bf16.msra.mxu0 %v1966
        %3112 = vmatpush.bf16.msra.mxu0 %v1958
        %3113 = vmatpush.bf16.msra.mxu0 %v1950
        %3114 = vmatpush.bf16.msra.mxu0 %v1942
        %3115 = vmatpush.bf16.msra.mxu0 %v1934
        %3116 = vmatpush.bf16.msra.mxu0 %v1926
        %3117 = vmatpush.bf16.msra.mxu0 %v1918
        %3118 = vmatmul.bf16.gmra.mxu0 %v781
        %v3119 = vpop.f32.mrf.mxu0
        %v3120 = vadd.f32 %v3076, %v3119
        %v3121 = vpop.f32.mrf.mxu0
        %v3122 = vadd.f32 %v3078, %v3121
        %3123 = vmatmul.bf16.gmra.mxu0 %v785
        %v3124 = vpop.f32.mrf.mxu0
        %v3125 = vadd.f32 %v3081, %v3124
        %v3126 = vpop.f32.mrf.mxu0
        %v3127 = vadd.f32 %v3083, %v3126
        %3128 = vmatmul.bf16.gmra.mxu0 %v789
        %v3129 = vpop.f32.mrf.mxu0
        %v3130 = vadd.f32 %v3086, %v3129
        %v3131 = vpop.f32.mrf.mxu0
        %v3132 = vadd.f32 %v3088, %v3131
        %3133 = vmatmul.bf16.gmra.mxu0 %v793
        %v3134 = vpop.f32.mrf.mxu0
        %v3135 = vadd.f32 %v3091, %v3134
        %v3136 = vpop.f32.mrf.mxu0
        %v3137 = vadd.f32 %v3093, %v3136
        %3138 = vmatmul.bf16.gmra.mxu0 %v797
        %v3139 = vpop.f32.mrf.mxu0
        %v3140 = vadd.f32 %v3096, %v3139
        %v3141 = vpop.f32.mrf.mxu0
        %v3142 = vadd.f32 %v3098, %v3141
        %3143 = vmatmul.bf16.gmra.mxu0 %v801
        %v3144 = vpop.f32.mrf.mxu0
        %v3145 = vadd.f32 %v3101, %v3144
        %v3146 = vpop.f32.mrf.mxu0
        %v3147 = vadd.f32 %v3103, %v3146
        %3148 = vmatmul.bf16.gmra.mxu0 %v805
        %v3149 = vpop.f32.mrf.mxu0
        %v3150 = vadd.f32 %v3106, %v3149
        %v3151 = vpop.f32.mrf.mxu0
        %v3152 = vadd.f32 %v3108, %v3151
        %3153 = vdwg.mxu0
        %3154 = vmatpush.bf16.msra.mxu0 %v2038
        %3155 = vmatpush.bf16.msra.mxu0 %v2030
        %3156 = vmatpush.bf16.msra.mxu0 %v2022
        %3157 = vmatpush.bf16.msra.mxu0 %v2014
        %3158 = vmatpush.bf16.msra.mxu0 %v2006
        %3159 = vmatpush.bf16.msra.mxu0 %v1998
        %3160 = vmatpush.bf16.msra.mxu0 %v1990
        %3161 = vmatpush.bf16.msra.mxu0 %v1982
        %3162 = vmatmul.bf16.gmra.mxu0 %v782
        %v3163 = vpop.f32.mrf.mxu0
        %v3164 = vadd.f32 %v3120, %v3163
        %v3165 = vpop.f32.mrf.mxu0
        %v3166 = vadd.f32 %v3122, %v3165
        %3167 = vmatmul.bf16.gmra.mxu0 %v786
        %v3168 = vpop.f32.mrf.mxu0
        %v3169 = vadd.f32 %v3125, %v3168
        %v3170 = vpop.f32.mrf.mxu0
        %v3171 = vadd.f32 %v3127, %v3170
        %3172 = vmatmul.bf16.gmra.mxu0 %v790
        %v3173 = vpop.f32.mrf.mxu0
        %v3174 = vadd.f32 %v3130, %v3173
        %v3175 = vpop.f32.mrf.mxu0
        %v3176 = vadd.f32 %v3132, %v3175
        %3177 = vmatmul.bf16.gmra.mxu0 %v794
        %v3178 = vpop.f32.mrf.mxu0
        %v3179 = vadd.f32 %v3135, %v3178
        %v3180 = vpop.f32.mrf.mxu0
        %v3181 = vadd.f32 %v3137, %v3180
        %3182 = vmatmul.bf16.gmra.mxu0 %v798
        %v3183 = vpop.f32.mrf.mxu0
        %v3184 = vadd.f32 %v3140, %v3183
        %v3185 = vpop.f32.mrf.mxu0
        %v3186 = vadd.f32 %v3142, %v3185
        %3187 = vmatmul.bf16.gmra.mxu0 %v802
        %v3188 = vpop.f32.mrf.mxu0
        %v3189 = vadd.f32 %v3145, %v3188
        %v3190 = vpop.f32.mrf.mxu0
        %v3191 = vadd.f32 %v3147, %v3190
        %3192 = vmatmul.bf16.gmra.mxu0 %v806
        %v3193 = vpop.f32.mrf.mxu0
        %v3194 = vadd.f32 %v3150, %v3193
        %v3195 = vpop.f32.mrf.mxu0
        %v3196 = vadd.f32 %v3152, %v3195
        %3197 = vdwg.mxu0
        %3198 = vmatpush.bf16.msra.mxu0 %v2102
        %3199 = vmatpush.bf16.msra.mxu0 %v2094
        %3200 = vmatpush.bf16.msra.mxu0 %v2086
        %3201 = vmatpush.bf16.msra.mxu0 %v2078
        %3202 = vmatpush.bf16.msra.mxu0 %v2070
        %3203 = vmatpush.bf16.msra.mxu0 %v2062
        %3204 = vmatpush.bf16.msra.mxu0 %v2054
        %3205 = vmatpush.bf16.msra.mxu0 %v2046
        %3206 = vmatmul.bf16.gmra.mxu0 %v783
        %v3207 = vpop.f32.mrf.mxu0
        %v3208 = vadd.f32 %v3164, %v3207
        %v3209 = vpop.f32.mrf.mxu0
        %v3210 = vadd.f32 %v3166, %v3209
        %3211 = vmatmul.bf16.gmra.mxu0 %v787
        %v3212 = vpop.f32.mrf.mxu0
        %v3213 = vadd.f32 %v3169, %v3212
        %v3214 = vpop.f32.mrf.mxu0
        %v3215 = vadd.f32 %v3171, %v3214
        %3216 = vmatmul.bf16.gmra.mxu0 %v791
        %v3217 = vpop.f32.mrf.mxu0
        %v3218 = vadd.f32 %v3174, %v3217
        %v3219 = vpop.f32.mrf.mxu0
        %v3220 = vadd.f32 %v3176, %v3219
        %3221 = vmatmul.bf16.gmra.mxu0 %v795
        %v3222 = vpop.f32.mrf.mxu0
        %v3223 = vadd.f32 %v3179, %v3222
        %v3224 = vpop.f32.mrf.mxu0
        %v3225 = vadd.f32 %v3181, %v3224
        %3226 = vmatmul.bf16.gmra.mxu0 %v799
        %v3227 = vpop.f32.mrf.mxu0
        %v3228 = vadd.f32 %v3184, %v3227
        %v3229 = vpop.f32.mrf.mxu0
        %v3230 = vadd.f32 %v3186, %v3229
        %3231 = vmatmul.bf16.gmra.mxu0 %v803
        %v3232 = vpop.f32.mrf.mxu0
        %v3233 = vadd.f32 %v3189, %v3232
        %v3234 = vpop.f32.mrf.mxu0
        %v3235 = vadd.f32 %v3191, %v3234
        %3236 = vmatmul.bf16.gmra.mxu0 %v807
        %v3237 = vpop.f32.mrf.mxu0
        %v3238 = vadd.f32 %v3194, %v3237
        %v3239 = vpop.f32.mrf.mxu0
        %v3240 = vadd.f32 %v3196, %v3239
        %3241 = vdwg.mxu0
        %3242 = vmatpush.bf16.msra.mxu0 %v1911
        %3243 = vmatpush.bf16.msra.mxu0 %v1903
        %3244 = vmatpush.bf16.msra.mxu0 %v1895
        %3245 = vmatpush.bf16.msra.mxu0 %v1887
        %3246 = vmatpush.bf16.msra.mxu0 %v1879
        %3247 = vmatpush.bf16.msra.mxu0 %v1871
        %3248 = vmatpush.bf16.msra.mxu0 %v1863
        %3249 = vmatpush.bf16.msra.mxu0 %v1855
        %3250 = vmatmul.bf16.gmra.mxu0 %v780
        %v3251 = vpop.f32.mrf.mxu0
        %v3252 = vadd.f32 %v1071, %v3251
        %v3253 = vpop.f32.mrf.mxu0
        %v3254 = vadd.f32 %v1071, %v3253
        %3255 = vmatmul.bf16.gmra.mxu0 %v784
        %v3256 = vpop.f32.mrf.mxu0
        %v3257 = vadd.f32 %v1071, %v3256
        %v3258 = vpop.f32.mrf.mxu0
        %v3259 = vadd.f32 %v1071, %v3258
        %3260 = vmatmul.bf16.gmra.mxu0 %v788
        %v3261 = vpop.f32.mrf.mxu0
        %v3262 = vadd.f32 %v1071, %v3261
        %v3263 = vpop.f32.mrf.mxu0
        %v3264 = vadd.f32 %v1071, %v3263
        %3265 = vmatmul.bf16.gmra.mxu0 %v792
        %v3266 = vpop.f32.mrf.mxu0
        %v3267 = vadd.f32 %v1071, %v3266
        %v3268 = vpop.f32.mrf.mxu0
        %v3269 = vadd.f32 %v1071, %v3268
        %3270 = vmatmul.bf16.gmra.mxu0 %v796
        %v3271 = vpop.f32.mrf.mxu0
        %v3272 = vadd.f32 %v1071, %v3271
        %v3273 = vpop.f32.mrf.mxu0
        %v3274 = vadd.f32 %v1071, %v3273
        %3275 = vmatmul.bf16.gmra.mxu0 %v800
        %v3276 = vpop.f32.mrf.mxu0
        %v3277 = vadd.f32 %v1071, %v3276
        %v3278 = vpop.f32.mrf.mxu0
        %v3279 = vadd.f32 %v1071, %v3278
        %3280 = vmatmul.bf16.gmra.mxu0 %v804
        %v3281 = vpop.f32.mrf.mxu0
        %v3282 = vadd.f32 %v1071, %v3281
        %v3283 = vpop.f32.mrf.mxu0
        %v3284 = vadd.f32 %v1071, %v3283
        %3285 = vdwg.mxu0
        %3286 = vmatpush.bf16.msra.mxu0 %v1975
        %3287 = vmatpush.bf16.msra.mxu0 %v1967
        %3288 = vmatpush.bf16.msra.mxu0 %v1959
        %3289 = vmatpush.bf16.msra.mxu0 %v1951
        %3290 = vmatpush.bf16.msra.mxu0 %v1943
        %3291 = vmatpush.bf16.msra.mxu0 %v1935
        %3292 = vmatpush.bf16.msra.mxu0 %v1927
        %3293 = vmatpush.bf16.msra.mxu0 %v1919
        %3294 = vmatmul.bf16.gmra.mxu0 %v781
        %v3295 = vpop.f32.mrf.mxu0
        %v3296 = vadd.f32 %v3252, %v3295
        %v3297 = vpop.f32.mrf.mxu0
        %v3298 = vadd.f32 %v3254, %v3297
        %3299 = vmatmul.bf16.gmra.mxu0 %v785
        %v3300 = vpop.f32.mrf.mxu0
        %v3301 = vadd.f32 %v3257, %v3300
        %v3302 = vpop.f32.mrf.mxu0
        %v3303 = vadd.f32 %v3259, %v3302
        %3304 = vmatmul.bf16.gmra.mxu0 %v789
        %v3305 = vpop.f32.mrf.mxu0
        %v3306 = vadd.f32 %v3262, %v3305
        %v3307 = vpop.f32.mrf.mxu0
        %v3308 = vadd.f32 %v3264, %v3307
        %3309 = vmatmul.bf16.gmra.mxu0 %v793
        %v3310 = vpop.f32.mrf.mxu0
        %v3311 = vadd.f32 %v3267, %v3310
        %v3312 = vpop.f32.mrf.mxu0
        %v3313 = vadd.f32 %v3269, %v3312
        %3314 = vmatmul.bf16.gmra.mxu0 %v797
        %v3315 = vpop.f32.mrf.mxu0
        %v3316 = vadd.f32 %v3272, %v3315
        %v3317 = vpop.f32.mrf.mxu0
        %v3318 = vadd.f32 %v3274, %v3317
        %3319 = vmatmul.bf16.gmra.mxu0 %v801
        %v3320 = vpop.f32.mrf.mxu0
        %v3321 = vadd.f32 %v3277, %v3320
        %v3322 = vpop.f32.mrf.mxu0
        %v3323 = vadd.f32 %v3279, %v3322
        %3324 = vmatmul.bf16.gmra.mxu0 %v805
        %v3325 = vpop.f32.mrf.mxu0
        %v3326 = vadd.f32 %v3282, %v3325
        %v3327 = vpop.f32.mrf.mxu0
        %v3328 = vadd.f32 %v3284, %v3327
        %3329 = vdwg.mxu0
        %3330 = vmatpush.bf16.msra.mxu0 %v2039
        %3331 = vmatpush.bf16.msra.mxu0 %v2031
        %3332 = vmatpush.bf16.msra.mxu0 %v2023
        %3333 = vmatpush.bf16.msra.mxu0 %v2015
        %3334 = vmatpush.bf16.msra.mxu0 %v2007
        %3335 = vmatpush.bf16.msra.mxu0 %v1999
        %3336 = vmatpush.bf16.msra.mxu0 %v1991
        %3337 = vmatpush.bf16.msra.mxu0 %v1983
        %3338 = vmatmul.bf16.gmra.mxu0 %v782
        %v3339 = vpop.f32.mrf.mxu0
        %v3340 = vadd.f32 %v3296, %v3339
        %v3341 = vpop.f32.mrf.mxu0
        %v3342 = vadd.f32 %v3298, %v3341
        %3343 = vmatmul.bf16.gmra.mxu0 %v786
        %v3344 = vpop.f32.mrf.mxu0
        %v3345 = vadd.f32 %v3301, %v3344
        %v3346 = vpop.f32.mrf.mxu0
        %v3347 = vadd.f32 %v3303, %v3346
        %3348 = vmatmul.bf16.gmra.mxu0 %v790
        %v3349 = vpop.f32.mrf.mxu0
        %v3350 = vadd.f32 %v3306, %v3349
        %v3351 = vpop.f32.mrf.mxu0
        %v3352 = vadd.f32 %v3308, %v3351
        %3353 = vmatmul.bf16.gmra.mxu0 %v794
        %v3354 = vpop.f32.mrf.mxu0
        %v3355 = vadd.f32 %v3311, %v3354
        %v3356 = vpop.f32.mrf.mxu0
        %v3357 = vadd.f32 %v3313, %v3356
        %3358 = vmatmul.bf16.gmra.mxu0 %v798
        %v3359 = vpop.f32.mrf.mxu0
        %v3360 = vadd.f32 %v3316, %v3359
        %v3361 = vpop.f32.mrf.mxu0
        %v3362 = vadd.f32 %v3318, %v3361
        %3363 = vmatmul.bf16.gmra.mxu0 %v802
        %v3364 = vpop.f32.mrf.mxu0
        %v3365 = vadd.f32 %v3321, %v3364
        %v3366 = vpop.f32.mrf.mxu0
        %v3367 = vadd.f32 %v3323, %v3366
        %3368 = vmatmul.bf16.gmra.mxu0 %v806
        %v3369 = vpop.f32.mrf.mxu0
        %v3370 = vadd.f32 %v3326, %v3369
        %v3371 = vpop.f32.mrf.mxu0
        %v3372 = vadd.f32 %v3328, %v3371
        %3373 = vdwg.mxu0
        %3374 = vmatpush.bf16.msra.mxu0 %v2103
        %3375 = vmatpush.bf16.msra.mxu0 %v2095
        %3376 = vmatpush.bf16.msra.mxu0 %v2087
        %3377 = vmatpush.bf16.msra.mxu0 %v2079
        %3378 = vmatpush.bf16.msra.mxu0 %v2071
        %3379 = vmatpush.bf16.msra.mxu0 %v2063
        %3380 = vmatpush.bf16.msra.mxu0 %v2055
        %3381 = vmatpush.bf16.msra.mxu0 %v2047
        %3382 = vmatmul.bf16.gmra.mxu0 %v783
        %v3383 = vpop.f32.mrf.mxu0
        %v3384 = vadd.f32 %v3340, %v3383
        %v3385 = vpop.f32.mrf.mxu0
        %v3386 = vadd.f32 %v3342, %v3385
        %3387 = vmatmul.bf16.gmra.mxu0 %v787
        %v3388 = vpop.f32.mrf.mxu0
        %v3389 = vadd.f32 %v3345, %v3388
        %v3390 = vpop.f32.mrf.mxu0
        %v3391 = vadd.f32 %v3347, %v3390
        %3392 = vmatmul.bf16.gmra.mxu0 %v791
        %v3393 = vpop.f32.mrf.mxu0
        %v3394 = vadd.f32 %v3350, %v3393
        %v3395 = vpop.f32.mrf.mxu0
        %v3396 = vadd.f32 %v3352, %v3395
        %3397 = vmatmul.bf16.gmra.mxu0 %v795
        %v3398 = vpop.f32.mrf.mxu0
        %v3399 = vadd.f32 %v3355, %v3398
        %v3400 = vpop.f32.mrf.mxu0
        %v3401 = vadd.f32 %v3357, %v3400
        %3402 = vmatmul.bf16.gmra.mxu0 %v799
        %v3403 = vpop.f32.mrf.mxu0
        %v3404 = vadd.f32 %v3360, %v3403
        %v3405 = vpop.f32.mrf.mxu0
        %v3406 = vadd.f32 %v3362, %v3405
        %3407 = vmatmul.bf16.gmra.mxu0 %v803
        %v3408 = vpop.f32.mrf.mxu0
        %v3409 = vadd.f32 %v3365, %v3408
        %v3410 = vpop.f32.mrf.mxu0
        %v3411 = vadd.f32 %v3367, %v3410
        %3412 = vmatmul.bf16.gmra.mxu0 %v807
        %v3413 = vpop.f32.mrf.mxu0
        %v3414 = vadd.f32 %v3370, %v3413
        %v3415 = vpop.f32.mrf.mxu0
        %v3416 = vadd.f32 %v3372, %v3415
        %3417 = vdwg.mxu0
        %3418 = vmatpush.bf16.msra.mxu0 %v1912
        %3419 = vmatpush.bf16.msra.mxu0 %v1904
        %3420 = vmatpush.bf16.msra.mxu0 %v1896
        %3421 = vmatpush.bf16.msra.mxu0 %v1888
        %3422 = vmatpush.bf16.msra.mxu0 %v1880
        %3423 = vmatpush.bf16.msra.mxu0 %v1872
        %3424 = vmatpush.bf16.msra.mxu0 %v1864
        %3425 = vmatpush.bf16.msra.mxu0 %v1856
        %3426 = vmatmul.bf16.gmra.mxu0 %v780
        %v3427 = vpop.f32.mrf.mxu0
        %v3428 = vadd.f32 %v1072, %v3427
        %v3429 = vpop.f32.mrf.mxu0
        %v3430 = vadd.f32 %v1072, %v3429
        %3431 = vmatmul.bf16.gmra.mxu0 %v784
        %v3432 = vpop.f32.mrf.mxu0
        %v3433 = vadd.f32 %v1072, %v3432
        %v3434 = vpop.f32.mrf.mxu0
        %v3435 = vadd.f32 %v1072, %v3434
        %3436 = vmatmul.bf16.gmra.mxu0 %v788
        %v3437 = vpop.f32.mrf.mxu0
        %v3438 = vadd.f32 %v1072, %v3437
        %v3439 = vpop.f32.mrf.mxu0
        %v3440 = vadd.f32 %v1072, %v3439
        %3441 = vmatmul.bf16.gmra.mxu0 %v792
        %v3442 = vpop.f32.mrf.mxu0
        %v3443 = vadd.f32 %v1072, %v3442
        %v3444 = vpop.f32.mrf.mxu0
        %v3445 = vadd.f32 %v1072, %v3444
        %3446 = vmatmul.bf16.gmra.mxu0 %v796
        %v3447 = vpop.f32.mrf.mxu0
        %v3448 = vadd.f32 %v1072, %v3447
        %v3449 = vpop.f32.mrf.mxu0
        %v3450 = vadd.f32 %v1072, %v3449
        %3451 = vmatmul.bf16.gmra.mxu0 %v800
        %v3452 = vpop.f32.mrf.mxu0
        %v3453 = vadd.f32 %v1072, %v3452
        %v3454 = vpop.f32.mrf.mxu0
        %v3455 = vadd.f32 %v1072, %v3454
        %3456 = vmatmul.bf16.gmra.mxu0 %v804
        %v3457 = vpop.f32.mrf.mxu0
        %v3458 = vadd.f32 %v1072, %v3457
        %v3459 = vpop.f32.mrf.mxu0
        %v3460 = vadd.f32 %v1072, %v3459
        %3461 = vdwg.mxu0
        %3462 = vmatpush.bf16.msra.mxu0 %v1976
        %3463 = vmatpush.bf16.msra.mxu0 %v1968
        %3464 = vmatpush.bf16.msra.mxu0 %v1960
        %3465 = vmatpush.bf16.msra.mxu0 %v1952
        %3466 = vmatpush.bf16.msra.mxu0 %v1944
        %3467 = vmatpush.bf16.msra.mxu0 %v1936
        %3468 = vmatpush.bf16.msra.mxu0 %v1928
        %3469 = vmatpush.bf16.msra.mxu0 %v1920
        %3470 = vmatmul.bf16.gmra.mxu0 %v781
        %v3471 = vpop.f32.mrf.mxu0
        %v3472 = vadd.f32 %v3428, %v3471
        %v3473 = vpop.f32.mrf.mxu0
        %v3474 = vadd.f32 %v3430, %v3473
        %3475 = vmatmul.bf16.gmra.mxu0 %v785
        %v3476 = vpop.f32.mrf.mxu0
        %v3477 = vadd.f32 %v3433, %v3476
        %v3478 = vpop.f32.mrf.mxu0
        %v3479 = vadd.f32 %v3435, %v3478
        %3480 = vmatmul.bf16.gmra.mxu0 %v789
        %v3481 = vpop.f32.mrf.mxu0
        %v3482 = vadd.f32 %v3438, %v3481
        %v3483 = vpop.f32.mrf.mxu0
        %v3484 = vadd.f32 %v3440, %v3483
        %3485 = vmatmul.bf16.gmra.mxu0 %v793
        %v3486 = vpop.f32.mrf.mxu0
        %v3487 = vadd.f32 %v3443, %v3486
        %v3488 = vpop.f32.mrf.mxu0
        %v3489 = vadd.f32 %v3445, %v3488
        %3490 = vmatmul.bf16.gmra.mxu0 %v797
        %v3491 = vpop.f32.mrf.mxu0
        %v3492 = vadd.f32 %v3448, %v3491
        %v3493 = vpop.f32.mrf.mxu0
        %v3494 = vadd.f32 %v3450, %v3493
        %3495 = vmatmul.bf16.gmra.mxu0 %v801
        %v3496 = vpop.f32.mrf.mxu0
        %v3497 = vadd.f32 %v3453, %v3496
        %v3498 = vpop.f32.mrf.mxu0
        %v3499 = vadd.f32 %v3455, %v3498
        %3500 = vmatmul.bf16.gmra.mxu0 %v805
        %v3501 = vpop.f32.mrf.mxu0
        %v3502 = vadd.f32 %v3458, %v3501
        %v3503 = vpop.f32.mrf.mxu0
        %v3504 = vadd.f32 %v3460, %v3503
        %3505 = vdwg.mxu0
        %3506 = vmatpush.bf16.msra.mxu0 %v2040
        %3507 = vmatpush.bf16.msra.mxu0 %v2032
        %3508 = vmatpush.bf16.msra.mxu0 %v2024
        %3509 = vmatpush.bf16.msra.mxu0 %v2016
        %3510 = vmatpush.bf16.msra.mxu0 %v2008
        %3511 = vmatpush.bf16.msra.mxu0 %v2000
        %3512 = vmatpush.bf16.msra.mxu0 %v1992
        %3513 = vmatpush.bf16.msra.mxu0 %v1984
        %3514 = vmatmul.bf16.gmra.mxu0 %v782
        %v3515 = vpop.f32.mrf.mxu0
        %v3516 = vadd.f32 %v3472, %v3515
        %v3517 = vpop.f32.mrf.mxu0
        %v3518 = vadd.f32 %v3474, %v3517
        %3519 = vmatmul.bf16.gmra.mxu0 %v786
        %v3520 = vpop.f32.mrf.mxu0
        %v3521 = vadd.f32 %v3477, %v3520
        %v3522 = vpop.f32.mrf.mxu0
        %v3523 = vadd.f32 %v3479, %v3522
        %3524 = vmatmul.bf16.gmra.mxu0 %v790
        %v3525 = vpop.f32.mrf.mxu0
        %v3526 = vadd.f32 %v3482, %v3525
        %v3527 = vpop.f32.mrf.mxu0
        %v3528 = vadd.f32 %v3484, %v3527
        %3529 = vmatmul.bf16.gmra.mxu0 %v794
        %v3530 = vpop.f32.mrf.mxu0
        %v3531 = vadd.f32 %v3487, %v3530
        %v3532 = vpop.f32.mrf.mxu0
        %v3533 = vadd.f32 %v3489, %v3532
        %3534 = vmatmul.bf16.gmra.mxu0 %v798
        %v3535 = vpop.f32.mrf.mxu0
        %v3536 = vadd.f32 %v3492, %v3535
        %v3537 = vpop.f32.mrf.mxu0
        %v3538 = vadd.f32 %v3494, %v3537
        %3539 = vmatmul.bf16.gmra.mxu0 %v802
        %v3540 = vpop.f32.mrf.mxu0
        %v3541 = vadd.f32 %v3497, %v3540
        %v3542 = vpop.f32.mrf.mxu0
        %v3543 = vadd.f32 %v3499, %v3542
        %3544 = vmatmul.bf16.gmra.mxu0 %v806
        %v3545 = vpop.f32.mrf.mxu0
        %v3546 = vadd.f32 %v3502, %v3545
        %v3547 = vpop.f32.mrf.mxu0
        %v3548 = vadd.f32 %v3504, %v3547
        %3549 = vdwg.mxu0
        %3550 = vmatpush.bf16.msra.mxu0 %v2104
        %3551 = vmatpush.bf16.msra.mxu0 %v2096
        %3552 = vmatpush.bf16.msra.mxu0 %v2088
        %3553 = vmatpush.bf16.msra.mxu0 %v2080
        %3554 = vmatpush.bf16.msra.mxu0 %v2072
        %3555 = vmatpush.bf16.msra.mxu0 %v2064
        %3556 = vmatpush.bf16.msra.mxu0 %v2056
        %3557 = vmatpush.bf16.msra.mxu0 %v2048
        %3558 = vmatmul.bf16.gmra.mxu0 %v783
        %v3559 = vpop.f32.mrf.mxu0
        %v3560 = vadd.f32 %v3516, %v3559
        %v3561 = vpop.f32.mrf.mxu0
        %v3562 = vadd.f32 %v3518, %v3561
        %3563 = vmatmul.bf16.gmra.mxu0 %v787
        %v3564 = vpop.f32.mrf.mxu0
        %v3565 = vadd.f32 %v3521, %v3564
        %v3566 = vpop.f32.mrf.mxu0
        %v3567 = vadd.f32 %v3523, %v3566
        %3568 = vmatmul.bf16.gmra.mxu0 %v791
        %v3569 = vpop.f32.mrf.mxu0
        %v3570 = vadd.f32 %v3526, %v3569
        %v3571 = vpop.f32.mrf.mxu0
        %v3572 = vadd.f32 %v3528, %v3571
        %3573 = vmatmul.bf16.gmra.mxu0 %v795
        %v3574 = vpop.f32.mrf.mxu0
        %v3575 = vadd.f32 %v3531, %v3574
        %v3576 = vpop.f32.mrf.mxu0
        %v3577 = vadd.f32 %v3533, %v3576
        %3578 = vmatmul.bf16.gmra.mxu0 %v799
        %v3579 = vpop.f32.mrf.mxu0
        %v3580 = vadd.f32 %v3536, %v3579
        %v3581 = vpop.f32.mrf.mxu0
        %v3582 = vadd.f32 %v3538, %v3581
        %3583 = vmatmul.bf16.gmra.mxu0 %v803
        %v3584 = vpop.f32.mrf.mxu0
        %v3585 = vadd.f32 %v3541, %v3584
        %v3586 = vpop.f32.mrf.mxu0
        %v3587 = vadd.f32 %v3543, %v3586
        %3588 = vmatmul.bf16.gmra.mxu0 %v807
        %v3589 = vpop.f32.mrf.mxu0
        %v3590 = vadd.f32 %v3546, %v3589
        %v3591 = vpop.f32.mrf.mxu0
        %v3592 = vadd.f32 %v3548, %v3591
        %3593 = vdwg.mxu0
        %3594 = vmatpush.bf16.msra.mxu0 %v1913
        %3595 = vmatpush.bf16.msra.mxu0 %v1905
        %3596 = vmatpush.bf16.msra.mxu0 %v1897
        %3597 = vmatpush.bf16.msra.mxu0 %v1889
        %3598 = vmatpush.bf16.msra.mxu0 %v1881
        %3599 = vmatpush.bf16.msra.mxu0 %v1873
        %3600 = vmatpush.bf16.msra.mxu0 %v1865
        %3601 = vmatpush.bf16.msra.mxu0 %v1857
        %3602 = vmatmul.bf16.gmra.mxu0 %v780
        %v3603 = vpop.f32.mrf.mxu0
        %v3604 = vadd.f32 %v1073, %v3603
        %v3605 = vpop.f32.mrf.mxu0
        %v3606 = vadd.f32 %v1073, %v3605
        %3607 = vmatmul.bf16.gmra.mxu0 %v784
        %v3608 = vpop.f32.mrf.mxu0
        %v3609 = vadd.f32 %v1073, %v3608
        %v3610 = vpop.f32.mrf.mxu0
        %v3611 = vadd.f32 %v1073, %v3610
        %3612 = vmatmul.bf16.gmra.mxu0 %v788
        %v3613 = vpop.f32.mrf.mxu0
        %v3614 = vadd.f32 %v1073, %v3613
        %v3615 = vpop.f32.mrf.mxu0
        %v3616 = vadd.f32 %v1073, %v3615
        %3617 = vmatmul.bf16.gmra.mxu0 %v792
        %v3618 = vpop.f32.mrf.mxu0
        %v3619 = vadd.f32 %v1073, %v3618
        %v3620 = vpop.f32.mrf.mxu0
        %v3621 = vadd.f32 %v1073, %v3620
        %3622 = vmatmul.bf16.gmra.mxu0 %v796
        %v3623 = vpop.f32.mrf.mxu0
        %v3624 = vadd.f32 %v1073, %v3623
        %v3625 = vpop.f32.mrf.mxu0
        %v3626 = vadd.f32 %v1073, %v3625
        %3627 = vmatmul.bf16.gmra.mxu0 %v800
        %v3628 = vpop.f32.mrf.mxu0
        %v3629 = vadd.f32 %v1073, %v3628
        %v3630 = vpop.f32.mrf.mxu0
        %v3631 = vadd.f32 %v1073, %v3630
        %3632 = vmatmul.bf16.gmra.mxu0 %v804
        %v3633 = vpop.f32.mrf.mxu0
        %v3634 = vadd.f32 %v1073, %v3633
        %v3635 = vpop.f32.mrf.mxu0
        %v3636 = vadd.f32 %v1073, %v3635
        %3637 = vdwg.mxu0
        %3638 = vmatpush.bf16.msra.mxu0 %v1977
        %3639 = vmatpush.bf16.msra.mxu0 %v1969
        %3640 = vmatpush.bf16.msra.mxu0 %v1961
        %3641 = vmatpush.bf16.msra.mxu0 %v1953
        %3642 = vmatpush.bf16.msra.mxu0 %v1945
        %3643 = vmatpush.bf16.msra.mxu0 %v1937
        %3644 = vmatpush.bf16.msra.mxu0 %v1929
        %3645 = vmatpush.bf16.msra.mxu0 %v1921
        %3646 = vmatmul.bf16.gmra.mxu0 %v781
        %v3647 = vpop.f32.mrf.mxu0
        %v3648 = vadd.f32 %v3604, %v3647
        %v3649 = vpop.f32.mrf.mxu0
        %v3650 = vadd.f32 %v3606, %v3649
        %3651 = vmatmul.bf16.gmra.mxu0 %v785
        %v3652 = vpop.f32.mrf.mxu0
        %v3653 = vadd.f32 %v3609, %v3652
        %v3654 = vpop.f32.mrf.mxu0
        %v3655 = vadd.f32 %v3611, %v3654
        %3656 = vmatmul.bf16.gmra.mxu0 %v789
        %v3657 = vpop.f32.mrf.mxu0
        %v3658 = vadd.f32 %v3614, %v3657
        %v3659 = vpop.f32.mrf.mxu0
        %v3660 = vadd.f32 %v3616, %v3659
        %3661 = vmatmul.bf16.gmra.mxu0 %v793
        %v3662 = vpop.f32.mrf.mxu0
        %v3663 = vadd.f32 %v3619, %v3662
        %v3664 = vpop.f32.mrf.mxu0
        %v3665 = vadd.f32 %v3621, %v3664
        %3666 = vmatmul.bf16.gmra.mxu0 %v797
        %v3667 = vpop.f32.mrf.mxu0
        %v3668 = vadd.f32 %v3624, %v3667
        %v3669 = vpop.f32.mrf.mxu0
        %v3670 = vadd.f32 %v3626, %v3669
        %3671 = vmatmul.bf16.gmra.mxu0 %v801
        %v3672 = vpop.f32.mrf.mxu0
        %v3673 = vadd.f32 %v3629, %v3672
        %v3674 = vpop.f32.mrf.mxu0
        %v3675 = vadd.f32 %v3631, %v3674
        %3676 = vmatmul.bf16.gmra.mxu0 %v805
        %v3677 = vpop.f32.mrf.mxu0
        %v3678 = vadd.f32 %v3634, %v3677
        %v3679 = vpop.f32.mrf.mxu0
        %v3680 = vadd.f32 %v3636, %v3679
        %3681 = vdwg.mxu0
        %3682 = vmatpush.bf16.msra.mxu0 %v2041
        %3683 = vmatpush.bf16.msra.mxu0 %v2033
        %3684 = vmatpush.bf16.msra.mxu0 %v2025
        %3685 = vmatpush.bf16.msra.mxu0 %v2017
        %3686 = vmatpush.bf16.msra.mxu0 %v2009
        %3687 = vmatpush.bf16.msra.mxu0 %v2001
        %3688 = vmatpush.bf16.msra.mxu0 %v1993
        %3689 = vmatpush.bf16.msra.mxu0 %v1985
        %3690 = vmatmul.bf16.gmra.mxu0 %v782
        %v3691 = vpop.f32.mrf.mxu0
        %v3692 = vadd.f32 %v3648, %v3691
        %v3693 = vpop.f32.mrf.mxu0
        %v3694 = vadd.f32 %v3650, %v3693
        %3695 = vmatmul.bf16.gmra.mxu0 %v786
        %v3696 = vpop.f32.mrf.mxu0
        %v3697 = vadd.f32 %v3653, %v3696
        %v3698 = vpop.f32.mrf.mxu0
        %v3699 = vadd.f32 %v3655, %v3698
        %3700 = vmatmul.bf16.gmra.mxu0 %v790
        %v3701 = vpop.f32.mrf.mxu0
        %v3702 = vadd.f32 %v3658, %v3701
        %v3703 = vpop.f32.mrf.mxu0
        %v3704 = vadd.f32 %v3660, %v3703
        %3705 = vmatmul.bf16.gmra.mxu0 %v794
        %v3706 = vpop.f32.mrf.mxu0
        %v3707 = vadd.f32 %v3663, %v3706
        %v3708 = vpop.f32.mrf.mxu0
        %v3709 = vadd.f32 %v3665, %v3708
        %3710 = vmatmul.bf16.gmra.mxu0 %v798
        %v3711 = vpop.f32.mrf.mxu0
        %v3712 = vadd.f32 %v3668, %v3711
        %v3713 = vpop.f32.mrf.mxu0
        %v3714 = vadd.f32 %v3670, %v3713
        %3715 = vmatmul.bf16.gmra.mxu0 %v802
        %v3716 = vpop.f32.mrf.mxu0
        %v3717 = vadd.f32 %v3673, %v3716
        %v3718 = vpop.f32.mrf.mxu0
        %v3719 = vadd.f32 %v3675, %v3718
        %3720 = vmatmul.bf16.gmra.mxu0 %v806
        %v3721 = vpop.f32.mrf.mxu0
        %v3722 = vadd.f32 %v3678, %v3721
        %v3723 = vpop.f32.mrf.mxu0
        %v3724 = vadd.f32 %v3680, %v3723
        %3725 = vdwg.mxu0
        %3726 = vmatpush.bf16.msra.mxu0 %v2105
        %3727 = vmatpush.bf16.msra.mxu0 %v2097
        %3728 = vmatpush.bf16.msra.mxu0 %v2089
        %3729 = vmatpush.bf16.msra.mxu0 %v2081
        %3730 = vmatpush.bf16.msra.mxu0 %v2073
        %3731 = vmatpush.bf16.msra.mxu0 %v2065
        %3732 = vmatpush.bf16.msra.mxu0 %v2057
        %3733 = vmatpush.bf16.msra.mxu0 %v2049
        %3734 = vmatmul.bf16.gmra.mxu0 %v783
        %v3735 = vpop.f32.mrf.mxu0
        %v3736 = vadd.f32 %v3692, %v3735
        %v3737 = vpop.f32.mrf.mxu0
        %v3738 = vadd.f32 %v3694, %v3737
        %3739 = vmatmul.bf16.gmra.mxu0 %v787
        %v3740 = vpop.f32.mrf.mxu0
        %v3741 = vadd.f32 %v3697, %v3740
        %v3742 = vpop.f32.mrf.mxu0
        %v3743 = vadd.f32 %v3699, %v3742
        %3744 = vmatmul.bf16.gmra.mxu0 %v791
        %v3745 = vpop.f32.mrf.mxu0
        %v3746 = vadd.f32 %v3702, %v3745
        %v3747 = vpop.f32.mrf.mxu0
        %v3748 = vadd.f32 %v3704, %v3747
        %3749 = vmatmul.bf16.gmra.mxu0 %v795
        %v3750 = vpop.f32.mrf.mxu0
        %v3751 = vadd.f32 %v3707, %v3750
        %v3752 = vpop.f32.mrf.mxu0
        %v3753 = vadd.f32 %v3709, %v3752
        %3754 = vmatmul.bf16.gmra.mxu0 %v799
        %v3755 = vpop.f32.mrf.mxu0
        %v3756 = vadd.f32 %v3712, %v3755
        %v3757 = vpop.f32.mrf.mxu0
        %v3758 = vadd.f32 %v3714, %v3757
        %3759 = vmatmul.bf16.gmra.mxu0 %v803
        %v3760 = vpop.f32.mrf.mxu0
        %v3761 = vadd.f32 %v3717, %v3760
        %v3762 = vpop.f32.mrf.mxu0
        %v3763 = vadd.f32 %v3719, %v3762
        %3764 = vmatmul.bf16.gmra.mxu0 %v807
        %v3765 = vpop.f32.mrf.mxu0
        %v3766 = vadd.f32 %v3722, %v3765
        %v3767 = vpop.f32.mrf.mxu0
        %v3768 = vadd.f32 %v3724, %v3767
        %3769 = vdwg.mxu0
        %v3770 = vpack.c.bf16 %v2680, %v2504
        %v3771 = vpack.c.bf16 %v3032, %v2856
        %v3772 = vpack.c.bf16 %v3384, %v3208
        %v3773 = vpack.c.bf16 %v3736, %v3560
        %v3774 = vpack.c.bf16 %v2682, %v2506
        %v3775 = vpack.c.bf16 %v3034, %v2858
        %v3776 = vpack.c.bf16 %v3386, %v3210
        %v3777 = vpack.c.bf16 %v3738, %v3562
        %v3778 = vpack.c.bf16 %v2685, %v2509
        %v3779 = vpack.c.bf16 %v3037, %v2861
        %v3780 = vpack.c.bf16 %v3389, %v3213
        %v3781 = vpack.c.bf16 %v3741, %v3565
        %v3782 = vpack.c.bf16 %v2687, %v2511
        %v3783 = vpack.c.bf16 %v3039, %v2863
        %v3784 = vpack.c.bf16 %v3391, %v3215
        %v3785 = vpack.c.bf16 %v3743, %v3567
        %v3786 = vpack.c.bf16 %v2690, %v2514
        %v3787 = vpack.c.bf16 %v3042, %v2866
        %v3788 = vpack.c.bf16 %v3394, %v3218
        %v3789 = vpack.c.bf16 %v3746, %v3570
        %v3790 = vpack.c.bf16 %v2692, %v2516
        %v3791 = vpack.c.bf16 %v3044, %v2868
        %v3792 = vpack.c.bf16 %v3396, %v3220
        %v3793 = vpack.c.bf16 %v3748, %v3572
        %v3794 = vpack.c.bf16 %v2695, %v2519
        %v3795 = vpack.c.bf16 %v3047, %v2871
        %v3796 = vpack.c.bf16 %v3399, %v3223
        %v3797 = vpack.c.bf16 %v3751, %v3575
        %v3798 = vpack.c.bf16 %v2697, %v2521
        %v3799 = vpack.c.bf16 %v3049, %v2873
        %v3800 = vpack.c.bf16 %v3401, %v3225
        %v3801 = vpack.c.bf16 %v3753, %v3577
        %v3802 = vpack.c.bf16 %v2700, %v2524
        %v3803 = vpack.c.bf16 %v3052, %v2876
        %v3804 = vpack.c.bf16 %v3404, %v3228
        %v3805 = vpack.c.bf16 %v3756, %v3580
        %v3806 = vpack.c.bf16 %v2702, %v2526
        %v3807 = vpack.c.bf16 %v3054, %v2878
        %v3808 = vpack.c.bf16 %v3406, %v3230
        %v3809 = vpack.c.bf16 %v3758, %v3582
        %v3810 = vpack.c.bf16 %v2705, %v2529
        %v3811 = vpack.c.bf16 %v3057, %v2881
        %v3812 = vpack.c.bf16 %v3409, %v3233
        %v3813 = vpack.c.bf16 %v3761, %v3585
        %v3814 = vpack.c.bf16 %v2707, %v2531
        %v3815 = vpack.c.bf16 %v3059, %v2883
        %v3816 = vpack.c.bf16 %v3411, %v3235
        %v3817 = vpack.c.bf16 %v3763, %v3587
        %v3818 = vpack.c.bf16 %v2710, %v2534
        %v3819 = vpack.c.bf16 %v3062, %v2886
        %v3820 = vpack.c.bf16 %v3414, %v3238
        %v3821 = vpack.c.bf16 %v3766, %v3590
        %v3822 = vpack.c.bf16 %v2712, %v2536
        %v3823 = vpack.c.bf16 %v3064, %v2888
        %v3824 = vpack.c.bf16 %v3416, %v3240
        %v3825 = vpack.c.bf16 %v3768, %v3592
        %3826 = vst [vmem:[%s313] sm:$0xff] %v3770
        %3827 = vst [vmem:[%s313 + $0x8] sm:$0xff] %v3771
        %3828 = vst [vmem:[%s313 + $0x10] sm:$0xff] %v3772
        %3829 = vst [vmem:[%s313 + $0x18] sm:$0xff] %v3773
        %3830 = vst [vmem:[%s313 + $0x20] sm:$0xff] %v3774
        %3831 = vst [vmem:[%s313 + $0x28] sm:$0xff] %v3775
        %3832 = vst [vmem:[%s313 + $0x30] sm:$0xff] %v3776
        %3833 = vst [vmem:[%s313 + $0x38] sm:$0xff] %v3777
        %3834 = vst [vmem:[%s313 + $0x40] sm:$0xff] %v3778
        %3835 = vst [vmem:[%s313 + $0x48] sm:$0xff] %v3779
        %3836 = vst [vmem:[%s313 + $0x50] sm:$0xff] %v3780
        %3837 = vst [vmem:[%s313 + $0x58] sm:$0xff] %v3781
        %3838 = vst [vmem:[%s313 + $0x60] sm:$0xff] %v3782
        %3839 = vst [vmem:[%s313 + $0x68] sm:$0xff] %v3783
        %3840 = vst [vmem:[%s313 + $0x70] sm:$0xff] %v3784
        %3841 = vst [vmem:[%s313 + $0x78] sm:$0xff] %v3785
        %3842 = vst [vmem:[%s313 + $0x80] sm:$0xff] %v3786
        %3843 = vst [vmem:[%s313 + $0x88] sm:$0xff] %v3787
        %3844 = vst [vmem:[%s313 + $0x90] sm:$0xff] %v3788
        %3845 = vst [vmem:[%s313 + $0x98] sm:$0xff] %v3789
        %3846 = vst [vmem:[%s313 + $0xa0] sm:$0xff] %v3790
        %3847 = vst [vmem:[%s313 + $0xa8] sm:$0xff] %v3791
        %3848 = vst [vmem:[%s313 + $0xb0] sm:$0xff] %v3792
        %3849 = vst [vmem:[%s313 + $0xb8] sm:$0xff] %v3793
        %3850 = vst [vmem:[%s313 + $0xc0] sm:$0xff] %v3794
        %3851 = vst [vmem:[%s313 + $0xc8] sm:$0xff] %v3795
        %3852 = vst [vmem:[%s313 + $0xd0] sm:$0xff] %v3796
        %3853 = vst [vmem:[%s313 + $0xd8] sm:$0xff] %v3797
        %3854 = vst [vmem:[%s313 + $0xe0] sm:$0xff] %v3798
        %3855 = vst [vmem:[%s313 + $0xe8] sm:$0xff] %v3799
        %3856 = vst [vmem:[%s313 + $0xf0] sm:$0xff] %v3800
        %3857 = vst [vmem:[%s313 + $0xf8] sm:$0xff] %v3801
        %3858 = vst [vmem:[%s313 + $0x100] sm:$0xff] %v3802
        %3859 = vst [vmem:[%s313 + $0x108] sm:$0xff] %v3803
        %3860 = vst [vmem:[%s313 + $0x110] sm:$0xff] %v3804
        %3861 = vst [vmem:[%s313 + $0x118] sm:$0xff] %v3805
        %3862 = vst [vmem:[%s313 + $0x120] sm:$0xff] %v3806
        %3863 = vst [vmem:[%s313 + $0x128] sm:$0xff] %v3807
        %3864 = vst [vmem:[%s313 + $0x130] sm:$0xff] %v3808
        %3865 = vst [vmem:[%s313 + $0x138] sm:$0xff] %v3809
        %3866 = vst [vmem:[%s313 + $0x140] sm:$0xff] %v3810
        %3867 = vst [vmem:[%s313 + $0x148] sm:$0xff] %v3811
        %3868 = vst [vmem:[%s313 + $0x150] sm:$0xff] %v3812
        %3869 = vst [vmem:[%s313 + $0x158] sm:$0xff] %v3813
        %3870 = vst [vmem:[%s313 + $0x160] sm:$0xff] %v3814
        %3871 = vst [vmem:[%s313 + $0x168] sm:$0xff] %v3815
        %3872 = vst [vmem:[%s313 + $0x170] sm:$0xff] %v3816
        %3873 = vst [vmem:[%s313 + $0x178] sm:$0xff] %v3817
        %3874 = vst [vmem:[%s313 + $0x180] sm:$0xff] %v3818
        %3875 = vst [vmem:[%s313 + $0x188] sm:$0xff] %v3819
        %3876 = vst [vmem:[%s313 + $0x190] sm:$0xff] %v3820
        %3877 = vst [vmem:[%s313 + $0x198] sm:$0xff] %v3821
        %3878 = vst [vmem:[%s313 + $0x1a0] sm:$0xff] %v3822
        %3879 = vst [vmem:[%s313 + $0x1a8] sm:$0xff] %v3823
        %3880 = vst [vmem:[%s313 + $0x1b0] sm:$0xff] %v3824
        %3881 = vst [vmem:[%s313 + $0x1b8] sm:$0xff] %v3825
        %s3882 = sand.u32 %s142, 1
        %s3883 = scalar_lea.sflag [#allocation4], %s3882
        %s3884 = sand.u32 %s142, 1
        %s3885 = smul.addr %s3884, 448
        %s3886 = scalar_lea.vmem [#allocation11], %s3885
        // Predicated region
        $region61: #{mlp_forward.1} parent=39 // pred_check
          %p3887 = pneg %p152
        $region62: #{mlp_forward.1} parent=39 // pred_check_branch
          %3889 = sbr.rel (%p3887) target = $region64
        $region63: #{mlp_forward.1} parent=39 // pred_region
          %s3890 = smul.u32 14, %s24
          %s3891 = ssub.s32 25, %s3890
          %p3892 = scmp.lt.s32.totalorder %s3891, 14
          %s3893 = scalar_select %p3892, %s3891, 14
          %s3894 = smul.u32 4, %s3893
          %s3895 = smul.u32 %s3894, 8
          %s3896 = ssub.s32 448, %s3895
          %s3897 = sshll.u32 %s3896, 4
          %3898 = vsyncadd %s3883, %s3897
          %p3899 = scmp.ne.s32.totalorder 0, %s3895
          %s3900 = smul.addr %s3890, 8
          %s3901 = smul.addr %s3900, 4
          %s3902 = scalar_lea.hbm %s5, %s3901
          %s3903 = smul.u32 32, %s3893
          %s3904 = sshll.u32 %s3886, 4
          %s3905 = int_to_ptr.vmem [resolvable:$true] %s3904
          %s3906 = sshll.u32 %s3902, 4
          %s3907 = int_to_ptr.hbm [resolvable:$true] %s3906
          %s3908 = sshll.u32 %s3903, 4
          %3912 = dma.vmem_to_hbm [thread:$0]  (%p3899), %s3905, %s3908, %s3907, %s3883, 512, 512, 32
        $region64: #{mlp_forward.1} parent=39 // pred_fallthru
          _
      $region40: #{mlp_forward.1} parent=5 // pred_fallthru
        _
      %p3913 = scmp.le.s32.totalorder 2, %s19
      // Predicated region
      $region65: #{mlp_forward.1} parent=5 // pred_check
        %p3914 = pneg %p3913
      $region66: #{mlp_forward.1} parent=5 // pred_check_branch
        %3916 = sbr.rel (%p3914) target = $region68
      $region67: #{mlp_forward.1} parent=5 // pred_region
        %s3917 = ssub.s32 %s19, 2
        // Predicated region
        $region69: #{mlp_forward.1} parent=67 // pred_check
          %p3918 = pneg %p158
        $region70: #{mlp_forward.1} parent=67 // pred_check_branch
          %3920 = sbr.rel (%p3918) target = $region72
        $region71: #{mlp_forward.1} parent=67 // pred_region
          %s3921 = sand.u32 %s143, 1
          %s3922 = scalar_lea.sflag [#allocation4], %s3921
          %s3923 = sand.u32 %s143, 1
          %s3924 = smul.addr %s3923, 448
          %s3925 = scalar_lea.vmem [#allocation11], %s3924
          %3927 = dma.done %s3922, 7168
        $region72: #{mlp_forward.1} parent=67 // pred_fallthru
          _
      $region68: #{mlp_forward.1} parent=5 // pred_fallthru
        _
    $region6: #{mlp_forward.1} parent=1 // loop_footer
      %s23 = sadd.s32 1, %s19
    $region7: #{mlp_forward.1} parent=1 // loop_footer_branch
      %18 = sbr.rel target = $region3
    $region8: #{mlp_forward.1} parent=1 // loop_exit
      _
    %3928 = vsyncpa [#allocation3], 1
    %s3929 = scalar_lea.sflag [#allocation3], 1
    %3930 = vsyncpa %s3929, 1
    %3931 = vsyncpa [#allocation6], 1
    %3932 = vsyncpa [#allocation9], 1
    %3933 = vsyncpa [#allocation4], 1
    %s3934 = scalar_lea.sflag [#allocation4], 1
    %3935 = vsyncpa %s3934, 1

</llo_original>
